<compile_context>
chip_gen: v5e
topology: v5e:2x2
jax: 0.10.0
libtpu: 0.0.40
codegen_flags: <defaults>
</compile_context>

<pallas_src>
import functools

import jax
import jax.numpy as jnp
from jax import lax
from jax.experimental import pallas as pl
from jax.experimental.pallas import tpu as pltpu

_LANE = 128  # channel dims are padded to a multiple of the TPU lane width


def _round_up(x, m):
    return ((x + m - 1) // m) * m


# --------------------------------- kernel ---------------------------------
def _make_kernel(K, pad, T, L, downsample):
    """Per (batch, L-tile) residual-unit kernel.  Static shapes closed over."""
    Lh = T + 2 * pad   # conv1 output rows needed (tile + conv2 halo)
    Lw = T + 4 * pad   # input rows needed for those Lh rows

    def kernel(x_hbm, w1_ref, b1_ref, w2_ref, b2_ref, *rest):
        if downsample:
            wd_ref, bd_ref, o_ref, xbuf, hbuf, sem = rest
        else:
            o_ref, xbuf, hbuf, sem = rest

        b = pl.program_id(0)
        l = pl.program_id(1)
        start = l * T                       # tile start (padded-x row == output row)
        if T % 8 == 0:
            start = pl.multiple_of(start, 8)

        # Halo window DMA: only (Lw, C_in) per step lives in VMEM, independent of L.
        cp = pltpu.make_async_copy(x_hbm.at[b, pl.ds(start, Lw), :], xbuf, sem)
        cp.start()
        cp.wait()

        # ---- conv1 (BN1 scale folded into w1): K accumulating MXU matmuls ----
        acc1 = jnp.dot(xbuf[pl.ds(0, Lh), :], w1_ref[0],
                       preferred_element_type=jnp.float32)
        for k in range(1, K):
            acc1 = acc1 + jnp.dot(xbuf[pl.ds(k, Lh), :], w1_ref[k],
                                  preferred_element_type=jnp.float32)
        h = jnp.maximum(acc1 + b1_ref[0], 0.0)                     # bias + ReLU

        # Rows whose global conv1-output position falls outside [0, L) must be the
        # zero padding conv2 sees in PyTorch.
        g = start - pad + lax.broadcasted_iota(jnp.int32, (Lh, 1), 0)
        h = jnp.where((g >= 0) & (g < L), h, 0.0)
        hbuf[...] = h.astype(jnp.bfloat16)

        # ---- conv2 (BN2 scale folded into w2): K accumulating MXU matmuls ----
        out = jnp.dot(hbuf[pl.ds(0, T), :], w2_ref[0],
                      preferred_element_type=jnp.float32)
        for k in range(1, K):
            out = out + jnp.dot(hbuf[pl.ds(k, T), :], w2_ref[k],
                                preferred_element_type=jnp.float32)
        out = out + b2_ref[0]

        # ---- residual branch ----
        if downsample:
            xc = xbuf[pl.ds(2 * pad, T), :]                        # (T, C_in) bf16
            res = jnp.dot(xc, wd_ref[...],
                          preferred_element_type=jnp.float32) + bd_ref[0]
        else:
            res = xbuf[pl.ds(2 * pad, T), :].astype(jnp.float32)   # identity (bf16->f32)

        # add + ReLU (dropout = identity in eval mode)
        o_ref[...] = jnp.maximum(out + res, 0.0).astype(o_ref.dtype)

    return kernel


# ------------------------------- wrapper glue -------------------------------
def _fold_bn(gamma, beta, mean, var, eps=1e-5):
    scale = gamma / jnp.sqrt(var + eps)
    bias = beta - mean * scale
    return scale.astype(jnp.float32), bias.astype(jnp.float32)


def _prep_conv_weight(w, scale, cin_p, cout_p):
    """(C_out, C_in, K) -> BN-scaled, channel-padded (K, C_in_p, C_out_p) bf16."""
    c_out, c_in, _ = w.shape
    wk = jnp.transpose(w, (2, 1, 0)) * scale[None, None, :]
    wk = jnp.pad(wk, ((0, 0), (0, cin_p - c_in), (0, cout_p - c_out)))
    return wk.astype(jnp.bfloat16)


def _pad_bias(bias, cout_p):
    return jnp.pad(bias, (0, cout_p - bias.shape[0])).reshape(1, cout_p)


def _vmem_budget_bytes():
    try:
        return pltpu.get_tpu_info().vmem_capacity_bytes // 2
    except Exception:
        return 32 * 1024 * 1024            # conservative fallback (v7x: 64 MiB VMEM)


def _pick_l_tile(L, pad, cin_p, cout_p, K, downsample, max_t=1024):
    """Largest multiple-of-8 divisor of L (<= max_t) whose per-step VMEM estimate fits
    the per-chip budget; falls back to the full L if L is not 8-aligned."""
    if L % 8 != 0:
        return L
    budget = _vmem_budget_bytes()

    def step_bytes(t):
        lw, lh = t + 4 * pad, t + 2 * pad
        b = lw * cin_p * 2 + lh * cout_p * 2          # x window + conv1 out (bf16)
        b += 2 * t * cout_p * 4                        # double-buffered output block
        b += (lh + t) * cout_p * 4                     # f32 conv accumulators
        w = (K * cin_p + K * cout_p + (cin_p if downsample else 0)) * cout_p * 2
        return b + w

    best = None
    t = 8
    while t <= min(L, max_t):
        if L % t == 0 and step_bytes(t) <= budget:
            best = t
        t += 8
    return best if best is not None else 8


def _invariant_spec(shape, single_buffer=False):
    """BlockSpec for a grid-invariant input; optionally single-buffered (v7x/large C)."""
    n = len(shape)
    index_map = lambda b, l: (0,) * n
    if single_buffer:
        try:
            return pl.BlockSpec(shape, index_map, pipeline_mode=pl.Buffered(1))
        except (AttributeError, TypeError):
            pass  # older JAX without pipeline_mode / Buffered: fall back to default
    return pl.BlockSpec(shape, index_map)


@functools.partial(
    jax.jit, static_argnames=("kernel_size", "l_tile", "single_buffer_weights"))
def residual_unit_forward(x_ncl, params, kernel_size=17, l_tile=None,
                          single_buffer_weights=False):
    """x_ncl: (N, C_in, L) float32, PyTorch Conv1d layout.  Returns (N, C_out, L)."""
    N, C_in, L = x_ncl.shape
    K = kernel_size
    assert K % 2 == 1, "odd kernel_size expected (PyTorch 'same' padding)"
    pad = K // 2

    C_out = params["w1"].shape[0]
    downsample = C_in != C_out
    if downsample:
        assert "wd" in params and "bnd" in params, "downsample params missing"

    cin_p = _round_up(C_in, _LANE)        # lane-dense contraction dim
    cout_p = _round_up(C_out, _LANE)      # lane-dense output dim (unmasked vst)

    T = l_tile if l_tile is not None else _pick_l_tile(
        L, pad, cin_p, cout_p, K, downsample)
    assert L % T == 0, "L tile must divide L"
    n_lt = L // T
    Lw = T + 4 * pad
    Lh = T + 2 * pad
    L_pad4 = L + 4 * pad

    # NCL->NLC, f32->bf16 cast, L halo pad and channel pad in ONE wrapper pass.
    x_pad = jnp.pad(jnp.transpose(x_ncl, (0, 2, 1)).astype(jnp.bfloat16),
                    ((0, 0), (2 * pad, 2 * pad), (0, cin_p - C_in)))

    # Fold BN (eval mode) into scale/bias; fold the scales into the conv weights.
    s1, b1 = _fold_bn(*params["bn1"])
    s2, b2 = _fold_bn(*params["bn2"])
    w1 = _prep_conv_weight(params["w1"], s1, cin_p, cout_p)     # (K, cin_p, cout_p)
    w2 = _prep_conv_weight(params["w2"], s2, cout_p, cout_p)    # (K, cout_p, cout_p)
    b1 = _pad_bias(b1, cout_p)
    b2 = _pad_bias(b2, cout_p)

    inputs = [x_pad, w1, b1, w2, b2]
    in_specs = [
        pl.BlockSpec(memory_space=pl.ANY),                      # x stays in HBM
        _invariant_spec((K, cin_p, cout_p), single_buffer_weights),
        _invariant_spec((1, cout_p)),
        _invariant_spec((K, cout_p, cout_p), single_buffer_weights),
        _invariant_spec((1, cout_p)),
    ]
    if downsample:
        sd, bd = _fold_bn(*params["bnd"])
        wd = jnp.transpose(params["wd"], (2, 1, 0))[0] * sd[None, :]   # (C_in, C_out)
        wd = jnp.pad(wd, ((0, cin_p - C_in), (0, cout_p - C_out))).astype(jnp.bfloat16)
        inputs += [wd, _pad_bias(bd, cout_p)]
        in_specs += [_invariant_spec((cin_p, cout_p), single_buffer_weights),
                     _invariant_spec((1, cout_p))]

    flops = 2 * N * L * (K * cin_p * cout_p + K * cout_p * cout_p
                         + (cin_p * cout_p if downsample else 0))
    bytes_accessed = (N * L_pad4 * cin_p * 2 + N * L * cout_p * 4
                      + K * cin_p * cout_p * 2 + K * cout_p * cout_p * 2
                      + (cin_p * cout_p * 2 if downsample else 0))

    out_nlc = pl.pallas_call(
        _make_kernel(K, pad, T, L, downsample),
        out_shape=jax.ShapeDtypeStruct((N, L, cout_p), jnp.float32),
        grid_spec=pltpu.PrefetchScalarGridSpec(
            num_scalar_prefetch=0,
            grid=(N, n_lt),
            in_specs=in_specs,
            out_specs=pl.BlockSpec((None, T, cout_p), lambda b, l: (b, l, 0)),
            scratch_shapes=[
                pltpu.VMEM((Lw, cin_p), jnp.bfloat16),   # halo input window
                pltpu.VMEM((Lh, cout_p), jnp.bfloat16),  # conv1 output (+ halo)
                pltpu.SemaphoreType.DMA,
            ]),
        compiler_params=pltpu.CompilerParams(
            dimension_semantics=("parallel", "parallel"),
            vmem_limit_bytes=64 * 1024 * 1024),
        cost_estimate=pl.CostEstimate(flops=int(flops), transcendentals=0,
                                      bytes_accessed=int(bytes_accessed)),
    )(*inputs)

    # Back to (N, C_out, L): transpose + slice off the channel padding (fused by XLA).
    return jnp.transpose(out_nlc, (0, 2, 1))[:, :C_out, :]


# ------------------------- pure-JAX reference (for checking) -------------------------
def _ref_forward(x, params, kernel_size=17):
    pad = kernel_size // 2
    dn = ("NCH", "OIH", "NCH")

    def conv(inp, w, p):
        return lax.conv_general_dilated(inp, w, window_strides=(1,),
                                        padding=[(p, p)], dimension_numbers=dn)

    def bn(inp, prm):
        gamma, beta, mean, var = prm
        s = gamma / jnp.sqrt(var + 1e-5)
        b = beta - mean * s
        return inp * s[None, :, None] + b[None, :, None]

    out = jnp.maximum(bn(conv(x, params["w1"], pad), params["bn1"]), 0.0)
    out = bn(conv(out, params["w2"], pad), params["bn2"])
    res = x
    if "wd" in params:
        res = bn(conv(x, params["wd"], 0), params["bnd"])
    return jnp.maximum(out + res, 0.0)


def _bn_params(k, C):
    k0, k1, k2, k3 = jax.random.split(k, 4)
    return (1.0 + 0.1 * jax.random.normal(k0, (C,), jnp.float32),   # gamma
            0.1 * jax.random.normal(k1, (C,), jnp.float32),          # beta
            0.05 * jax.random.normal(k2, (C,), jnp.float32),         # running_mean
            1.0 + 0.1 * jax.random.uniform(k3, (C,), jnp.float32))   # running_var


if __name__ == "__main__":
    key = jax.random.PRNGKey(0)
    N, C_in, C_out, L, K = 2, 4, 8, 16, 17
    keys = jax.random.split(key, 10)

    # bf16 matmul operands (f32 accumulate) -> slightly looser tolerance vs f32 ref.
    RTOL = ATOL = 2e-2

    # ---------------- case 1: downsample path (C_in != C_out), explicit tile ----------------
    params = {
        "w1": 0.1 * jax.random.normal(keys[0], (C_out, C_in, K), jnp.float32),
        "bn1": _bn_params(keys[1], C_out),
        "w2": 0.1 * jax.random.normal(keys[2], (C_out, C_out, K), jnp.float32),
        "bn2": _bn_params(keys[3], C_out),
        "wd": 0.1 * jax.random.normal(keys[4], (C_out, C_in, 1), jnp.float32),
        "bnd": _bn_params(keys[5], C_out),
    }
    x = jax.random.normal(keys[6], (N, C_in, L), jnp.float32)

    out = residual_unit_forward(x, params, kernel_size=K, l_tile=8)  # 2 L-tiles
    out = jax.block_until_ready(out)
    ref = _ref_forward(x, params, kernel_size=K)
    assert out.shape == (N, C_out, L)
    assert jnp.allclose(out, ref, rtol=RTOL, atol=ATOL), "mismatch (downsample path)"

    # ---------------- case 2: identity-residual path (C_in == C_out), auto tile ----------------
    C = C_out
    params2 = {
        "w1": 0.1 * jax.random.normal(keys[7], (C, C, K), jnp.float32),
        "bn1": _bn_params(keys[1], C),
        "w2": 0.1 * jax.random.normal(keys[8], (C, C, K), jnp.float32),
        "bn2": _bn_params(keys[3], C),
    }
    x2 = jax.random.normal(keys[9], (N, C, L), jnp.float32)

    out2 = residual_unit_forward(x2, params2, kernel_size=K)   # l_tile auto-picked
    out2 = jax.block_until_ready(out2)
    ref2 = _ref_forward(x2, params2, kernel_size=K)
    assert out2.shape == (N, C, L)
    assert jnp.allclose(out2, ref2, rtol=RTOL, atol=ATOL), "mismatch (identity path)"

    print("KERNEL_OK")
</pallas_src>

<mosaic_0001>
module attributes {stable_mosaic.version = 11 : i64} {
  func.func @kernel(%arg0: i32, %arg1: i32, %arg2: memref<2x48x128xbf16, #tpu.memory_space<any>>, %arg3: memref<17x128x128xbf16, #tpu.memory_space<vmem>>, %arg4: memref<1x128xf32, #tpu.memory_space<vmem>>, %arg5: memref<17x128x128xbf16, #tpu.memory_space<vmem>>, %arg6: memref<1x128xf32, #tpu.memory_space<vmem>>, %arg7: memref<128x128xbf16, #tpu.memory_space<vmem>>, %arg8: memref<1x128xf32, #tpu.memory_space<vmem>>, %arg9: memref<1x8x128xf32, #tpu.memory_space<vmem>>, %arg10: memref<40x128xbf16, #tpu.memory_space<vmem>>, %arg11: memref<24x128xbf16, #tpu.memory_space<vmem>>, %arg12: memref<!tpu.dma_semaphore, #tpu.memory_space<semaphore_mem>>) attributes {dimension_semantics = [#tpu.dimension_semantics<parallel>, #tpu.dimension_semantics<parallel>], iteration_bounds = array<i64: 2, 2>, scalar_prefetch = 0 : i64, scratch_operands = 3 : i64, tpu.core_type = #tpu.core_type<tc>, window_params = [{}, {pipeline_mode = #tpu.pipeline_mode<synchronous>, transform_indices = @transform_1, window_bounds = array<i64: 17, 128, 128>}, {pipeline_mode = #tpu.pipeline_mode<synchronous>, transform_indices = @transform_2, window_bounds = array<i64: 1, 128>}, {pipeline_mode = #tpu.pipeline_mode<synchronous>, transform_indices = @transform_3, window_bounds = array<i64: 17, 128, 128>}, {pipeline_mode = #tpu.pipeline_mode<synchronous>, transform_indices = @transform_4, window_bounds = array<i64: 1, 128>}, {pipeline_mode = #tpu.pipeline_mode<synchronous>, transform_indices = @transform_5, window_bounds = array<i64: 128, 128>}, {pipeline_mode = #tpu.pipeline_mode<synchronous>, transform_indices = @transform_6, window_bounds = array<i64: 1, 128>}, {transform_indices = @transform_7, window_bounds = array<i64: 1, 8, 128>}]} {
    %c8_i32 = arith.constant 8 : i32
    %0 = arith.muli %arg1, %c8_i32 : i32
    %1 = tpu.assume_multiple %0, 8 : i32
    %c0_i32 = arith.constant 0 : i32
    %2 = tpu.memref_slice %arg2[%arg0, %1, %c0_i32] : memref<2x48x128xbf16, #tpu.memory_space<any>> -> memref<1x40x128xbf16, #tpu.memory_space<any>>
    %3 = tpu.memref_squeeze %2 : memref<1x40x128xbf16, #tpu.memory_space<any>> -> memref<40x128xbf16, #tpu.memory_space<any>>
    tpu.enqueue_dma source(%3 : memref<40x128xbf16, #tpu.memory_space<any>>) target(%arg10 : memref<40x128xbf16, #tpu.memory_space<vmem>>) target_semaphore(%arg12 : memref<!tpu.dma_semaphore, #tpu.memory_space<semaphore_mem>>)
    %c0_i32_0 = arith.constant 0 : i32
    %4 = tpu.memref_slice %arg2[%arg0, %1, %c0_i32_0] : memref<2x48x128xbf16, #tpu.memory_space<any>> -> memref<1x40x128xbf16, #tpu.memory_space<any>>
    %5 = tpu.memref_squeeze %4 : memref<1x40x128xbf16, #tpu.memory_space<any>> -> memref<40x128xbf16, #tpu.memory_space<any>>
    tpu.wait_dma2 semaphore(%arg12 : memref<!tpu.dma_semaphore, #tpu.memory_space<semaphore_mem>>) src(%5 : memref<40x128xbf16, #tpu.memory_space<any>>) dst(%arg10 : memref<40x128xbf16, #tpu.memory_space<vmem>>)
    %c0 = arith.constant 0 : index
    %c0_1 = arith.constant 0 : index
    %6 = vector.load %arg10[%c0, %c0_1] : memref<40x128xbf16, #tpu.memory_space<vmem>>, vector<24x128xbf16>
    %c0_2 = arith.constant 0 : index
    %c0_3 = arith.constant 0 : index
    %c0_4 = arith.constant 0 : index
    %7 = vector.load %arg3[%c0_2, %c0_3, %c0_4] : memref<17x128x128xbf16, #tpu.memory_space<vmem>>, vector<1x128x128xbf16>
    %8 = vector.shape_cast %7 : vector<1x128x128xbf16> to vector<128x128xbf16>
    %cst = arith.constant dense<0.000000e+00> : vector<24x128xf32>
    %9 = tpu.matmul %6, %8, %cst {dimension_numbers = #tpu.dot_dimension_numbers<[1], [0], [0], [1], [0, 0, 1, 1], [], []>} : vector<24x128xbf16>, vector<128x128xbf16>, vector<24x128xf32> -> vector<24x128xf32>
    %c1 = arith.constant 1 : index
    %c0_5 = arith.constant 0 : index
    %10 = vector.load %arg10[%c1, %c0_5] : memref<40x128xbf16, #tpu.memory_space<vmem>>, vector<24x128xbf16>
    %c1_6 = arith.constant 1 : index
    %c0_7 = arith.constant 0 : index
    %c0_8 = arith.constant 0 : index
    %11 = vector.load %arg3[%c1_6, %c0_7, %c0_8] : memref<17x128x128xbf16, #tpu.memory_space<vmem>>, vector<1x128x128xbf16>
    %12 = vector.shape_cast %11 : vector<1x128x128xbf16> to vector<128x128xbf16>
    %cst_9 = arith.constant dense<0.000000e+00> : vector<24x128xf32>
    %13 = tpu.matmul %10, %12, %cst_9 {dimension_numbers = #tpu.dot_dimension_numbers<[1], [0], [0], [1], [0, 0, 1, 1], [], []>} : vector<24x128xbf16>, vector<128x128xbf16>, vector<24x128xf32> -> vector<24x128xf32>
    %14 = arith.addf %9, %13 : vector<24x128xf32>
    %c2 = arith.constant 2 : index
    %c0_10 = arith.constant 0 : index
    %15 = vector.load %arg10[%c2, %c0_10] : memref<40x128xbf16, #tpu.memory_space<vmem>>, vector<24x128xbf16>
    %c2_11 = arith.constant 2 : index
    %c0_12 = arith.constant 0 : index
    %c0_13 = arith.constant 0 : index
    %16 = vector.load %arg3[%c2_11, %c0_12, %c0_13] : memref<17x128x128xbf16, #tpu.memory_space<vmem>>, vector<1x128x128xbf16>
    %17 = vector.shape_cast %16 : vector<1x128x128xbf16> to vector<128x128xbf16>
    %cst_14 = arith.constant dense<0.000000e+00> : vector<24x128xf32>
    %18 = tpu.matmul %15, %17, %cst_14 {dimension_numbers = #tpu.dot_dimension_numbers<[1], [0], [0], [1], [0, 0, 1, 1], [], []>} : vector<24x128xbf16>, vector<128x128xbf16>, vector<24x128xf32> -> vector<24x128xf32>
    %19 = arith.addf %14, %18 : vector<24x128xf32>
    %c3 = arith.constant 3 : index
    %c0_15 = arith.constant 0 : index
    %20 = vector.load %arg10[%c3, %c0_15] : memref<40x128xbf16, #tpu.memory_space<vmem>>, vector<24x128xbf16>
    %c3_16 = arith.constant 3 : index
    %c0_17 = arith.constant 0 : index
    %c0_18 = arith.constant 0 : index
    %21 = vector.load %arg3[%c3_16, %c0_17, %c0_18] : memref<17x128x128xbf16, #tpu.memory_space<vmem>>, vector<1x128x128xbf16>
    %22 = vector.shape_cast %21 : vector<1x128x128xbf16> to vector<128x128xbf16>
    %cst_19 = arith.constant dense<0.000000e+00> : vector<24x128xf32>
    %23 = tpu.matmul %20, %22, %cst_19 {dimension_numbers = #tpu.dot_dimension_numbers<[1], [0], [0], [1], [0, 0, 1, 1], [], []>} : vector<24x128xbf16>, vector<128x128xbf16>, vector<24x128xf32> -> vector<24x128xf32>
    %24 = arith.addf %19, %23 : vector<24x128xf32>
    %c4 = arith.constant 4 : index
    %c0_20 = arith.constant 0 : index
    %25 = vector.load %arg10[%c4, %c0_20] : memref<40x128xbf16, #tpu.memory_space<vmem>>, vector<24x128xbf16>
    %c4_21 = arith.constant 4 : index
    %c0_22 = arith.constant 0 : index
    %c0_23 = arith.constant 0 : index
    %26 = vector.load %arg3[%c4_21, %c0_22, %c0_23] : memref<17x128x128xbf16, #tpu.memory_space<vmem>>, vector<1x128x128xbf16>
    %27 = vector.shape_cast %26 : vector<1x128x128xbf16> to vector<128x128xbf16>
    %cst_24 = arith.constant dense<0.000000e+00> : vector<24x128xf32>
    %28 = tpu.matmul %25, %27, %cst_24 {dimension_numbers = #tpu.dot_dimension_numbers<[1], [0], [0], [1], [0, 0, 1, 1], [], []>} : vector<24x128xbf16>, vector<128x128xbf16>, vector<24x128xf32> -> vector<24x128xf32>
    %29 = arith.addf %24, %28 : vector<24x128xf32>
    %c5 = arith.constant 5 : index
    %c0_25 = arith.constant 0 : index
    %30 = vector.load %arg10[%c5, %c0_25] : memref<40x128xbf16, #tpu.memory_space<vmem>>, vector<24x128xbf16>
    %c5_26 = arith.constant 5 : index
    %c0_27 = arith.constant 0 : index
    %c0_28 = arith.constant 0 : index
    %31 = vector.load %arg3[%c5_26, %c0_27, %c0_28] : memref<17x128x128xbf16, #tpu.memory_space<vmem>>, vector<1x128x128xbf16>
    %32 = vector.shape_cast %31 : vector<1x128x128xbf16> to vector<128x128xbf16>
    %cst_29 = arith.constant dense<0.000000e+00> : vector<24x128xf32>
    %33 = tpu.matmul %30, %32, %cst_29 {dimension_numbers = #tpu.dot_dimension_numbers<[1], [0], [0], [1], [0, 0, 1, 1], [], []>} : vector<24x128xbf16>, vector<128x128xbf16>, vector<24x128xf32> -> vector<24x128xf32>
    %34 = arith.addf %29, %33 : vector<24x128xf32>
    %c6 = arith.constant 6 : index
    %c0_30 = arith.constant 0 : index
    %35 = vector.load %arg10[%c6, %c0_30] : memref<40x128xbf16, #tpu.memory_space<vmem>>, vector<24x128xbf16>
    %c6_31 = arith.constant 6 : index
    %c0_32 = arith.constant 0 : index
    %c0_33 = arith.constant 0 : index
    %36 = vector.load %arg3[%c6_31, %c0_32, %c0_33] : memref<17x128x128xbf16, #tpu.memory_space<vmem>>, vector<1x128x128xbf16>
    %37 = vector.shape_cast %36 : vector<1x128x128xbf16> to vector<128x128xbf16>
    %cst_34 = arith.constant dense<0.000000e+00> : vector<24x128xf32>
    %38 = tpu.matmul %35, %37, %cst_34 {dimension_numbers = #tpu.dot_dimension_numbers<[1], [0], [0], [1], [0, 0, 1, 1], [], []>} : vector<24x128xbf16>, vector<128x128xbf16>, vector<24x128xf32> -> vector<24x128xf32>
    %39 = arith.addf %34, %38 : vector<24x128xf32>
    %c7 = arith.constant 7 : index
    %c0_35 = arith.constant 0 : index
    %40 = vector.load %arg10[%c7, %c0_35] : memref<40x128xbf16, #tpu.memory_space<vmem>>, vector<24x128xbf16>
    %c7_36 = arith.constant 7 : index
    %c0_37 = arith.constant 0 : index
    %c0_38 = arith.constant 0 : index
    %41 = vector.load %arg3[%c7_36, %c0_37, %c0_38] : memref<17x128x128xbf16, #tpu.memory_space<vmem>>, vector<1x128x128xbf16>
    %42 = vector.shape_cast %41 : vector<1x128x128xbf16> to vector<128x128xbf16>
    %cst_39 = arith.constant dense<0.000000e+00> : vector<24x128xf32>
    %43 = tpu.matmul %40, %42, %cst_39 {dimension_numbers = #tpu.dot_dimension_numbers<[1], [0], [0], [1], [0, 0, 1, 1], [], []>} : vector<24x128xbf16>, vector<128x128xbf16>, vector<24x128xf32> -> vector<24x128xf32>
    %44 = arith.addf %39, %43 : vector<24x128xf32>
    %c8 = arith.constant 8 : index
    %c0_40 = arith.constant 0 : index
    %45 = vector.load %arg10[%c8, %c0_40] : memref<40x128xbf16, #tpu.memory_space<vmem>>, vector<24x128xbf16>
    %c8_41 = arith.constant 8 : index
    %c0_42 = arith.constant 0 : index
    %c0_43 = arith.constant 0 : index
    %46 = vector.load %arg3[%c8_41, %c0_42, %c0_43] : memref<17x128x128xbf16, #tpu.memory_space<vmem>>, vector<1x128x128xbf16>
    %47 = vector.shape_cast %46 : vector<1x128x128xbf16> to vector<128x128xbf16>
    %cst_44 = arith.constant dense<0.000000e+00> : vector<24x128xf32>
    %48 = tpu.matmul %45, %47, %cst_44 {dimension_numbers = #tpu.dot_dimension_numbers<[1], [0], [0], [1], [0, 0, 1, 1], [], []>} : vector<24x128xbf16>, vector<128x128xbf16>, vector<24x128xf32> -> vector<24x128xf32>
    %49 = arith.addf %44, %48 : vector<24x128xf32>
    %c9 = arith.constant 9 : index
    %c0_45 = arith.constant 0 : index
    %50 = vector.load %arg10[%c9, %c0_45] : memref<40x128xbf16, #tpu.memory_space<vmem>>, vector<24x128xbf16>
    %c9_46 = arith.constant 9 : index
    %c0_47 = arith.constant 0 : index
    %c0_48 = arith.constant 0 : index
    %51 = vector.load %arg3[%c9_46, %c0_47, %c0_48] : memref<17x128x128xbf16, #tpu.memory_space<vmem>>, vector<1x128x128xbf16>
    %52 = vector.shape_cast %51 : vector<1x128x128xbf16> to vector<128x128xbf16>
    %cst_49 = arith.constant dense<0.000000e+00> : vector<24x128xf32>
    %53 = tpu.matmul %50, %52, %cst_49 {dimension_numbers = #tpu.dot_dimension_numbers<[1], [0], [0], [1], [0, 0, 1, 1], [], []>} : vector<24x128xbf16>, vector<128x128xbf16>, vector<24x128xf32> -> vector<24x128xf32>
    %54 = arith.addf %49, %53 : vector<24x128xf32>
    %c10 = arith.constant 10 : index
    %c0_50 = arith.constant 0 : index
    %55 = vector.load %arg10[%c10, %c0_50] : memref<40x128xbf16, #tpu.memory_space<vmem>>, vector<24x128xbf16>
    %c10_51 = arith.constant 10 : index
    %c0_52 = arith.constant 0 : index
    %c0_53 = arith.constant 0 : index
    %56 = vector.load %arg3[%c10_51, %c0_52, %c0_53] : memref<17x128x128xbf16, #tpu.memory_space<vmem>>, vector<1x128x128xbf16>
    %57 = vector.shape_cast %56 : vector<1x128x128xbf16> to vector<128x128xbf16>
    %cst_54 = arith.constant dense<0.000000e+00> : vector<24x128xf32>
    %58 = tpu.matmul %55, %57, %cst_54 {dimension_numbers = #tpu.dot_dimension_numbers<[1], [0], [0], [1], [0, 0, 1, 1], [], []>} : vector<24x128xbf16>, vector<128x128xbf16>, vector<24x128xf32> -> vector<24x128xf32>
    %59 = arith.addf %54, %58 : vector<24x128xf32>
    %c11 = arith.constant 11 : index
    %c0_55 = arith.constant 0 : index
    %60 = vector.load %arg10[%c11, %c0_55] : memref<40x128xbf16, #tpu.memory_space<vmem>>, vector<24x128xbf16>
    %c11_56 = arith.constant 11 : index
    %c0_57 = arith.constant 0 : index
    %c0_58 = arith.constant 0 : index
    %61 = vector.load %arg3[%c11_56, %c0_57, %c0_58] : memref<17x128x128xbf16, #tpu.memory_space<vmem>>, vector<1x128x128xbf16>
    %62 = vector.shape_cast %61 : vector<1x128x128xbf16> to vector<128x128xbf16>
    %cst_59 = arith.constant dense<0.000000e+00> : vector<24x128xf32>
    %63 = tpu.matmul %60, %62, %cst_59 {dimension_numbers = #tpu.dot_dimension_numbers<[1], [0], [0], [1], [0, 0, 1, 1], [], []>} : vector<24x128xbf16>, vector<128x128xbf16>, vector<24x128xf32> -> vector<24x128xf32>
    %64 = arith.addf %59, %63 : vector<24x128xf32>
    %c12 = arith.constant 12 : index
    %c0_60 = arith.constant 0 : index
    %65 = vector.load %arg10[%c12, %c0_60] : memref<40x128xbf16, #tpu.memory_space<vmem>>, vector<24x128xbf16>
    %c12_61 = arith.constant 12 : index
    %c0_62 = arith.constant 0 : index
    %c0_63 = arith.constant 0 : index
    %66 = vector.load %arg3[%c12_61, %c0_62, %c0_63] : memref<17x128x128xbf16, #tpu.memory_space<vmem>>, vector<1x128x128xbf16>
    %67 = vector.shape_cast %66 : vector<1x128x128xbf16> to vector<128x128xbf16>
    %cst_64 = arith.constant dense<0.000000e+00> : vector<24x128xf32>
    %68 = tpu.matmul %65, %67, %cst_64 {dimension_numbers = #tpu.dot_dimension_numbers<[1], [0], [0], [1], [0, 0, 1, 1], [], []>} : vector<24x128xbf16>, vector<128x128xbf16>, vector<24x128xf32> -> vector<24x128xf32>
    %69 = arith.addf %64, %68 : vector<24x128xf32>
    %c13 = arith.constant 13 : index
    %c0_65 = arith.constant 0 : index
    %70 = vector.load %arg10[%c13, %c0_65] : memref<40x128xbf16, #tpu.memory_space<vmem>>, vector<24x128xbf16>
    %c13_66 = arith.constant 13 : index
    %c0_67 = arith.constant 0 : index
    %c0_68 = arith.constant 0 : index
    %71 = vector.load %arg3[%c13_66, %c0_67, %c0_68] : memref<17x128x128xbf16, #tpu.memory_space<vmem>>, vector<1x128x128xbf16>
    %72 = vector.shape_cast %71 : vector<1x128x128xbf16> to vector<128x128xbf16>
    %cst_69 = arith.constant dense<0.000000e+00> : vector<24x128xf32>
    %73 = tpu.matmul %70, %72, %cst_69 {dimension_numbers = #tpu.dot_dimension_numbers<[1], [0], [0], [1], [0, 0, 1, 1], [], []>} : vector<24x128xbf16>, vector<128x128xbf16>, vector<24x128xf32> -> vector<24x128xf32>
    %74 = arith.addf %69, %73 : vector<24x128xf32>
    %c14 = arith.constant 14 : index
    %c0_70 = arith.constant 0 : index
    %75 = vector.load %arg10[%c14, %c0_70] : memref<40x128xbf16, #tpu.memory_space<vmem>>, vector<24x128xbf16>
    %c14_71 = arith.constant 14 : index
    %c0_72 = arith.constant 0 : index
    %c0_73 = arith.constant 0 : index
    %76 = vector.load %arg3[%c14_71, %c0_72, %c0_73] : memref<17x128x128xbf16, #tpu.memory_space<vmem>>, vector<1x128x128xbf16>
    %77 = vector.shape_cast %76 : vector<1x128x128xbf16> to vector<128x128xbf16>
    %cst_74 = arith.constant dense<0.000000e+00> : vector<24x128xf32>
    %78 = tpu.matmul %75, %77, %cst_74 {dimension_numbers = #tpu.dot_dimension_numbers<[1], [0], [0], [1], [0, 0, 1, 1], [], []>} : vector<24x128xbf16>, vector<128x128xbf16>, vector<24x128xf32> -> vector<24x128xf32>
    %79 = arith.addf %74, %78 : vector<24x128xf32>
    %c15 = arith.constant 15 : index
    %c0_75 = arith.constant 0 : index
    %80 = vector.load %arg10[%c15, %c0_75] : memref<40x128xbf16, #tpu.memory_space<vmem>>, vector<24x128xbf16>
    %c15_76 = arith.constant 15 : index
    %c0_77 = arith.constant 0 : index
    %c0_78 = arith.constant 0 : index
    %81 = vector.load %arg3[%c15_76, %c0_77, %c0_78] : memref<17x128x128xbf16, #tpu.memory_space<vmem>>, vector<1x128x128xbf16>
    %82 = vector.shape_cast %81 : vector<1x128x128xbf16> to vector<128x128xbf16>
    %cst_79 = arith.constant dense<0.000000e+00> : vector<24x128xf32>
    %83 = tpu.matmul %80, %82, %cst_79 {dimension_numbers = #tpu.dot_dimension_numbers<[1], [0], [0], [1], [0, 0, 1, 1], [], []>} : vector<24x128xbf16>, vector<128x128xbf16>, vector<24x128xf32> -> vector<24x128xf32>
    %84 = arith.addf %79, %83 : vector<24x128xf32>
    %c16 = arith.constant 16 : index
    %c0_80 = arith.constant 0 : index
    %85 = vector.load %arg10[%c16, %c0_80] : memref<40x128xbf16, #tpu.memory_space<vmem>>, vector<24x128xbf16>
    %c16_81 = arith.constant 16 : index
    %c0_82 = arith.constant 0 : index
    %c0_83 = arith.constant 0 : index
    %86 = vector.load %arg3[%c16_81, %c0_82, %c0_83] : memref<17x128x128xbf16, #tpu.memory_space<vmem>>, vector<1x128x128xbf16>
    %87 = vector.shape_cast %86 : vector<1x128x128xbf16> to vector<128x128xbf16>
    %cst_84 = arith.constant dense<0.000000e+00> : vector<24x128xf32>
    %88 = tpu.matmul %85, %87, %cst_84 {dimension_numbers = #tpu.dot_dimension_numbers<[1], [0], [0], [1], [0, 0, 1, 1], [], []>} : vector<24x128xbf16>, vector<128x128xbf16>, vector<24x128xf32> -> vector<24x128xf32>
    %89 = arith.addf %84, %88 : vector<24x128xf32>
    %c0_85 = arith.constant 0 : index
    %c0_86 = arith.constant 0 : index
    %90 = vector.load %arg4[%c0_85, %c0_86] : memref<1x128xf32, #tpu.memory_space<vmem>>, vector<1x128xf32>
    %91 = vector.shape_cast %90 : vector<1x128xf32> to vector<128xf32>
    %92 = vector.shape_cast %91 : vector<128xf32> to vector<1x128xf32>
    %93 = vector.broadcast %92 : vector<1x128xf32> to vector<24x128xf32>
    %94 = arith.addf %89, %93 : vector<24x128xf32>
    %cst_87 = arith.constant 0.000000e+00 : f32
    %95 = vector.broadcast %cst_87 : f32 to vector<24x128xf32>
    %96 = arith.maximumf %94, %95 : vector<24x128xf32>
    %c8_i32_88 = arith.constant 8 : i32
    %97 = arith.subi %1, %c8_i32_88 : i32
    %98 = tpu.iota {dimensions = array<i32: 0>} : vector<24x1xi32>
    %99 = vector.broadcast %97 : i32 to vector<24x1xi32>
    %100 = arith.addi %99, %98 : vector<24x1xi32>
    %c0_i32_89 = arith.constant 0 : i32
    %101 = vector.broadcast %c0_i32_89 : i32 to vector<24x1xi32>
    %102 = arith.cmpi sge, %100, %101 : vector<24x1xi32>
    %c16_i32 = arith.constant 16 : i32
    %103 = vector.broadcast %c16_i32 : i32 to vector<24x1xi32>
    %104 = arith.cmpi slt, %100, %103 : vector<24x1xi32>
    %105 = arith.andi %102, %104 : vector<24x1xi1>
    %cst_90 = arith.constant 0.000000e+00 : f32
    %106 = vector.shape_cast %105 : vector<24x1xi1> to vector<24x1xi1>
    %107 = vector.broadcast %106 : vector<24x1xi1> to vector<24x128xi1>
    %108 = vector.broadcast %cst_90 : f32 to vector<24x128xf32>
    %109 = arith.select %107, %96, %108 : vector<24x128xi1>, vector<24x128xf32>
    %110 = arith.truncf %109 : vector<24x128xf32> to vector<24x128xbf16>
    %c0_91 = arith.constant 0 : index
    %c0_92 = arith.constant 0 : index
    %111 = vector.load %arg11[%c0_91, %c0_92] : memref<24x128xbf16, #tpu.memory_space<vmem>>, vector<24x128xbf16>
    tpu.vector_store %arg11[%c0_91, %c0_92], %110 {strides = array<i32>} : memref<24x128xbf16, #tpu.memory_space<vmem>>, vector<24x128xbf16>,
    %c0_93 = arith.constant 0 : index
    %c0_94 = arith.constant 0 : index
    %112 = vector.load %arg11[%c0_93, %c0_94] : memref<24x128xbf16, #tpu.memory_space<vmem>>, vector<8x128xbf16>
    %c0_95 = arith.constant 0 : index
    %c0_96 = arith.constant 0 : index
    %c0_97 = arith.constant 0 : index
    %113 = vector.load %arg5[%c0_95, %c0_96, %c0_97] : memref<17x128x128xbf16, #tpu.memory_space<vmem>>, vector<1x128x128xbf16>
    %114 = vector.shape_cast %113 : vector<1x128x128xbf16> to vector<128x128xbf16>
    %cst_98 = arith.constant dense<0.000000e+00> : vector<8x128xf32>
    %115 = tpu.matmul %112, %114, %cst_98 {dimension_numbers = #tpu.dot_dimension_numbers<[1], [0], [0], [1], [0, 0, 1, 1], [], []>} : vector<8x128xbf16>, vector<128x128xbf16>, vector<8x128xf32> -> vector<8x128xf32>
    %c1_99 = arith.constant 1 : index
    %c0_100 = arith.constant 0 : index
    %116 = vector.load %arg11[%c1_99, %c0_100] : memref<24x128xbf16, #tpu.memory_space<vmem>>, vector<8x128xbf16>
    %c1_101 = arith.constant 1 : index
    %c0_102 = arith.constant 0 : index
    %c0_103 = arith.constant 0 : index
    %117 = vector.load %arg5[%c1_101, %c0_102, %c0_103] : memref<17x128x128xbf16, #tpu.memory_space<vmem>>, vector<1x128x128xbf16>
    %118 = vector.shape_cast %117 : vector<1x128x128xbf16> to vector<128x128xbf16>
    %cst_104 = arith.constant dense<0.000000e+00> : vector<8x128xf32>
    %119 = tpu.matmul %116, %118, %cst_104 {dimension_numbers = #tpu.dot_dimension_numbers<[1], [0], [0], [1], [0, 0, 1, 1], [], []>} : vector<8x128xbf16>, vector<128x128xbf16>, vector<8x128xf32> -> vector<8x128xf32>
    %120 = arith.addf %115, %119 : vector<8x128xf32>
    %c2_105 = arith.constant 2 : index
    %c0_106 = arith.constant 0 : index
    %121 = vector.load %arg11[%c2_105, %c0_106] : memref<24x128xbf16, #tpu.memory_space<vmem>>, vector<8x128xbf16>
    %c2_107 = arith.constant 2 : index
    %c0_108 = arith.constant 0 : index
    %c0_109 = arith.constant 0 : index
    %122 = vector.load %arg5[%c2_107, %c0_108, %c0_109] : memref<17x128x128xbf16, #tpu.memory_space<vmem>>, vector<1x128x128xbf16>
    %123 = vector.shape_cast %122 : vector<1x128x128xbf16> to vector<128x128xbf16>
    %cst_110 = arith.constant dense<0.000000e+00> : vector<8x128xf32>
    %124 = tpu.matmul %121, %123, %cst_110 {dimension_numbers = #tpu.dot_dimension_numbers<[1], [0], [0], [1], [0, 0, 1, 1], [], []>} : vector<8x128xbf16>, vector<128x128xbf16>, vector<8x128xf32> -> vector<8x128xf32>
    %125 = arith.addf %120, %124 : vector<8x128xf32>
    %c3_111 = arith.constant 3 : index
    %c0_112 = arith.constant 0 : index
    %126 = vector.load %arg11[%c3_111, %c0_112] : memref<24x128xbf16, #tpu.memory_space<vmem>>, vector<8x128xbf16>
    %c3_113 = arith.constant 3 : index
    %c0_114 = arith.constant 0 : index
    %c0_115 = arith.constant 0 : index
    %127 = vector.load %arg5[%c3_113, %c0_114, %c0_115] : memref<17x128x128xbf16, #tpu.memory_space<vmem>>, vector<1x128x128xbf16>
    %128 = vector.shape_cast %127 : vector<1x128x128xbf16> to vector<128x128xbf16>
    %cst_116 = arith.constant dense<0.000000e+00> : vector<8x128xf32>
    %129 = tpu.matmul %126, %128, %cst_116 {dimension_numbers = #tpu.dot_dimension_numbers<[1], [0], [0], [1], [0, 0, 1, 1], [], []>} : vector<8x128xbf16>, vector<128x128xbf16>, vector<8x128xf32> -> vector<8x128xf32>
    %130 = arith.addf %125, %129 : vector<8x128xf32>
    %c4_117 = arith.constant 4 : index
    %c0_118 = arith.constant 0 : index
    %131 = vector.load %arg11[%c4_117, %c0_118] : memref<24x128xbf16, #tpu.memory_space<vmem>>, vector<8x128xbf16>
    %c4_119 = arith.constant 4 : index
    %c0_120 = arith.constant 0 : index
    %c0_121 = arith.constant 0 : index
    %132 = vector.load %arg5[%c4_119, %c0_120, %c0_121] : memref<17x128x128xbf16, #tpu.memory_space<vmem>>, vector<1x128x128xbf16>
    %133 = vector.shape_cast %132 : vector<1x128x128xbf16> to vector<128x128xbf16>
    %cst_122 = arith.constant dense<0.000000e+00> : vector<8x128xf32>
    %134 = tpu.matmul %131, %133, %cst_122 {dimension_numbers = #tpu.dot_dimension_numbers<[1], [0], [0], [1], [0, 0, 1, 1], [], []>} : vector<8x128xbf16>, vector<128x128xbf16>, vector<8x128xf32> -> vector<8x128xf32>
    %135 = arith.addf %130, %134 : vector<8x128xf32>
    %c5_123 = arith.constant 5 : index
    %c0_124 = arith.constant 0 : index
    %136 = vector.load %arg11[%c5_123, %c0_124] : memref<24x128xbf16, #tpu.memory_space<vmem>>, vector<8x128xbf16>
    %c5_125 = arith.constant 5 : index
    %c0_126 = arith.constant 0 : index
    %c0_127 = arith.constant 0 : index
    %137 = vector.load %arg5[%c5_125, %c0_126, %c0_127] : memref<17x128x128xbf16, #tpu.memory_space<vmem>>, vector<1x128x128xbf16>
    %138 = vector.shape_cast %137 : vector<1x128x128xbf16> to vector<128x128xbf16>
    %cst_128 = arith.constant dense<0.000000e+00> : vector<8x128xf32>
    %139 = tpu.matmul %136, %138, %cst_128 {dimension_numbers = #tpu.dot_dimension_numbers<[1], [0], [0], [1], [0, 0, 1, 1], [], []>} : vector<8x128xbf16>, vector<128x128xbf16>, vector<8x128xf32> -> vector<8x128xf32>
    %140 = arith.addf %135, %139 : vector<8x128xf32>
    %c6_129 = arith.constant 6 : index
    %c0_130 = arith.constant 0 : index
    %141 = vector.load %arg11[%c6_129, %c0_130] : memref<24x128xbf16, #tpu.memory_space<vmem>>, vector<8x128xbf16>
    %c6_131 = arith.constant 6 : index
    %c0_132 = arith.constant 0 : index
    %c0_133 = arith.constant 0 : index
    %142 = vector.load %arg5[%c6_131, %c0_132, %c0_133] : memref<17x128x128xbf16, #tpu.memory_space<vmem>>, vector<1x128x128xbf16>
    %143 = vector.shape_cast %142 : vector<1x128x128xbf16> to vector<128x128xbf16>
    %cst_134 = arith.constant dense<0.000000e+00> : vector<8x128xf32>
    %144 = tpu.matmul %141, %143, %cst_134 {dimension_numbers = #tpu.dot_dimension_numbers<[1], [0], [0], [1], [0, 0, 1, 1], [], []>} : vector<8x128xbf16>, vector<128x128xbf16>, vector<8x128xf32> -> vector<8x128xf32>
    %145 = arith.addf %140, %144 : vector<8x128xf32>
    %c7_135 = arith.constant 7 : index
    %c0_136 = arith.constant 0 : index
    %146 = vector.load %arg11[%c7_135, %c0_136] : memref<24x128xbf16, #tpu.memory_space<vmem>>, vector<8x128xbf16>
    %c7_137 = arith.constant 7 : index
    %c0_138 = arith.constant 0 : index
    %c0_139 = arith.constant 0 : index
    %147 = vector.load %arg5[%c7_137, %c0_138, %c0_139] : memref<17x128x128xbf16, #tpu.memory_space<vmem>>, vector<1x128x128xbf16>
    %148 = vector.shape_cast %147 : vector<1x128x128xbf16> to vector<128x128xbf16>
    %cst_140 = arith.constant dense<0.000000e+00> : vector<8x128xf32>
    %149 = tpu.matmul %146, %148, %cst_140 {dimension_numbers = #tpu.dot_dimension_numbers<[1], [0], [0], [1], [0, 0, 1, 1], [], []>} : vector<8x128xbf16>, vector<128x128xbf16>, vector<8x128xf32> -> vector<8x128xf32>
    %150 = arith.addf %145, %149 : vector<8x128xf32>
    %c8_141 = arith.constant 8 : index
    %c0_142 = arith.constant 0 : index
    %151 = vector.load %arg11[%c8_141, %c0_142] : memref<24x128xbf16, #tpu.memory_space<vmem>>, vector<8x128xbf16>
    %c8_143 = arith.constant 8 : index
    %c0_144 = arith.constant 0 : index
    %c0_145 = arith.constant 0 : index
    %152 = vector.load %arg5[%c8_143, %c0_144, %c0_145] : memref<17x128x128xbf16, #tpu.memory_space<vmem>>, vector<1x128x128xbf16>
    %153 = vector.shape_cast %152 : vector<1x128x128xbf16> to vector<128x128xbf16>
    %cst_146 = arith.constant dense<0.000000e+00> : vector<8x128xf32>
    %154 = tpu.matmul %151, %153, %cst_146 {dimension_numbers = #tpu.dot_dimension_numbers<[1], [0], [0], [1], [0, 0, 1, 1], [], []>} : vector<8x128xbf16>, vector<128x128xbf16>, vector<8x128xf32> -> vector<8x128xf32>
    %155 = arith.addf %150, %154 : vector<8x128xf32>
    %c9_147 = arith.constant 9 : index
    %c0_148 = arith.constant 0 : index
    %156 = vector.load %arg11[%c9_147, %c0_148] : memref<24x128xbf16, #tpu.memory_space<vmem>>, vector<8x128xbf16>
    %c9_149 = arith.constant 9 : index
    %c0_150 = arith.constant 0 : index
    %c0_151 = arith.constant 0 : index
    %157 = vector.load %arg5[%c9_149, %c0_150, %c0_151] : memref<17x128x128xbf16, #tpu.memory_space<vmem>>, vector<1x128x128xbf16>
    %158 = vector.shape_cast %157 : vector<1x128x128xbf16> to vector<128x128xbf16>
    %cst_152 = arith.constant dense<0.000000e+00> : vector<8x128xf32>
    %159 = tpu.matmul %156, %158, %cst_152 {dimension_numbers = #tpu.dot_dimension_numbers<[1], [0], [0], [1], [0, 0, 1, 1], [], []>} : vector<8x128xbf16>, vector<128x128xbf16>, vector<8x128xf32> -> vector<8x128xf32>
    %160 = arith.addf %155, %159 : vector<8x128xf32>
    %c10_153 = arith.constant 10 : index
    %c0_154 = arith.constant 0 : index
    %161 = vector.load %arg11[%c10_153, %c0_154] : memref<24x128xbf16, #tpu.memory_space<vmem>>, vector<8x128xbf16>
    %c10_155 = arith.constant 10 : index
    %c0_156 = arith.constant 0 : index
    %c0_157 = arith.constant 0 : index
    %162 = vector.load %arg5[%c10_155, %c0_156, %c0_157] : memref<17x128x128xbf16, #tpu.memory_space<vmem>>, vector<1x128x128xbf16>
    %163 = vector.shape_cast %162 : vector<1x128x128xbf16> to vector<128x128xbf16>
    %cst_158 = arith.constant dense<0.000000e+00> : vector<8x128xf32>
    %164 = tpu.matmul %161, %163, %cst_158 {dimension_numbers = #tpu.dot_dimension_numbers<[1], [0], [0], [1], [0, 0, 1, 1], [], []>} : vector<8x128xbf16>, vector<128x128xbf16>, vector<8x128xf32> -> vector<8x128xf32>
    %165 = arith.addf %160, %164 : vector<8x128xf32>
    %c11_159 = arith.constant 11 : index
    %c0_160 = arith.constant 0 : index
    %166 = vector.load %arg11[%c11_159, %c0_160] : memref<24x128xbf16, #tpu.memory_space<vmem>>, vector<8x128xbf16>
    %c11_161 = arith.constant 11 : index
    %c0_162 = arith.constant 0 : index
    %c0_163 = arith.constant 0 : index
    %167 = vector.load %arg5[%c11_161, %c0_162, %c0_163] : memref<17x128x128xbf16, #tpu.memory_space<vmem>>, vector<1x128x128xbf16>
    %168 = vector.shape_cast %167 : vector<1x128x128xbf16> to vector<128x128xbf16>
    %cst_164 = arith.constant dense<0.000000e+00> : vector<8x128xf32>
    %169 = tpu.matmul %166, %168, %cst_164 {dimension_numbers = #tpu.dot_dimension_numbers<[1], [0], [0], [1], [0, 0, 1, 1], [], []>} : vector<8x128xbf16>, vector<128x128xbf16>, vector<8x128xf32> -> vector<8x128xf32>
    %170 = arith.addf %165, %169 : vector<8x128xf32>
    %c12_165 = arith.constant 12 : index
    %c0_166 = arith.constant 0 : index
    %171 = vector.load %arg11[%c12_165, %c0_166] : memref<24x128xbf16, #tpu.memory_space<vmem>>, vector<8x128xbf16>
    %c12_167 = arith.constant 12 : index
    %c0_168 = arith.constant 0 : index
    %c0_169 = arith.constant 0 : index
    %172 = vector.load %arg5[%c12_167, %c0_168, %c0_169] : memref<17x128x128xbf16, #tpu.memory_space<vmem>>, vector<1x128x128xbf16>
    %173 = vector.shape_cast %172 : vector<1x128x128xbf16> to vector<128x128xbf16>
    %cst_170 = arith.constant dense<0.000000e+00> : vector<8x128xf32>
    %174 = tpu.matmul %171, %173, %cst_170 {dimension_numbers = #tpu.dot_dimension_numbers<[1], [0], [0], [1], [0, 0, 1, 1], [], []>} : vector<8x128xbf16>, vector<128x128xbf16>, vector<8x128xf32> -> vector<8x128xf32>
    %175 = arith.addf %170, %174 : vector<8x128xf32>
    %c13_171 = arith.constant 13 : index
    %c0_172 = arith.constant 0 : index
    %176 = vector.load %arg11[%c13_171, %c0_172] : memref<24x128xbf16, #tpu.memory_space<vmem>>, vector<8x128xbf16>
    %c13_173 = arith.constant 13 : index
    %c0_174 = arith.constant 0 : index
    %c0_175 = arith.constant 0 : index
    %177 = vector.load %arg5[%c13_173, %c0_174, %c0_175] : memref<17x128x128xbf16, #tpu.memory_space<vmem>>, vector<1x128x128xbf16>
    %178 = vector.shape_cast %177 : vector<1x128x128xbf16> to vector<128x128xbf16>
    %cst_176 = arith.constant dense<0.000000e+00> : vector<8x128xf32>
    %179 = tpu.matmul %176, %178, %cst_176 {dimension_numbers = #tpu.dot_dimension_numbers<[1], [0], [0], [1], [0, 0, 1, 1], [], []>} : vector<8x128xbf16>, vector<128x128xbf16>, vector<8x128xf32> -> vector<8x128xf32>
    %180 = arith.addf %175, %179 : vector<8x128xf32>
    %c14_177 = arith.constant 14 : index
    %c0_178 = arith.constant 0 : index
    %181 = vector.load %arg11[%c14_177, %c0_178] : memref<24x128xbf16, #tpu.memory_space<vmem>>, vector<8x128xbf16>
    %c14_179 = arith.constant 14 : index
    %c0_180 = arith.constant 0 : index
    %c0_181 = arith.constant 0 : index
    %182 = vector.load %arg5[%c14_179, %c0_180, %c0_181] : memref<17x128x128xbf16, #tpu.memory_space<vmem>>, vector<1x128x128xbf16>
    %183 = vector.shape_cast %182 : vector<1x128x128xbf16> to vector<128x128xbf16>
    %cst_182 = arith.constant dense<0.000000e+00> : vector<8x128xf32>
    %184 = tpu.matmul %181, %183, %cst_182 {dimension_numbers = #tpu.dot_dimension_numbers<[1], [0], [0], [1], [0, 0, 1, 1], [], []>} : vector<8x128xbf16>, vector<128x128xbf16>, vector<8x128xf32> -> vector<8x128xf32>
    %185 = arith.addf %180, %184 : vector<8x128xf32>
    %c15_183 = arith.constant 15 : index
    %c0_184 = arith.constant 0 : index
    %186 = vector.load %arg11[%c15_183, %c0_184] : memref<24x128xbf16, #tpu.memory_space<vmem>>, vector<8x128xbf16>
    %c15_185 = arith.constant 15 : index
    %c0_186 = arith.constant 0 : index
    %c0_187 = arith.constant 0 : index
    %187 = vector.load %arg5[%c15_185, %c0_186, %c0_187] : memref<17x128x128xbf16, #tpu.memory_space<vmem>>, vector<1x128x128xbf16>
    %188 = vector.shape_cast %187 : vector<1x128x128xbf16> to vector<128x128xbf16>
    %cst_188 = arith.constant dense<0.000000e+00> : vector<8x128xf32>
    %189 = tpu.matmul %186, %188, %cst_188 {dimension_numbers = #tpu.dot_dimension_numbers<[1], [0], [0], [1], [0, 0, 1, 1], [], []>} : vector<8x128xbf16>, vector<128x128xbf16>, vector<8x128xf32> -> vector<8x128xf32>
    %190 = arith.addf %185, %189 : vector<8x128xf32>
    %c16_189 = arith.constant 16 : index
    %c0_190 = arith.constant 0 : index
    %191 = vector.load %arg11[%c16_189, %c0_190] : memref<24x128xbf16, #tpu.memory_space<vmem>>, vector<8x128xbf16>
    %c16_191 = arith.constant 16 : index
    %c0_192 = arith.constant 0 : index
    %c0_193 = arith.constant 0 : index
    %192 = vector.load %arg5[%c16_191, %c0_192, %c0_193] : memref<17x128x128xbf16, #tpu.memory_space<vmem>>, vector<1x128x128xbf16>
    %193 = vector.shape_cast %192 : vector<1x128x128xbf16> to vector<128x128xbf16>
    %cst_194 = arith.constant dense<0.000000e+00> : vector<8x128xf32>
    %194 = tpu.matmul %191, %193, %cst_194 {dimension_numbers = #tpu.dot_dimension_numbers<[1], [0], [0], [1], [0, 0, 1, 1], [], []>} : vector<8x128xbf16>, vector<128x128xbf16>, vector<8x128xf32> -> vector<8x128xf32>
    %195 = arith.addf %190, %194 : vector<8x128xf32>
    %c0_195 = arith.constant 0 : index
    %c0_196 = arith.constant 0 : index
    %196 = vector.load %arg6[%c0_195, %c0_196] : memref<1x128xf32, #tpu.memory_space<vmem>>, vector<1x128xf32>
    %197 = vector.shape_cast %196 : vector<1x128xf32> to vector<128xf32>
    %198 = vector.shape_cast %197 : vector<128xf32> to vector<1x128xf32>
    %199 = vector.broadcast %198 : vector<1x128xf32> to vector<8x128xf32>
    %200 = arith.addf %195, %199 : vector<8x128xf32>
    %c16_197 = arith.constant 16 : index
    %c0_198 = arith.constant 0 : index
    %201 = vector.load %arg10[%c16_197, %c0_198] : memref<40x128xbf16, #tpu.memory_space<vmem>>, vector<8x128xbf16>
    %c0_199 = arith.constant 0 : index
    %c0_200 = arith.constant 0 : index
    %202 = vector.load %arg7[%c0_199, %c0_200] : memref<128x128xbf16, #tpu.memory_space<vmem>>, vector<128x128xbf16>
    %cst_201 = arith.constant dense<0.000000e+00> : vector<8x128xf32>
    %203 = tpu.matmul %201, %202, %cst_201 {dimension_numbers = #tpu.dot_dimension_numbers<[1], [0], [0], [1], [0, 0, 1, 1], [], []>} : vector<8x128xbf16>, vector<128x128xbf16>, vector<8x128xf32> -> vector<8x128xf32>
    %c0_202 = arith.constant 0 : index
    %c0_203 = arith.constant 0 : index
    %204 = vector.load %arg8[%c0_202, %c0_203] : memref<1x128xf32, #tpu.memory_space<vmem>>, vector<1x128xf32>
    %205 = vector.shape_cast %204 : vector<1x128xf32> to vector<128xf32>
    %206 = vector.shape_cast %205 : vector<128xf32> to vector<1x128xf32>
    %207 = vector.broadcast %206 : vector<1x128xf32> to vector<8x128xf32>
    %208 = arith.addf %203, %207 : vector<8x128xf32>
    %209 = arith.addf %200, %208 : vector<8x128xf32>
    %cst_204 = arith.constant 0.000000e+00 : f32
    %210 = vector.broadcast %cst_204 : f32 to vector<8x128xf32>
    %211 = arith.maximumf %209, %210 : vector<8x128xf32>
    %c0_205 = arith.constant 0 : index
    %c0_206 = arith.constant 0 : index
    %c0_207 = arith.constant 0 : index
    %212 = vector.load %arg9[%c0_205, %c0_206, %c0_207] : memref<1x8x128xf32, #tpu.memory_space<vmem>>, vector<1x8x128xf32>
    %213 = vector.shape_cast %212 : vector<1x8x128xf32> to vector<8x128xf32>
    %214 = vector.shape_cast %211 : vector<8x128xf32> to vector<1x8x128xf32>
    tpu.vector_store %arg9[%c0_205, %c0_206, %c0_207], %214 {strides = array<i32>} : memref<1x8x128xf32, #tpu.memory_space<vmem>>, vector<1x8x128xf32>,
    return
  }
  func.func @transform_1(%arg0: i32, %arg1: i32) -> (i32, i32, i32) {
    %c0_i32 = arith.constant 0 : i32
    %c0_i32_0 = arith.constant 0 : i32
    %c0_i32_1 = arith.constant 0 : i32
    %c0_i32_2 = arith.constant 0 : i32
    return %c0_i32, %c0_i32_0, %c0_i32_1 : i32, i32, i32
  }
  func.func @transform_2(%arg0: i32, %arg1: i32) -> (i32, i32) {
    %c0_i32 = arith.constant 0 : i32
    %c0_i32_0 = arith.constant 0 : i32
    %c0_i32_1 = arith.constant 0 : i32
    return %c0_i32, %c0_i32_0 : i32, i32
  }
  func.func @transform_3(%arg0: i32, %arg1: i32) -> (i32, i32, i32) {
    %c0_i32 = arith.constant 0 : i32
    %c0_i32_0 = arith.constant 0 : i32
    %c0_i32_1 = arith.constant 0 : i32
    %c0_i32_2 = arith.constant 0 : i32
    return %c0_i32, %c0_i32_0, %c0_i32_1 : i32, i32, i32
  }
  func.func @transform_4(%arg0: i32, %arg1: i32) -> (i32, i32) {
    %c0_i32 = arith.constant 0 : i32
    %c0_i32_0 = arith.constant 0 : i32
    %c0_i32_1 = arith.constant 0 : i32
    return %c0_i32, %c0_i32_0 : i32, i32
  }
  func.func @transform_5(%arg0: i32, %arg1: i32) -> (i32, i32) {
    %c0_i32 = arith.constant 0 : i32
    %c0_i32_0 = arith.constant 0 : i32
    %c0_i32_1 = arith.constant 0 : i32
    return %c0_i32, %c0_i32_0 : i32, i32
  }
  func.func @transform_6(%arg0: i32, %arg1: i32) -> (i32, i32) {
    %c0_i32 = arith.constant 0 : i32
    %c0_i32_0 = arith.constant 0 : i32
    %c0_i32_1 = arith.constant 0 : i32
    return %c0_i32, %c0_i32_0 : i32, i32
  }
  func.func @transform_7(%arg0: i32, %arg1: i32) -> (i32, i32, i32) {
    %c0_i32 = arith.constant 0 : i32
    %c0_i32_0 = arith.constant 0 : i32
    return %arg0, %arg1, %c0_i32 : i32, i32, i32
  }
}

</mosaic_0001>

<llo_original>
// kernel: residual_unit_forward.1
$region0: #{residual_unit_forward.1}
  #allocation0 [shape = 'u32[]', space=smem, size = 0x4, offset = 0x4, fixed_abs, tag = 'smem constant byte address 0x4 - core index']
  #allocation1 [shape = 'u32[72,128]{1,0:T(1,128)}', space=vmem, size = 0x9000, scoped, tag = 'internal scratch']
  #allocation2 [shape = 'bf16[40,128]{1,0:T(8,128)(2,1)}', space=vmem, size = 0x2800, scoped, tag = 'scratch operand']
  #allocation3 [shape = 'bf16[24,128]{1,0:T(8,128)(2,1)}', space=vmem, size = 0x1800, scoped, tag = 'scratch operand']
  #allocation4 [shape = 's32[1]{0}', space=sflag, size = 0x4, scoped, tag = 'scratch operand']
  #allocation5 [shape = 's32[]', space=sflag, size = 0x4, offset = 0, fixed_abs, tag = 'sflag constant byte address 0x0 - dummy sync flag']
  %s0 = inlined_call_operand.vmem [shape: bf16[2,48,128], index: 0, kind: input, shape index: {}]
  %s1 = inlined_call_operand.vmem [shape: bf16[17,128,128], index: 1, kind: input, shape index: {}]
  %s2 = inlined_call_operand.vmem [shape: f32[1,128], index: 2, kind: input, shape index: {}]
  %s3 = inlined_call_operand.vmem [shape: bf16[17,128,128], index: 3, kind: input, shape index: {}]
  %s4 = inlined_call_operand.vmem [shape: f32[1,128], index: 4, kind: input, shape index: {}]
  %s5 = inlined_call_operand.vmem [shape: bf16[128,128], index: 5, kind: input, shape index: {}]
  %s6 = inlined_call_operand.vmem [shape: f32[1,128], index: 6, kind: input, shape index: {}]
  %s7 = inlined_call_operand.vmem [shape: f32[2,16,128], index: 7, kind: output, shape index: {}]
  %s8 = sld [smem:[#allocation0]]
  $region79: #{residual_unit_forward.1} parent=0
    _
  %s10 = ssub.s32 1, %s8
  %s11 = scalar_select 0, %s10, %s8
  loop: start=0, step=1, limit=6
  $region2: #{residual_unit_forward.1} parent=0 // loop_pre_header
    _
  $region3: #{residual_unit_forward.1} parent=0 // loop_header
    %s13 = sphi 0, %s17
    %p14 = scmp.ge.s32.totalorder %s13, 6
    %s20 = sphi 0, %s32
    %s21 = sphi 0, %s28
    %s22 = sphi 0, %s20
    %s23 = sphi 0, %s21
    %s24 = sphi 0, %s22
    %s25 = sphi 0, %s23
    %s33 = sphi 0, %s33
    %s35 = sphi 0, %s33
    %s36 = sphi 0, %s35
    %s50 = sphi 0, %s36
    %s54 = sphi 0, %s54
    %s56 = sphi 0, %s54
    %s57 = sphi 0, %s56
    %s71 = sphi 0, %s57
    %s75 = sphi 0, %s75
    %s77 = sphi 0, %s75
    %s78 = sphi 0, %s77
    %s92 = sphi 0, %s78
    %s96 = sphi 0, %s96
    %s98 = sphi 0, %s96
    %s99 = sphi 0, %s98
    %s113 = sphi 0, %s99
    %s117 = sphi 0, %s117
    %s119 = sphi 0, %s117
    %s120 = sphi 0, %s119
    %s134 = sphi 0, %s120
    %s138 = sphi 0, %s138
    %s140 = sphi 0, %s138
    %s141 = sphi 0, %s140
    %s155 = sphi 0, %s141
    %s163 = sphi 0, %s165
    %s166 = sphi 0, %s163
    %s167 = sphi 0, %s166
    %s183 = sphi 0, %s167
  $region4: #{residual_unit_forward.1} parent=0 // loop_header_branch
    %16 = sbr.rel (%p14) target = $region8
  $region5: #{residual_unit_forward.1} parent=0 // loop_body
    %s18 = ssub.s32 %s13, 1
    %s19 = ssub.s32 %s13, 2
    %s26 = sadd.s32 1, %s21
    %p27 = scmp.ge.s32.totalorder %s26, 2
    %s28 = scalar_select %p27, 0, %s26
    %s29 = sadd.s32 1, %s20
    %s30 = scalar_select %p27, %s29, %s20
    %p31 = scmp.ge.s32.totalorder %s30, 2
    %s32 = scalar_select %p31, 0, %s30
    %s34 = sadd.s32 %s33, 1
    %p37 = scmp.eq.s32.totalorder %s13, 3
    %p38 = scmp.ne.s32.totalorder %s33, %s35
    %p39 = scmp.eq.s32.totalorder %s13, 0
    %p40 = por %p38, %p39
    %p41 = scmp.ne.s32.totalorder %s33, %s35
    %p42 = scmp.eq.s32.totalorder %s18, 3
    %p43 = por %p41, %p42
    %p44 = scmp.ne.s32.totalorder %s35, %s36
    %p45 = scmp.eq.s32.totalorder %s18, 0
    %p46 = por %p44, %p45
    %p47 = scmp.ne.s32.totalorder %s35, %s36
    %p48 = scmp.eq.s32.totalorder %s19, 3
    %p49 = por %p47, %p48
    %p51 = scmp.ne.s32.totalorder %s36, %s50
    %p52 = scmp.eq.s32.totalorder %s19, 0
    %p53 = por %p51, %p52
    %s55 = sadd.s32 %s54, 1
    %p58 = scmp.eq.s32.totalorder %s13, 3
    %p59 = scmp.ne.s32.totalorder %s54, %s56
    %p60 = scmp.eq.s32.totalorder %s13, 0
    %p61 = por %p59, %p60
    %p62 = scmp.ne.s32.totalorder %s54, %s56
    %p63 = scmp.eq.s32.totalorder %s18, 3
    %p64 = por %p62, %p63
    %p65 = scmp.ne.s32.totalorder %s56, %s57
    %p66 = scmp.eq.s32.totalorder %s18, 0
    %p67 = por %p65, %p66
    %p68 = scmp.ne.s32.totalorder %s56, %s57
    %p69 = scmp.eq.s32.totalorder %s19, 3
    %p70 = por %p68, %p69
    %p72 = scmp.ne.s32.totalorder %s57, %s71
    %p73 = scmp.eq.s32.totalorder %s19, 0
    %p74 = por %p72, %p73
    %s76 = sadd.s32 %s75, 1
    %p79 = scmp.eq.s32.totalorder %s13, 3
    %p80 = scmp.ne.s32.totalorder %s75, %s77
    %p81 = scmp.eq.s32.totalorder %s13, 0
    %p82 = por %p80, %p81
    %p83 = scmp.ne.s32.totalorder %s75, %s77
    %p84 = scmp.eq.s32.totalorder %s18, 3
    %p85 = por %p83, %p84
    %p86 = scmp.ne.s32.totalorder %s77, %s78
    %p87 = scmp.eq.s32.totalorder %s18, 0
    %p88 = por %p86, %p87
    %p89 = scmp.ne.s32.totalorder %s77, %s78
    %p90 = scmp.eq.s32.totalorder %s19, 3
    %p91 = por %p89, %p90
    %p93 = scmp.ne.s32.totalorder %s78, %s92
    %p94 = scmp.eq.s32.totalorder %s19, 0
    %p95 = por %p93, %p94
    %s97 = sadd.s32 %s96, 1
    %p100 = scmp.eq.s32.totalorder %s13, 3
    %p101 = scmp.ne.s32.totalorder %s96, %s98
    %p102 = scmp.eq.s32.totalorder %s13, 0
    %p103 = por %p101, %p102
    %p104 = scmp.ne.s32.totalorder %s96, %s98
    %p105 = scmp.eq.s32.totalorder %s18, 3
    %p106 = por %p104, %p105
    %p107 = scmp.ne.s32.totalorder %s98, %s99
    %p108 = scmp.eq.s32.totalorder %s18, 0
    %p109 = por %p107, %p108
    %p110 = scmp.ne.s32.totalorder %s98, %s99
    %p111 = scmp.eq.s32.totalorder %s19, 3
    %p112 = por %p110, %p111
    %p114 = scmp.ne.s32.totalorder %s99, %s113
    %p115 = scmp.eq.s32.totalorder %s19, 0
    %p116 = por %p114, %p115
    %s118 = sadd.s32 %s117, 1
    %p121 = scmp.eq.s32.totalorder %s13, 3
    %p122 = scmp.ne.s32.totalorder %s117, %s119
    %p123 = scmp.eq.s32.totalorder %s13, 0
    %p124 = por %p122, %p123
    %p125 = scmp.ne.s32.totalorder %s117, %s119
    %p126 = scmp.eq.s32.totalorder %s18, 3
    %p127 = por %p125, %p126
    %p128 = scmp.ne.s32.totalorder %s119, %s120
    %p129 = scmp.eq.s32.totalorder %s18, 0
    %p130 = por %p128, %p129
    %p131 = scmp.ne.s32.totalorder %s119, %s120
    %p132 = scmp.eq.s32.totalorder %s19, 3
    %p133 = por %p131, %p132
    %p135 = scmp.ne.s32.totalorder %s120, %s134
    %p136 = scmp.eq.s32.totalorder %s19, 0
    %p137 = por %p135, %p136
    %s139 = sadd.s32 %s138, 1
    %p142 = scmp.eq.s32.totalorder %s13, 3
    %p143 = scmp.ne.s32.totalorder %s138, %s140
    %p144 = scmp.eq.s32.totalorder %s13, 0
    %p145 = por %p143, %p144
    %p146 = scmp.ne.s32.totalorder %s138, %s140
    %p147 = scmp.eq.s32.totalorder %s18, 3
    %p148 = por %p146, %p147
    %p149 = scmp.ne.s32.totalorder %s140, %s141
    %p150 = scmp.eq.s32.totalorder %s18, 0
    %p151 = por %p149, %p150
    %p152 = scmp.ne.s32.totalorder %s140, %s141
    %p153 = scmp.eq.s32.totalorder %s19, 3
    %p154 = por %p152, %p153
    %p156 = scmp.ne.s32.totalorder %s141, %s155
    %p157 = scmp.eq.s32.totalorder %s19, 0
    %p158 = por %p156, %p157
    %s159 = ssub.s32 %s20, %s32
    %s160 = ssub.s32 %s21, %s28
    %s161 = sor.u32 %s159, %s160
    %p162 = scmp.eq.s32.totalorder %s161, 0
    %s164 = sadd.s32 %s163, 1
    %s165 = scalar_select %p162, %s163, %s164
    %p168 = pneg %p162
    %p169 = scmp.eq.s32.totalorder %s13, 3
    %p170 = por %p168, %p169
    %p171 = scmp.ne.s32.totalorder %s163, %s166
    %p172 = scmp.eq.s32.totalorder %s13, 0
    %p173 = por %p171, %p172
    %p174 = scmp.ne.s32.totalorder %s163, %s166
    %p175 = scmp.eq.s32.totalorder %s18, 3
    %p176 = por %p174, %p175
    %p177 = scmp.ne.s32.totalorder %s166, %s167
    %p178 = scmp.eq.s32.totalorder %s18, 0
    %p179 = por %p177, %p178
    %p180 = scmp.ne.s32.totalorder %s166, %s167
    %p181 = scmp.eq.s32.totalorder %s19, 3
    %p182 = por %p180, %p181
    %p184 = scmp.ne.s32.totalorder %s167, %s183
    %p185 = scmp.eq.s32.totalorder %s19, 0
    %p186 = por %p184, %p185
    %p187 = scmp.le.s32.totalorder 1, %s13
    %p188 = scmp.lt.s32.totalorder %s13, 5
    %p189 = pnand %p187, %p188
    %p190 = pneg %p189
    // Predicated region
    $region9: #{residual_unit_forward.1} parent=5 // pred_check
      _
    $region10: #{residual_unit_forward.1} parent=5 // pred_check_branch
      %192 = sbr.rel (%p189) target = $region12
    $region11: #{residual_unit_forward.1} parent=5 // pred_region
      %s193 = ssub.s32 %s13, 1
      // Predicated region
      $region13: #{residual_unit_forward.1} parent=11 // pred_check
        %p194 = pneg %p46
      $region14: #{residual_unit_forward.1} parent=11 // pred_check_branch
        %196 = sbr.rel (%p194) target = $region16
      $region15: #{residual_unit_forward.1} parent=11 // pred_region
        _
      $region16: #{residual_unit_forward.1} parent=11 // pred_fallthru
        _
      // Predicated region
      $region17: #{residual_unit_forward.1} parent=11 // pred_check
        %p197 = pneg %p67
      $region18: #{residual_unit_forward.1} parent=11 // pred_check_branch
        %199 = sbr.rel (%p197) target = $region20
      $region19: #{residual_unit_forward.1} parent=11 // pred_region
        _
      $region20: #{residual_unit_forward.1} parent=11 // pred_fallthru
        _
      // Predicated region
      $region21: #{residual_unit_forward.1} parent=11 // pred_check
        %p200 = pneg %p88
      $region22: #{residual_unit_forward.1} parent=11 // pred_check_branch
        %202 = sbr.rel (%p200) target = $region24
      $region23: #{residual_unit_forward.1} parent=11 // pred_region
        _
      $region24: #{residual_unit_forward.1} parent=11 // pred_fallthru
        _
      // Predicated region
      $region25: #{residual_unit_forward.1} parent=11 // pred_check
        %p203 = pneg %p109
      $region26: #{residual_unit_forward.1} parent=11 // pred_check_branch
        %205 = sbr.rel (%p203) target = $region28
      $region27: #{residual_unit_forward.1} parent=11 // pred_region
        _
      $region28: #{residual_unit_forward.1} parent=11 // pred_fallthru
        _
      // Predicated region
      $region29: #{residual_unit_forward.1} parent=11 // pred_check
        %p206 = pneg %p130
      $region30: #{residual_unit_forward.1} parent=11 // pred_check_branch
        %208 = sbr.rel (%p206) target = $region32
      $region31: #{residual_unit_forward.1} parent=11 // pred_region
        _
      $region32: #{residual_unit_forward.1} parent=11 // pred_fallthru
        _
      // Predicated region
      $region33: #{residual_unit_forward.1} parent=11 // pred_check
        %p209 = pneg %p151
      $region34: #{residual_unit_forward.1} parent=11 // pred_check_branch
        %211 = sbr.rel (%p209) target = $region36
      $region35: #{residual_unit_forward.1} parent=11 // pred_region
        _
      $region36: #{residual_unit_forward.1} parent=11 // pred_fallthru
        _
    $region12: #{residual_unit_forward.1} parent=5 // pred_fallthru
      _
    %p212 = scmp.lt.s32.totalorder %s13, 4
    // Predicated region
    $region37: #{residual_unit_forward.1} parent=5 // pred_check
      %p213 = pneg %p212
    $region38: #{residual_unit_forward.1} parent=5 // pred_check_branch
      %215 = sbr.rel (%p213) target = $region40
    $region39: #{residual_unit_forward.1} parent=5 // pred_region
      _
    $region40: #{residual_unit_forward.1} parent=5 // pred_fallthru
      _
    %p216 = scmp.le.s32.totalorder 1, %s13
    %p217 = scmp.lt.s32.totalorder %s13, 5
    %p218 = pnand %p216, %p217
    %p219 = pneg %p218
    // Predicated region
    $region41: #{residual_unit_forward.1} parent=5 // pred_check
      _
    $region42: #{residual_unit_forward.1} parent=5 // pred_check_branch
      %221 = sbr.rel (%p218) target = $region44
    $region43: #{residual_unit_forward.1} parent=5 // pred_region
      %s222 = ssub.s32 %s13, 1
      %p223 = pneg %p46
      %p224 = pneg %p43
      %p225 = pneg %p67
      %p226 = pneg %p64
      %p227 = pneg %p88
      %p228 = pneg %p85
      %p229 = pneg %p109
      %p230 = pneg %p106
      %p231 = pneg %p130
      %p232 = pneg %p127
      %p233 = pneg %p151
      %p234 = pneg %p148
      %p235 = pneg %p179
      %p236 = pneg %p176
      %p237 = scmp.lt.s32.totalorder %s22, 1
      %s238 = scalar_select %p237, %s22, 1
      %p239 = scmp.lt.s32.totalorder %s23, 1
      %s240 = scalar_select %p239, %s23, 1
      %s241 = smul.addr %s238, 2
      %s242 = sadd.s32 %s240, %s241
      %s243 = smul.addr %s242, 8
      %s244 = scalar_lea.vmem %s7, %s243
      %p245 = scmp.lt.s32.totalorder %s22, 1
      %s246 = scalar_select %p245, %s22, 1
      %p247 = scmp.lt.s32.totalorder %s23, 1
      %s248 = scalar_select %p247, %s23, 1
      %s249 = smul.addr %s246, 2
      %s250 = sadd.s32 %s248, %s249
      %s251 = smul.addr %s250, 8
      %s252 = scalar_lea.vmem %s7, %s251
      %s253 = smul.u32 %s23, 8
      %s254 = sshra.s32 %s253, 3
      %s255 = sand.u32 %s253, 7
      %s256 = smul.u32 %s22, 6
      %s257 = sadd.s32 %s254, %s256
      %s258 = smul.addr %s257, 4
      %s259 = scalar_lea.vmem %s0, %s258
      // Predicated region
      $region45: #{residual_unit_forward.1} parent=43 // pred_check
        _
      $region46: #{residual_unit_forward.1} parent=43 // pred_check_branch
        %261 = sbr.rel (0) target = $region48
      $region47: #{residual_unit_forward.1} parent=43 // pred_region
        %s262 = scalar_lea.vmem %s259, 16
        %s263 = scalar_lea.vmem [#allocation2], 16
        loop: start=0, step=1, limit=1
        $region49: #{residual_unit_forward.1} parent=47 // loop_pre_header
          _
        $region50: #{residual_unit_forward.1} parent=47 // loop_header
          %s265 = sphi 0, %s269
          %p266 = scmp.ge.s32.totalorder %s265, 1
          %s270 = sphi %s259, %s259
          %s271 = sphi [#allocation2], [#allocation2]
        $region51: #{residual_unit_forward.1} parent=47 // loop_header_branch
          %268 = sbr.rel (%p266) target = $region55
        $region52: #{residual_unit_forward.1} parent=47 // loop_body
          %v272 = vld [vmem:[%s270] sm:$0xff]
          %273 = vst [vmem:[%s271] sm:$0xff] %v272
          %v274 = vld [vmem:[%s270 + $0x8] sm:$0xff]
          %275 = vst [vmem:[%s271 + $0x8] sm:$0xff] %v274
        $region53: #{residual_unit_forward.1} parent=47 // loop_footer
          %s269 = sadd.s32 1, %s265
        $region54: #{residual_unit_forward.1} parent=47 // loop_footer_branch
          %264 = sbr.rel target = $region50
        $region55: #{residual_unit_forward.1} parent=47 // loop_exit
          _
        %s277 = ssub.s32 16, 1
        loop: start=0, step=1, limit=1
        $region56: #{residual_unit_forward.1} parent=47 // loop_pre_header
          _
        $region57: #{residual_unit_forward.1} parent=47 // loop_header
          %s279 = sphi 0, %s283
          %p280 = scmp.ge.s32.totalorder %s279, 1
          %s284 = sphi %s262, %s262
          %s285 = sphi %s263, %s263
        $region58: #{residual_unit_forward.1} parent=47 // loop_header_branch
          %282 = sbr.rel (%p280) target = $region62
        $region59: #{residual_unit_forward.1} parent=47 // loop_body
          %v286 = vld [vmem:[%s284] sm:%s277]
          %287 = vst [vmem:[%s285] sm:%s277] %v286
        $region60: #{residual_unit_forward.1} parent=47 // loop_footer
          %s283 = sadd.s32 1, %s279
        $region61: #{residual_unit_forward.1} parent=47 // loop_footer_branch
          %278 = sbr.rel target = $region57
        $region62: #{residual_unit_forward.1} parent=47 // loop_exit
          _
      $region48: #{residual_unit_forward.1} parent=43 // pred_fallthru
        _
      // Predicated region
      $region63: #{residual_unit_forward.1} parent=43 // pred_check
        _
      $region64: #{residual_unit_forward.1} parent=43 // pred_check_branch
        %290 = sbr.rel (0) target = $region66
      $region65: #{residual_unit_forward.1} parent=43 // pred_region
        %291 = vsyncadd [#allocation4], 320
      $region66: #{residual_unit_forward.1} parent=43 // pred_fallthru
        _
      %s292 = smul.u32 4, 5
      %s293 = smul.u32 %s292, 1
      %s294 = sshll.u32 %s293, 4
      %295 = dma.done [#allocation4], %s294
      %v296 = vld [vmem:[#allocation2] sm:$0xf]
      %v297 = vld [vmem:[#allocation2 + $0x4] sm:$0xf]
      %v298 = vld [vmem:[#allocation2 + $0x8] sm:$0xf]
      %v299 = vld [vmem:[%s1] sm:$0xf]
      %v300 = vld [vmem:[%s1 + $0x4] sm:$0xf]
      %v301 = vld [vmem:[%s1 + $0x8] sm:$0xf]
      %v302 = vld [vmem:[%s1 + $0xc] sm:$0xf]
      %v303 = vld [vmem:[%s1 + $0x10] sm:$0xf]
      %v304 = vld [vmem:[%s1 + $0x14] sm:$0xf]
      %v305 = vld [vmem:[%s1 + $0x18] sm:$0xf]
      %v306 = vld [vmem:[%s1 + $0x1c] sm:$0xf]
      %v307 = vld [vmem:[%s1 + $0x20] sm:$0xf]
      %v308 = vld [vmem:[%s1 + $0x24] sm:$0xf]
      %v309 = vld [vmem:[%s1 + $0x28] sm:$0xf]
      %v310 = vld [vmem:[%s1 + $0x2c] sm:$0xf]
      %v311 = vld [vmem:[%s1 + $0x30] sm:$0xf]
      %v312 = vld [vmem:[%s1 + $0x34] sm:$0xf]
      %v313 = vld [vmem:[%s1 + $0x38] sm:$0xf]
      %v314 = vld [vmem:[%s1 + $0x3c] sm:$0xf]
      %v315 = vld [vmem:[#allocation2 + $0xc] sm:$0x1]
      %s316 = scalar_lea.vmem %s1, 64
      %v317 = vld [vmem:[%s316] sm:$0xf]
      %v318 = vld [vmem:[%s316 + $0x4] sm:$0xf]
      %v319 = vld [vmem:[%s316 + $0x8] sm:$0xf]
      %v320 = vld [vmem:[%s316 + $0xc] sm:$0xf]
      %v321 = vld [vmem:[%s316 + $0x10] sm:$0xf]
      %v322 = vld [vmem:[%s316 + $0x14] sm:$0xf]
      %v323 = vld [vmem:[%s316 + $0x18] sm:$0xf]
      %v324 = vld [vmem:[%s316 + $0x1c] sm:$0xf]
      %v325 = vld [vmem:[%s316 + $0x20] sm:$0xf]
      %v326 = vld [vmem:[%s316 + $0x24] sm:$0xf]
      %v327 = vld [vmem:[%s316 + $0x28] sm:$0xf]
      %v328 = vld [vmem:[%s316 + $0x2c] sm:$0xf]
      %v329 = vld [vmem:[%s316 + $0x30] sm:$0xf]
      %v330 = vld [vmem:[%s316 + $0x34] sm:$0xf]
      %v331 = vld [vmem:[%s316 + $0x38] sm:$0xf]
      %v332 = vld [vmem:[%s316 + $0x3c] sm:$0xf]
      %v337 = vunpack.c.l.b16 %v296
      %v338 = vunpack.c.l.b16 %v297
      %v339 = vunpack.c.l.b16 %v298
      %v340 = vunpack.c.l.b16 %v315
      %v341 = vpack.c.b16 %v338, %v337
      %v342 = vpack.c.b16 %v340, %v339
      %vm343 = vsmask.f32 7424
      %v345 = vshrl.u32 %v341, 16
      %v347 = vshll.u32 %v341, 16
      %v349 = vrot.slane %v347, 1
      %v350 = vor.u32 %v345, %v349
      %v352 = vshll.u32 %v342, 16
      %v354 = vrot.slane %v352, 1
      %v355 = vsel %vm343, %v350, %v354
      %v356 = vshrl.u32 %v342, 16
      %v358 = vor.u32 %v356, %v354
      %v377 = vunpack.c.l.b16 %v317
      %v378 = vunpack.c.l.b16 %v318
      %v379 = vunpack.c.l.b16 %v319
      %v380 = vunpack.c.l.b16 %v320
      %v381 = vunpack.c.l.b16 %v321
      %v382 = vunpack.c.l.b16 %v322
      %v383 = vunpack.c.l.b16 %v323
      %v384 = vunpack.c.l.b16 %v324
      %v385 = vunpack.c.l.b16 %v325
      %v386 = vunpack.c.l.b16 %v326
      %v387 = vunpack.c.l.b16 %v327
      %v388 = vunpack.c.l.b16 %v328
      %v389 = vunpack.c.l.b16 %v329
      %v390 = vunpack.c.l.b16 %v330
      %v391 = vunpack.c.l.b16 %v331
      %v392 = vunpack.c.l.b16 %v332
      %v393 = vpack.c.b16 %v378, %v377
      %v394 = vpack.c.b16 %v380, %v379
      %v395 = vpack.c.b16 %v382, %v381
      %v396 = vpack.c.b16 %v384, %v383
      %v397 = vpack.c.b16 %v386, %v385
      %v398 = vpack.c.b16 %v388, %v387
      %v399 = vpack.c.b16 %v390, %v389
      %v400 = vpack.c.b16 %v392, %v391
      %409 = vmatpush.bf16.msra.mxu0 %v400
      %410 = vmatpush.bf16.msra.mxu0 %v399
      %411 = vmatpush.bf16.msra.mxu0 %v398
      %412 = vmatpush.bf16.msra.mxu0 %v397
      %413 = vmatpush.bf16.msra.mxu0 %v396
      %414 = vmatpush.bf16.msra.mxu0 %v395
      %415 = vmatpush.bf16.msra.mxu0 %v394
      %416 = vmatpush.bf16.msra.mxu0 %v393
      %417 = vmatmul.bf16.gmra.mxu0 %v355
      %v418 = vpop.f32.mrf.mxu0
      %v419 = vadd.f32 0.0, %v418
      %v420 = vpop.f32.mrf.mxu0
      %v421 = vadd.f32 0.0, %v420
      %422 = vmatmul.bf16.gmra.mxu0 %v358
      %v423 = vpop.f32.mrf.mxu0
      %v424 = vadd.f32 0.0, %v423
      %v425 = vpop.f32.mrf.mxu0
      %426 = vdwg.mxu0
      %v427 = vpack.c.b16 %v339, %v339
      %v446 = vunpack.c.l.b16 %v299
      %v447 = vunpack.c.l.b16 %v300
      %v448 = vunpack.c.l.b16 %v301
      %v449 = vunpack.c.l.b16 %v302
      %v450 = vunpack.c.l.b16 %v303
      %v451 = vunpack.c.l.b16 %v304
      %v452 = vunpack.c.l.b16 %v305
      %v453 = vunpack.c.l.b16 %v306
      %v454 = vunpack.c.l.b16 %v307
      %v455 = vunpack.c.l.b16 %v308
      %v456 = vunpack.c.l.b16 %v309
      %v457 = vunpack.c.l.b16 %v310
      %v458 = vunpack.c.l.b16 %v311
      %v459 = vunpack.c.l.b16 %v312
      %v460 = vunpack.c.l.b16 %v313
      %v461 = vunpack.c.l.b16 %v314
      %v462 = vpack.c.b16 %v447, %v446
      %v463 = vpack.c.b16 %v449, %v448
      %v464 = vpack.c.b16 %v451, %v450
      %v465 = vpack.c.b16 %v453, %v452
      %v466 = vpack.c.b16 %v455, %v454
      %v467 = vpack.c.b16 %v457, %v456
      %v468 = vpack.c.b16 %v459, %v458
      %v469 = vpack.c.b16 %v461, %v460
      %478 = vmatpush.bf16.msra.mxu0 %v469
      %479 = vmatpush.bf16.msra.mxu0 %v468
      %480 = vmatpush.bf16.msra.mxu0 %v467
      %481 = vmatpush.bf16.msra.mxu0 %v466
      %482 = vmatpush.bf16.msra.mxu0 %v465
      %483 = vmatpush.bf16.msra.mxu0 %v464
      %484 = vmatpush.bf16.msra.mxu0 %v463
      %485 = vmatpush.bf16.msra.mxu0 %v462
      %486 = vmatmul.bf16.gmra.mxu0 %v341
      %v487 = vpop.f32.mrf.mxu0
      %v488 = vadd.f32 %v419, %v487
      %v489 = vpop.f32.mrf.mxu0
      %v490 = vadd.f32 %v421, %v489
      %491 = vmatmul.bf16.gmra.mxu0 %v427
      %v492 = vpop.f32.mrf.mxu0
      %v493 = vadd.f32 %v424, %v492
      %v494 = vpop.f32.mrf.mxu0
      %495 = vdwg.mxu0
      %v496 = vld [vmem:[#allocation2] sm:$0xe]
      %s497 = scalar_lea.vmem %s1, 128
      %v498 = vld [vmem:[%s497] sm:$0xf]
      %v499 = vld [vmem:[%s497 + $0x4] sm:$0xf]
      %v500 = vld [vmem:[%s497 + $0x8] sm:$0xf]
      %v501 = vld [vmem:[%s497 + $0xc] sm:$0xf]
      %v502 = vld [vmem:[%s497 + $0x10] sm:$0xf]
      %v503 = vld [vmem:[%s497 + $0x14] sm:$0xf]
      %v504 = vld [vmem:[%s497 + $0x18] sm:$0xf]
      %v505 = vld [vmem:[%s497 + $0x1c] sm:$0xf]
      %v506 = vld [vmem:[%s497 + $0x20] sm:$0xf]
      %v507 = vld [vmem:[%s497 + $0x24] sm:$0xf]
      %v508 = vld [vmem:[%s497 + $0x28] sm:$0xf]
      %v509 = vld [vmem:[%s497 + $0x2c] sm:$0xf]
      %v510 = vld [vmem:[%s497 + $0x30] sm:$0xf]
      %v511 = vld [vmem:[%s497 + $0x34] sm:$0xf]
      %v512 = vld [vmem:[%s497 + $0x38] sm:$0xf]
      %v513 = vld [vmem:[%s497 + $0x3c] sm:$0xf]
      %v515 = vunpack.c.l.b16 %v496
      %v516 = vpack.c.b16 %v338, %v515
      %vm517 = vcmask 1046528
      %v518 = vrot.slane %v516, 1
      %v519 = vrot.slane %v342, 1
      %v520 = vsel %vm517, %v518, %v519
      %v539 = vunpack.c.l.b16 %v498
      %v540 = vunpack.c.l.b16 %v499
      %v541 = vunpack.c.l.b16 %v500
      %v542 = vunpack.c.l.b16 %v501
      %v543 = vunpack.c.l.b16 %v502
      %v544 = vunpack.c.l.b16 %v503
      %v545 = vunpack.c.l.b16 %v504
      %v546 = vunpack.c.l.b16 %v505
      %v547 = vunpack.c.l.b16 %v506
      %v548 = vunpack.c.l.b16 %v507
      %v549 = vunpack.c.l.b16 %v508
      %v550 = vunpack.c.l.b16 %v509
      %v551 = vunpack.c.l.b16 %v510
      %v552 = vunpack.c.l.b16 %v511
      %v553 = vunpack.c.l.b16 %v512
      %v554 = vunpack.c.l.b16 %v513
      %v555 = vpack.c.b16 %v540, %v539
      %v556 = vpack.c.b16 %v542, %v541
      %v557 = vpack.c.b16 %v544, %v543
      %v558 = vpack.c.b16 %v546, %v545
      %v559 = vpack.c.b16 %v548, %v547
      %v560 = vpack.c.b16 %v550, %v549
      %v561 = vpack.c.b16 %v552, %v551
      %v562 = vpack.c.b16 %v554, %v553
      %571 = vmatpush.bf16.msra.mxu0 %v562
      %572 = vmatpush.bf16.msra.mxu0 %v561
      %573 = vmatpush.bf16.msra.mxu0 %v560
      %574 = vmatpush.bf16.msra.mxu0 %v559
      %575 = vmatpush.bf16.msra.mxu0 %v558
      %576 = vmatpush.bf16.msra.mxu0 %v557
      %577 = vmatpush.bf16.msra.mxu0 %v556
      %578 = vmatpush.bf16.msra.mxu0 %v555
      %579 = vmatmul.bf16.gmra.mxu0 %v520
      %v580 = vpop.f32.mrf.mxu0
      %v581 = vadd.f32 0.0, %v580
      %v582 = vpop.f32.mrf.mxu0
      %v583 = vadd.f32 0.0, %v582
      %584 = vmatmul.bf16.gmra.mxu0 %v519
      %v585 = vpop.f32.mrf.mxu0
      %v586 = vadd.f32 0.0, %v585
      %v587 = vpop.f32.mrf.mxu0
      %588 = vdwg.mxu0
      %v589 = vadd.f32 %v488, %v581
      %v590 = vadd.f32 %v490, %v583
      %v591 = vadd.f32 %v493, %v586
      %v592 = vld [vmem:[#allocation2 + $0xc] sm:$0x3]
      %s593 = scalar_lea.vmem %s1, 192
      %v594 = vld [vmem:[%s593] sm:$0xf]
      %v595 = vld [vmem:[%s593 + $0x4] sm:$0xf]
      %v596 = vld [vmem:[%s593 + $0x8] sm:$0xf]
      %v597 = vld [vmem:[%s593 + $0xc] sm:$0xf]
      %v598 = vld [vmem:[%s593 + $0x10] sm:$0xf]
      %v599 = vld [vmem:[%s593 + $0x14] sm:$0xf]
      %v600 = vld [vmem:[%s593 + $0x18] sm:$0xf]
      %v601 = vld [vmem:[%s593 + $0x1c] sm:$0xf]
      %v602 = vld [vmem:[%s593 + $0x20] sm:$0xf]
      %v603 = vld [vmem:[%s593 + $0x24] sm:$0xf]
      %v604 = vld [vmem:[%s593 + $0x28] sm:$0xf]
      %v605 = vld [vmem:[%s593 + $0x2c] sm:$0xf]
      %v606 = vld [vmem:[%s593 + $0x30] sm:$0xf]
      %v607 = vld [vmem:[%s593 + $0x34] sm:$0xf]
      %v608 = vld [vmem:[%s593 + $0x38] sm:$0xf]
      %v609 = vld [vmem:[%s593 + $0x3c] sm:$0xf]
      %v611 = vunpack.c.l.b16 %v592
      %v612 = vpack.c.b16 %v611, %v339
      %vm613 = vsmask.f32 6400
      %v615 = vshrl.u32 %v516, 16
      %v617 = vrot.slane %v615, 1
      %v618 = vshll.u32 %v516, 16
      %v620 = vrot.slane %v618, 2
      %v621 = vor.u32 %v617, %v620
      %v623 = vshrl.u32 %v612, 16
      %v625 = vrot.slane %v623, 1
      %v626 = vshll.u32 %v612, 16
      %v628 = vrot.slane %v626, 2
      %v629 = vor.u32 %v625, %v628
      %v630 = vsel %vm613, %v621, %v629
      %v649 = vunpack.c.l.b16 %v594
      %v650 = vunpack.c.l.b16 %v595
      %v651 = vunpack.c.l.b16 %v596
      %v652 = vunpack.c.l.b16 %v597
      %v653 = vunpack.c.l.b16 %v598
      %v654 = vunpack.c.l.b16 %v599
      %v655 = vunpack.c.l.b16 %v600
      %v656 = vunpack.c.l.b16 %v601
      %v657 = vunpack.c.l.b16 %v602
      %v658 = vunpack.c.l.b16 %v603
      %v659 = vunpack.c.l.b16 %v604
      %v660 = vunpack.c.l.b16 %v605
      %v661 = vunpack.c.l.b16 %v606
      %v662 = vunpack.c.l.b16 %v607
      %v663 = vunpack.c.l.b16 %v608
      %v664 = vunpack.c.l.b16 %v609
      %v665 = vpack.c.b16 %v650, %v649
      %v666 = vpack.c.b16 %v652, %v651
      %v667 = vpack.c.b16 %v654, %v653
      %v668 = vpack.c.b16 %v656, %v655
      %v669 = vpack.c.b16 %v658, %v657
      %v670 = vpack.c.b16 %v660, %v659
      %v671 = vpack.c.b16 %v662, %v661
      %v672 = vpack.c.b16 %v664, %v663
      %681 = vmatpush.bf16.msra.mxu0 %v672
      %682 = vmatpush.bf16.msra.mxu0 %v671
      %683 = vmatpush.bf16.msra.mxu0 %v670
      %684 = vmatpush.bf16.msra.mxu0 %v669
      %685 = vmatpush.bf16.msra.mxu0 %v668
      %686 = vmatpush.bf16.msra.mxu0 %v667
      %687 = vmatpush.bf16.msra.mxu0 %v666
      %688 = vmatpush.bf16.msra.mxu0 %v665
      %689 = vmatmul.bf16.gmra.mxu0 %v630
      %v690 = vpop.f32.mrf.mxu0
      %v691 = vadd.f32 0.0, %v690
      %v692 = vpop.f32.mrf.mxu0
      %v693 = vadd.f32 0.0, %v692
      %694 = vmatmul.bf16.gmra.mxu0 %v629
      %v695 = vpop.f32.mrf.mxu0
      %v696 = vadd.f32 0.0, %v695
      %v697 = vpop.f32.mrf.mxu0
      %698 = vdwg.mxu0
      %v699 = vadd.f32 %v589, %v691
      %v700 = vadd.f32 %v590, %v693
      %v701 = vadd.f32 %v591, %v696
      %v702 = vld [vmem:[#allocation2] sm:$0xc]
      %s703 = scalar_lea.vmem %s1, 256
      %v704 = vld [vmem:[%s703] sm:$0xf]
      %v705 = vld [vmem:[%s703 + $0x4] sm:$0xf]
      %v706 = vld [vmem:[%s703 + $0x8] sm:$0xf]
      %v707 = vld [vmem:[%s703 + $0xc] sm:$0xf]
      %v708 = vld [vmem:[%s703 + $0x10] sm:$0xf]
      %v709 = vld [vmem:[%s703 + $0x14] sm:$0xf]
      %v710 = vld [vmem:[%s703 + $0x18] sm:$0xf]
      %v711 = vld [vmem:[%s703 + $0x1c] sm:$0xf]
      %v712 = vld [vmem:[%s703 + $0x20] sm:$0xf]
      %v713 = vld [vmem:[%s703 + $0x24] sm:$0xf]
      %v714 = vld [vmem:[%s703 + $0x28] sm:$0xf]
      %v715 = vld [vmem:[%s703 + $0x2c] sm:$0xf]
      %v716 = vld [vmem:[%s703 + $0x30] sm:$0xf]
      %v717 = vld [vmem:[%s703 + $0x34] sm:$0xf]
      %v718 = vld [vmem:[%s703 + $0x38] sm:$0xf]
      %v719 = vld [vmem:[%s703 + $0x3c] sm:$0xf]
      %v721 = vunpack.c.l.b16 %v702
      %v722 = vpack.c.b16 %v338, %v721
      %vm723 = vcmask 1045504
      %v724 = vrot.slane %v722, 2
      %v725 = vrot.slane %v612, 2
      %v726 = vsel %vm723, %v724, %v725
      %v745 = vunpack.c.l.b16 %v704
      %v746 = vunpack.c.l.b16 %v705
      %v747 = vunpack.c.l.b16 %v706
      %v748 = vunpack.c.l.b16 %v707
      %v749 = vunpack.c.l.b16 %v708
      %v750 = vunpack.c.l.b16 %v709
      %v751 = vunpack.c.l.b16 %v710
      %v752 = vunpack.c.l.b16 %v711
      %v753 = vunpack.c.l.b16 %v712
      %v754 = vunpack.c.l.b16 %v713
      %v755 = vunpack.c.l.b16 %v714
      %v756 = vunpack.c.l.b16 %v715
      %v757 = vunpack.c.l.b16 %v716
      %v758 = vunpack.c.l.b16 %v717
      %v759 = vunpack.c.l.b16 %v718
      %v760 = vunpack.c.l.b16 %v719
      %v761 = vpack.c.b16 %v746, %v745
      %v762 = vpack.c.b16 %v748, %v747
      %v763 = vpack.c.b16 %v750, %v749
      %v764 = vpack.c.b16 %v752, %v751
      %v765 = vpack.c.b16 %v754, %v753
      %v766 = vpack.c.b16 %v756, %v755
      %v767 = vpack.c.b16 %v758, %v757
      %v768 = vpack.c.b16 %v760, %v759
      %777 = vmatpush.bf16.msra.mxu0 %v768
      %778 = vmatpush.bf16.msra.mxu0 %v767
      %779 = vmatpush.bf16.msra.mxu0 %v766
      %780 = vmatpush.bf16.msra.mxu0 %v765
      %781 = vmatpush.bf16.msra.mxu0 %v764
      %782 = vmatpush.bf16.msra.mxu0 %v763
      %783 = vmatpush.bf16.msra.mxu0 %v762
      %784 = vmatpush.bf16.msra.mxu0 %v761
      %785 = vmatmul.bf16.gmra.mxu0 %v726
      %v786 = vpop.f32.mrf.mxu0
      %v787 = vadd.f32 0.0, %v786
      %v788 = vpop.f32.mrf.mxu0
      %v789 = vadd.f32 0.0, %v788
      %790 = vmatmul.bf16.gmra.mxu0 %v725
      %v791 = vpop.f32.mrf.mxu0
      %v792 = vadd.f32 0.0, %v791
      %v793 = vpop.f32.mrf.mxu0
      %794 = vdwg.mxu0
      %v795 = vadd.f32 %v699, %v787
      %v796 = vadd.f32 %v700, %v789
      %v797 = vadd.f32 %v701, %v792
      %v798 = vld [vmem:[#allocation2 + $0xc] sm:$0x7]
      %s799 = scalar_lea.vmem %s1, 320
      %v800 = vld [vmem:[%s799] sm:$0xf]
      %v801 = vld [vmem:[%s799 + $0x4] sm:$0xf]
      %v802 = vld [vmem:[%s799 + $0x8] sm:$0xf]
      %v803 = vld [vmem:[%s799 + $0xc] sm:$0xf]
      %v804 = vld [vmem:[%s799 + $0x10] sm:$0xf]
      %v805 = vld [vmem:[%s799 + $0x14] sm:$0xf]
      %v806 = vld [vmem:[%s799 + $0x18] sm:$0xf]
      %v807 = vld [vmem:[%s799 + $0x1c] sm:$0xf]
      %v808 = vld [vmem:[%s799 + $0x20] sm:$0xf]
      %v809 = vld [vmem:[%s799 + $0x24] sm:$0xf]
      %v810 = vld [vmem:[%s799 + $0x28] sm:$0xf]
      %v811 = vld [vmem:[%s799 + $0x2c] sm:$0xf]
      %v812 = vld [vmem:[%s799 + $0x30] sm:$0xf]
      %v813 = vld [vmem:[%s799 + $0x34] sm:$0xf]
      %v814 = vld [vmem:[%s799 + $0x38] sm:$0xf]
      %v815 = vld [vmem:[%s799 + $0x3c] sm:$0xf]
      %v817 = vunpack.c.l.b16 %v798
      %v818 = vpack.c.b16 %v817, %v339
      %vm819 = vsmask.f32 5376
      %v821 = vshrl.u32 %v722, 16
      %v823 = vrot.slane %v821, 2
      %v824 = vshll.u32 %v722, 16
      %v826 = vrot.slane %v824, 3
      %v827 = vor.u32 %v823, %v826
      %v829 = vshrl.u32 %v818, 16
      %v831 = vrot.slane %v829, 2
      %v832 = vshll.u32 %v818, 16
      %v834 = vrot.slane %v832, 3
      %v835 = vor.u32 %v831, %v834
      %v836 = vsel %vm819, %v827, %v835
      %v855 = vunpack.c.l.b16 %v800
      %v856 = vunpack.c.l.b16 %v801
      %v857 = vunpack.c.l.b16 %v802
      %v858 = vunpack.c.l.b16 %v803
      %v859 = vunpack.c.l.b16 %v804
      %v860 = vunpack.c.l.b16 %v805
      %v861 = vunpack.c.l.b16 %v806
      %v862 = vunpack.c.l.b16 %v807
      %v863 = vunpack.c.l.b16 %v808
      %v864 = vunpack.c.l.b16 %v809
      %v865 = vunpack.c.l.b16 %v810
      %v866 = vunpack.c.l.b16 %v811
      %v867 = vunpack.c.l.b16 %v812
      %v868 = vunpack.c.l.b16 %v813
      %v869 = vunpack.c.l.b16 %v814
      %v870 = vunpack.c.l.b16 %v815
      %v871 = vpack.c.b16 %v856, %v855
      %v872 = vpack.c.b16 %v858, %v857
      %v873 = vpack.c.b16 %v860, %v859
      %v874 = vpack.c.b16 %v862, %v861
      %v875 = vpack.c.b16 %v864, %v863
      %v876 = vpack.c.b16 %v866, %v865
      %v877 = vpack.c.b16 %v868, %v867
      %v878 = vpack.c.b16 %v870, %v869
      %887 = vmatpush.bf16.msra.mxu0 %v878
      %888 = vmatpush.bf16.msra.mxu0 %v877
      %889 = vmatpush.bf16.msra.mxu0 %v876
      %890 = vmatpush.bf16.msra.mxu0 %v875
      %891 = vmatpush.bf16.msra.mxu0 %v874
      %892 = vmatpush.bf16.msra.mxu0 %v873
      %893 = vmatpush.bf16.msra.mxu0 %v872
      %894 = vmatpush.bf16.msra.mxu0 %v871
      %895 = vmatmul.bf16.gmra.mxu0 %v836
      %v896 = vpop.f32.mrf.mxu0
      %v897 = vadd.f32 0.0, %v896
      %v898 = vpop.f32.mrf.mxu0
      %v899 = vadd.f32 0.0, %v898
      %900 = vmatmul.bf16.gmra.mxu0 %v835
      %v901 = vpop.f32.mrf.mxu0
      %v902 = vadd.f32 0.0, %v901
      %v903 = vpop.f32.mrf.mxu0
      %904 = vdwg.mxu0
      %v905 = vadd.f32 %v795, %v897
      %v906 = vadd.f32 %v796, %v899
      %v907 = vadd.f32 %v797, %v902
      %v908 = vld [vmem:[#allocation2] sm:$0x8]
      %s909 = scalar_lea.vmem %s1, 384
      %v910 = vld [vmem:[%s909] sm:$0xf]
      %v911 = vld [vmem:[%s909 + $0x4] sm:$0xf]
      %v912 = vld [vmem:[%s909 + $0x8] sm:$0xf]
      %v913 = vld [vmem:[%s909 + $0xc] sm:$0xf]
      %v914 = vld [vmem:[%s909 + $0x10] sm:$0xf]
      %v915 = vld [vmem:[%s909 + $0x14] sm:$0xf]
      %v916 = vld [vmem:[%s909 + $0x18] sm:$0xf]
      %v917 = vld [vmem:[%s909 + $0x1c] sm:$0xf]
      %v918 = vld [vmem:[%s909 + $0x20] sm:$0xf]
      %v919 = vld [vmem:[%s909 + $0x24] sm:$0xf]
      %v920 = vld [vmem:[%s909 + $0x28] sm:$0xf]
      %v921 = vld [vmem:[%s909 + $0x2c] sm:$0xf]
      %v922 = vld [vmem:[%s909 + $0x30] sm:$0xf]
      %v923 = vld [vmem:[%s909 + $0x34] sm:$0xf]
      %v924 = vld [vmem:[%s909 + $0x38] sm:$0xf]
      %v925 = vld [vmem:[%s909 + $0x3c] sm:$0xf]
      %v927 = vunpack.c.l.b16 %v908
      %v928 = vpack.c.b16 %v338, %v927
      %vm929 = vcmask 1044480
      %v930 = vrot.slane %v928, 3
      %v931 = vrot.slane %v818, 3
      %v932 = vsel %vm929, %v930, %v931
      %v951 = vunpack.c.l.b16 %v910
      %v952 = vunpack.c.l.b16 %v911
      %v953 = vunpack.c.l.b16 %v912
      %v954 = vunpack.c.l.b16 %v913
      %v955 = vunpack.c.l.b16 %v914
      %v956 = vunpack.c.l.b16 %v915
      %v957 = vunpack.c.l.b16 %v916
      %v958 = vunpack.c.l.b16 %v917
      %v959 = vunpack.c.l.b16 %v918
      %v960 = vunpack.c.l.b16 %v919
      %v961 = vunpack.c.l.b16 %v920
      %v962 = vunpack.c.l.b16 %v921
      %v963 = vunpack.c.l.b16 %v922
      %v964 = vunpack.c.l.b16 %v923
      %v965 = vunpack.c.l.b16 %v924
      %v966 = vunpack.c.l.b16 %v925
      %v967 = vpack.c.b16 %v952, %v951
      %v968 = vpack.c.b16 %v954, %v953
      %v969 = vpack.c.b16 %v956, %v955
      %v970 = vpack.c.b16 %v958, %v957
      %v971 = vpack.c.b16 %v960, %v959
      %v972 = vpack.c.b16 %v962, %v961
      %v973 = vpack.c.b16 %v964, %v963
      %v974 = vpack.c.b16 %v966, %v965
      %983 = vmatpush.bf16.msra.mxu0 %v974
      %984 = vmatpush.bf16.msra.mxu0 %v973
      %985 = vmatpush.bf16.msra.mxu0 %v972
      %986 = vmatpush.bf16.msra.mxu0 %v971
      %987 = vmatpush.bf16.msra.mxu0 %v970
      %988 = vmatpush.bf16.msra.mxu0 %v969
      %989 = vmatpush.bf16.msra.mxu0 %v968
      %990 = vmatpush.bf16.msra.mxu0 %v967
      %991 = vmatmul.bf16.gmra.mxu0 %v932
      %v992 = vpop.f32.mrf.mxu0
      %v993 = vadd.f32 0.0, %v992
      %v994 = vpop.f32.mrf.mxu0
      %v995 = vadd.f32 0.0, %v994
      %996 = vmatmul.bf16.gmra.mxu0 %v931
      %v997 = vpop.f32.mrf.mxu0
      %v998 = vadd.f32 0.0, %v997
      %v999 = vpop.f32.mrf.mxu0
      %1000 = vdwg.mxu0
      %v1001 = vadd.f32 %v905, %v993
      %v1002 = vadd.f32 %v906, %v995
      %v1003 = vadd.f32 %v907, %v998
      %v1004 = vld [vmem:[#allocation2 + $0xc] sm:$0xf]
      %s1005 = scalar_lea.vmem %s1, 448
      %v1006 = vld [vmem:[%s1005] sm:$0xf]
      %v1007 = vld [vmem:[%s1005 + $0x4] sm:$0xf]
      %v1008 = vld [vmem:[%s1005 + $0x8] sm:$0xf]
      %v1009 = vld [vmem:[%s1005 + $0xc] sm:$0xf]
      %v1010 = vld [vmem:[%s1005 + $0x10] sm:$0xf]
      %v1011 = vld [vmem:[%s1005 + $0x14] sm:$0xf]
      %v1012 = vld [vmem:[%s1005 + $0x18] sm:$0xf]
      %v1013 = vld [vmem:[%s1005 + $0x1c] sm:$0xf]
      %v1014 = vld [vmem:[%s1005 + $0x20] sm:$0xf]
      %v1015 = vld [vmem:[%s1005 + $0x24] sm:$0xf]
      %v1016 = vld [vmem:[%s1005 + $0x28] sm:$0xf]
      %v1017 = vld [vmem:[%s1005 + $0x2c] sm:$0xf]
      %v1018 = vld [vmem:[%s1005 + $0x30] sm:$0xf]
      %v1019 = vld [vmem:[%s1005 + $0x34] sm:$0xf]
      %v1020 = vld [vmem:[%s1005 + $0x38] sm:$0xf]
      %v1021 = vld [vmem:[%s1005 + $0x3c] sm:$0xf]
      %v1023 = vunpack.c.l.b16 %v1004
      %v1024 = vpack.c.b16 %v1023, %v339
      %vm1025 = vsmask.f32 4352
      %v1027 = vshrl.u32 %v928, 16
      %v1029 = vrot.slane %v1027, 3
      %v1030 = vshll.u32 %v928, 16
      %v1032 = vrot.slane %v1030, 4
      %v1033 = vor.u32 %v1029, %v1032
      %v1035 = vshrl.u32 %v1024, 16
      %v1037 = vrot.slane %v1035, 3
      %v1038 = vshll.u32 %v1024, 16
      %v1040 = vrot.slane %v1038, 4
      %v1041 = vor.u32 %v1037, %v1040
      %v1042 = vsel %vm1025, %v1033, %v1041
      %v1061 = vunpack.c.l.b16 %v1006
      %v1062 = vunpack.c.l.b16 %v1007
      %v1063 = vunpack.c.l.b16 %v1008
      %v1064 = vunpack.c.l.b16 %v1009
      %v1065 = vunpack.c.l.b16 %v1010
      %v1066 = vunpack.c.l.b16 %v1011
      %v1067 = vunpack.c.l.b16 %v1012
      %v1068 = vunpack.c.l.b16 %v1013
      %v1069 = vunpack.c.l.b16 %v1014
      %v1070 = vunpack.c.l.b16 %v1015
      %v1071 = vunpack.c.l.b16 %v1016
      %v1072 = vunpack.c.l.b16 %v1017
      %v1073 = vunpack.c.l.b16 %v1018
      %v1074 = vunpack.c.l.b16 %v1019
      %v1075 = vunpack.c.l.b16 %v1020
      %v1076 = vunpack.c.l.b16 %v1021
      %v1077 = vpack.c.b16 %v1062, %v1061
      %v1078 = vpack.c.b16 %v1064, %v1063
      %v1079 = vpack.c.b16 %v1066, %v1065
      %v1080 = vpack.c.b16 %v1068, %v1067
      %v1081 = vpack.c.b16 %v1070, %v1069
      %v1082 = vpack.c.b16 %v1072, %v1071
      %v1083 = vpack.c.b16 %v1074, %v1073
      %v1084 = vpack.c.b16 %v1076, %v1075
      %1093 = vmatpush.bf16.msra.mxu0 %v1084
      %1094 = vmatpush.bf16.msra.mxu0 %v1083
      %1095 = vmatpush.bf16.msra.mxu0 %v1082
      %1096 = vmatpush.bf16.msra.mxu0 %v1081
      %1097 = vmatpush.bf16.msra.mxu0 %v1080
      %1098 = vmatpush.bf16.msra.mxu0 %v1079
      %1099 = vmatpush.bf16.msra.mxu0 %v1078
      %1100 = vmatpush.bf16.msra.mxu0 %v1077
      %1101 = vmatmul.bf16.gmra.mxu0 %v1042
      %v1102 = vpop.f32.mrf.mxu0
      %v1103 = vadd.f32 0.0, %v1102
      %v1104 = vpop.f32.mrf.mxu0
      %v1105 = vadd.f32 0.0, %v1104
      %1106 = vmatmul.bf16.gmra.mxu0 %v1041
      %v1107 = vpop.f32.mrf.mxu0
      %v1108 = vadd.f32 0.0, %v1107
      %v1109 = vpop.f32.mrf.mxu0
      %1110 = vdwg.mxu0
      %v1111 = vadd.f32 %v1001, %v1103
      %v1112 = vadd.f32 %v1002, %v1105
      %v1113 = vadd.f32 %v1003, %v1108
      %s1114 = scalar_lea.vmem %s1, 512
      %v1115 = vld [vmem:[%s1114] sm:$0xf]
      %v1116 = vld [vmem:[%s1114 + $0x4] sm:$0xf]
      %v1117 = vld [vmem:[%s1114 + $0x8] sm:$0xf]
      %v1118 = vld [vmem:[%s1114 + $0xc] sm:$0xf]
      %v1119 = vld [vmem:[%s1114 + $0x10] sm:$0xf]
      %v1120 = vld [vmem:[%s1114 + $0x14] sm:$0xf]
      %v1121 = vld [vmem:[%s1114 + $0x18] sm:$0xf]
      %v1122 = vld [vmem:[%s1114 + $0x1c] sm:$0xf]
      %v1123 = vld [vmem:[%s1114 + $0x20] sm:$0xf]
      %v1124 = vld [vmem:[%s1114 + $0x24] sm:$0xf]
      %v1125 = vld [vmem:[%s1114 + $0x28] sm:$0xf]
      %v1126 = vld [vmem:[%s1114 + $0x2c] sm:$0xf]
      %v1127 = vld [vmem:[%s1114 + $0x30] sm:$0xf]
      %v1128 = vld [vmem:[%s1114 + $0x34] sm:$0xf]
      %v1129 = vld [vmem:[%s1114 + $0x38] sm:$0xf]
      %v1130 = vld [vmem:[%s1114 + $0x3c] sm:$0xf]
      %v1131 = vpack.c.b16 %v339, %v338
      %v1132 = vpack.c.b16 %v1023, %v1023
      %v1151 = vunpack.c.l.b16 %v1115
      %v1152 = vunpack.c.l.b16 %v1116
      %v1153 = vunpack.c.l.b16 %v1117
      %v1154 = vunpack.c.l.b16 %v1118
      %v1155 = vunpack.c.l.b16 %v1119
      %v1156 = vunpack.c.l.b16 %v1120
      %v1157 = vunpack.c.l.b16 %v1121
      %v1158 = vunpack.c.l.b16 %v1122
      %v1159 = vunpack.c.l.b16 %v1123
      %v1160 = vunpack.c.l.b16 %v1124
      %v1161 = vunpack.c.l.b16 %v1125
      %v1162 = vunpack.c.l.b16 %v1126
      %v1163 = vunpack.c.l.b16 %v1127
      %v1164 = vunpack.c.l.b16 %v1128
      %v1165 = vunpack.c.l.b16 %v1129
      %v1166 = vunpack.c.l.b16 %v1130
      %v1167 = vpack.c.b16 %v1152, %v1151
      %v1168 = vpack.c.b16 %v1154, %v1153
      %v1169 = vpack.c.b16 %v1156, %v1155
      %v1170 = vpack.c.b16 %v1158, %v1157
      %v1171 = vpack.c.b16 %v1160, %v1159
      %v1172 = vpack.c.b16 %v1162, %v1161
      %v1173 = vpack.c.b16 %v1164, %v1163
      %v1174 = vpack.c.b16 %v1166, %v1165
      %1183 = vmatpush.bf16.msra.mxu0 %v1174
      %1184 = vmatpush.bf16.msra.mxu0 %v1173
      %1185 = vmatpush.bf16.msra.mxu0 %v1172
      %1186 = vmatpush.bf16.msra.mxu0 %v1171
      %1187 = vmatpush.bf16.msra.mxu0 %v1170
      %1188 = vmatpush.bf16.msra.mxu0 %v1169
      %1189 = vmatpush.bf16.msra.mxu0 %v1168
      %1190 = vmatpush.bf16.msra.mxu0 %v1167
      %1191 = vmatmul.bf16.gmra.mxu0 %v1131
      %v1192 = vpop.f32.mrf.mxu0
      %v1193 = vadd.f32 0.0, %v1192
      %v1194 = vpop.f32.mrf.mxu0
      %v1195 = vadd.f32 0.0, %v1194
      %1196 = vmatmul.bf16.gmra.mxu0 %v1132
      %v1197 = vpop.f32.mrf.mxu0
      %v1198 = vadd.f32 0.0, %v1197
      %v1199 = vpop.f32.mrf.mxu0
      %1200 = vdwg.mxu0
      %v1201 = vadd.f32 %v1111, %v1193
      %v1202 = vadd.f32 %v1112, %v1195
      %v1203 = vadd.f32 %v1113, %v1198
      %v1204 = vld [vmem:[#allocation2 + $0x4] sm:$0xf]
      %v1205 = vld [vmem:[#allocation2 + $0x8] sm:$0xf]
      %v1206 = vld [vmem:[#allocation2 + $0xc] sm:$0xf]
      %v1207 = vld [vmem:[#allocation2 + $0x10] sm:$0x1]
      %s1208 = scalar_lea.vmem %s1, 576
      %v1209 = vld [vmem:[%s1208] sm:$0xf]
      %v1210 = vld [vmem:[%s1208 + $0x4] sm:$0xf]
      %v1211 = vld [vmem:[%s1208 + $0x8] sm:$0xf]
      %v1212 = vld [vmem:[%s1208 + $0xc] sm:$0xf]
      %v1213 = vld [vmem:[%s1208 + $0x10] sm:$0xf]
      %v1214 = vld [vmem:[%s1208 + $0x14] sm:$0xf]
      %v1215 = vld [vmem:[%s1208 + $0x18] sm:$0xf]
      %v1216 = vld [vmem:[%s1208 + $0x1c] sm:$0xf]
      %v1217 = vld [vmem:[%s1208 + $0x20] sm:$0xf]
      %v1218 = vld [vmem:[%s1208 + $0x24] sm:$0xf]
      %v1219 = vld [vmem:[%s1208 + $0x28] sm:$0xf]
      %v1220 = vld [vmem:[%s1208 + $0x2c] sm:$0xf]
      %v1221 = vld [vmem:[%s1208 + $0x30] sm:$0xf]
      %v1222 = vld [vmem:[%s1208 + $0x34] sm:$0xf]
      %v1223 = vld [vmem:[%s1208 + $0x38] sm:$0xf]
      %v1224 = vld [vmem:[%s1208 + $0x3c] sm:$0xf]
      %v1229 = vunpack.c.l.b16 %v1204
      %v1230 = vunpack.c.l.b16 %v1205
      %v1231 = vunpack.c.l.b16 %v1206
      %v1232 = vunpack.c.l.b16 %v1207
      %v1233 = vpack.c.b16 %v1230, %v1229
      %v1234 = vpack.c.b16 %v1232, %v1231
      %v1236 = vshrl.u32 %v1233, 16
      %v1238 = vshll.u32 %v1233, 16
      %v1240 = vrot.slane %v1238, 1
      %v1241 = vor.u32 %v1236, %v1240
      %v1243 = vshll.u32 %v1234, 16
      %v1245 = vrot.slane %v1243, 1
      %v1246 = vsel %vm343, %v1241, %v1245
      %v1247 = vshrl.u32 %v1234, 16
      %v1249 = vor.u32 %v1247, %v1245
      %v1268 = vunpack.c.l.b16 %v1209
      %v1269 = vunpack.c.l.b16 %v1210
      %v1270 = vunpack.c.l.b16 %v1211
      %v1271 = vunpack.c.l.b16 %v1212
      %v1272 = vunpack.c.l.b16 %v1213
      %v1273 = vunpack.c.l.b16 %v1214
      %v1274 = vunpack.c.l.b16 %v1215
      %v1275 = vunpack.c.l.b16 %v1216
      %v1276 = vunpack.c.l.b16 %v1217
      %v1277 = vunpack.c.l.b16 %v1218
      %v1278 = vunpack.c.l.b16 %v1219
      %v1279 = vunpack.c.l.b16 %v1220
      %v1280 = vunpack.c.l.b16 %v1221
      %v1281 = vunpack.c.l.b16 %v1222
      %v1282 = vunpack.c.l.b16 %v1223
      %v1283 = vunpack.c.l.b16 %v1224
      %v1284 = vpack.c.b16 %v1269, %v1268
      %v1285 = vpack.c.b16 %v1271, %v1270
      %v1286 = vpack.c.b16 %v1273, %v1272
      %v1287 = vpack.c.b16 %v1275, %v1274
      %v1288 = vpack.c.b16 %v1277, %v1276
      %v1289 = vpack.c.b16 %v1279, %v1278
      %v1290 = vpack.c.b16 %v1281, %v1280
      %v1291 = vpack.c.b16 %v1283, %v1282
      %1300 = vmatpush.bf16.msra.mxu0 %v1291
      %1301 = vmatpush.bf16.msra.mxu0 %v1290
      %1302 = vmatpush.bf16.msra.mxu0 %v1289
      %1303 = vmatpush.bf16.msra.mxu0 %v1288
      %1304 = vmatpush.bf16.msra.mxu0 %v1287
      %1305 = vmatpush.bf16.msra.mxu0 %v1286
      %1306 = vmatpush.bf16.msra.mxu0 %v1285
      %1307 = vmatpush.bf16.msra.mxu0 %v1284
      %1308 = vmatmul.bf16.gmra.mxu0 %v1246
      %v1309 = vpop.f32.mrf.mxu0
      %v1310 = vadd.f32 0.0, %v1309
      %v1311 = vpop.f32.mrf.mxu0
      %v1312 = vadd.f32 0.0, %v1311
      %1313 = vmatmul.bf16.gmra.mxu0 %v1249
      %v1314 = vpop.f32.mrf.mxu0
      %v1315 = vadd.f32 0.0, %v1314
      %v1316 = vpop.f32.mrf.mxu0
      %1317 = vdwg.mxu0
      %v1318 = vadd.f32 %v1201, %v1310
      %v1319 = vadd.f32 %v1202, %v1312
      %v1320 = vadd.f32 %v1203, %v1315
      %v1321 = vld [vmem:[#allocation2 + $0x4] sm:$0xe]
      %s1322 = scalar_lea.vmem %s1, 640
      %v1323 = vld [vmem:[%s1322] sm:$0xf]
      %v1324 = vld [vmem:[%s1322 + $0x4] sm:$0xf]
      %v1325 = vld [vmem:[%s1322 + $0x8] sm:$0xf]
      %v1326 = vld [vmem:[%s1322 + $0xc] sm:$0xf]
      %v1327 = vld [vmem:[%s1322 + $0x10] sm:$0xf]
      %v1328 = vld [vmem:[%s1322 + $0x14] sm:$0xf]
      %v1329 = vld [vmem:[%s1322 + $0x18] sm:$0xf]
      %v1330 = vld [vmem:[%s1322 + $0x1c] sm:$0xf]
      %v1331 = vld [vmem:[%s1322 + $0x20] sm:$0xf]
      %v1332 = vld [vmem:[%s1322 + $0x24] sm:$0xf]
      %v1333 = vld [vmem:[%s1322 + $0x28] sm:$0xf]
      %v1334 = vld [vmem:[%s1322 + $0x2c] sm:$0xf]
      %v1335 = vld [vmem:[%s1322 + $0x30] sm:$0xf]
      %v1336 = vld [vmem:[%s1322 + $0x34] sm:$0xf]
      %v1337 = vld [vmem:[%s1322 + $0x38] sm:$0xf]
      %v1338 = vld [vmem:[%s1322 + $0x3c] sm:$0xf]
      %v1340 = vunpack.c.l.b16 %v1321
      %v1341 = vpack.c.b16 %v1230, %v1340
      %v1342 = vrot.slane %v1341, 1
      %v1343 = vrot.slane %v1234, 1
      %v1344 = vsel %vm517, %v1342, %v1343
      %v1363 = vunpack.c.l.b16 %v1323
      %v1364 = vunpack.c.l.b16 %v1324
      %v1365 = vunpack.c.l.b16 %v1325
      %v1366 = vunpack.c.l.b16 %v1326
      %v1367 = vunpack.c.l.b16 %v1327
      %v1368 = vunpack.c.l.b16 %v1328
      %v1369 = vunpack.c.l.b16 %v1329
      %v1370 = vunpack.c.l.b16 %v1330
      %v1371 = vunpack.c.l.b16 %v1331
      %v1372 = vunpack.c.l.b16 %v1332
      %v1373 = vunpack.c.l.b16 %v1333
      %v1374 = vunpack.c.l.b16 %v1334
      %v1375 = vunpack.c.l.b16 %v1335
      %v1376 = vunpack.c.l.b16 %v1336
      %v1377 = vunpack.c.l.b16 %v1337
      %v1378 = vunpack.c.l.b16 %v1338
      %v1379 = vpack.c.b16 %v1364, %v1363
      %v1380 = vpack.c.b16 %v1366, %v1365
      %v1381 = vpack.c.b16 %v1368, %v1367
      %v1382 = vpack.c.b16 %v1370, %v1369
      %v1383 = vpack.c.b16 %v1372, %v1371
      %v1384 = vpack.c.b16 %v1374, %v1373
      %v1385 = vpack.c.b16 %v1376, %v1375
      %v1386 = vpack.c.b16 %v1378, %v1377
      %1395 = vmatpush.bf16.msra.mxu0 %v1386
      %1396 = vmatpush.bf16.msra.mxu0 %v1385
      %1397 = vmatpush.bf16.msra.mxu0 %v1384
      %1398 = vmatpush.bf16.msra.mxu0 %v1383
      %1399 = vmatpush.bf16.msra.mxu0 %v1382
      %1400 = vmatpush.bf16.msra.mxu0 %v1381
      %1401 = vmatpush.bf16.msra.mxu0 %v1380
      %1402 = vmatpush.bf16.msra.mxu0 %v1379
      %1403 = vmatmul.bf16.gmra.mxu0 %v1344
      %v1404 = vpop.f32.mrf.mxu0
      %v1405 = vadd.f32 0.0, %v1404
      %v1406 = vpop.f32.mrf.mxu0
      %v1407 = vadd.f32 0.0, %v1406
      %1408 = vmatmul.bf16.gmra.mxu0 %v1343
      %v1409 = vpop.f32.mrf.mxu0
      %v1410 = vadd.f32 0.0, %v1409
      %v1411 = vpop.f32.mrf.mxu0
      %1412 = vdwg.mxu0
      %v1413 = vadd.f32 %v1318, %v1405
      %v1414 = vadd.f32 %v1319, %v1407
      %v1415 = vadd.f32 %v1320, %v1410
      %v1416 = vld [vmem:[#allocation2 + $0x10] sm:$0x3]
      %s1417 = scalar_lea.vmem %s1, 704
      %v1418 = vld [vmem:[%s1417] sm:$0xf]
      %v1419 = vld [vmem:[%s1417 + $0x4] sm:$0xf]
      %v1420 = vld [vmem:[%s1417 + $0x8] sm:$0xf]
      %v1421 = vld [vmem:[%s1417 + $0xc] sm:$0xf]
      %v1422 = vld [vmem:[%s1417 + $0x10] sm:$0xf]
      %v1423 = vld [vmem:[%s1417 + $0x14] sm:$0xf]
      %v1424 = vld [vmem:[%s1417 + $0x18] sm:$0xf]
      %v1425 = vld [vmem:[%s1417 + $0x1c] sm:$0xf]
      %v1426 = vld [vmem:[%s1417 + $0x20] sm:$0xf]
      %v1427 = vld [vmem:[%s1417 + $0x24] sm:$0xf]
      %v1428 = vld [vmem:[%s1417 + $0x28] sm:$0xf]
      %v1429 = vld [vmem:[%s1417 + $0x2c] sm:$0xf]
      %v1430 = vld [vmem:[%s1417 + $0x30] sm:$0xf]
      %v1431 = vld [vmem:[%s1417 + $0x34] sm:$0xf]
      %v1432 = vld [vmem:[%s1417 + $0x38] sm:$0xf]
      %v1433 = vld [vmem:[%s1417 + $0x3c] sm:$0xf]
      %v1435 = vunpack.c.l.b16 %v1416
      %v1436 = vpack.c.b16 %v1435, %v1231
      %v1438 = vshrl.u32 %v1341, 16
      %v1440 = vrot.slane %v1438, 1
      %v1441 = vshll.u32 %v1341, 16
      %v1443 = vrot.slane %v1441, 2
      %v1444 = vor.u32 %v1440, %v1443
      %v1446 = vshrl.u32 %v1436, 16
      %v1448 = vrot.slane %v1446, 1
      %v1449 = vshll.u32 %v1436, 16
      %v1451 = vrot.slane %v1449, 2
      %v1452 = vor.u32 %v1448, %v1451
      %v1453 = vsel %vm613, %v1444, %v1452
      %v1472 = vunpack.c.l.b16 %v1418
      %v1473 = vunpack.c.l.b16 %v1419
      %v1474 = vunpack.c.l.b16 %v1420
      %v1475 = vunpack.c.l.b16 %v1421
      %v1476 = vunpack.c.l.b16 %v1422
      %v1477 = vunpack.c.l.b16 %v1423
      %v1478 = vunpack.c.l.b16 %v1424
      %v1479 = vunpack.c.l.b16 %v1425
      %v1480 = vunpack.c.l.b16 %v1426
      %v1481 = vunpack.c.l.b16 %v1427
      %v1482 = vunpack.c.l.b16 %v1428
      %v1483 = vunpack.c.l.b16 %v1429
      %v1484 = vunpack.c.l.b16 %v1430
      %v1485 = vunpack.c.l.b16 %v1431
      %v1486 = vunpack.c.l.b16 %v1432
      %v1487 = vunpack.c.l.b16 %v1433
      %v1488 = vpack.c.b16 %v1473, %v1472
      %v1489 = vpack.c.b16 %v1475, %v1474
      %v1490 = vpack.c.b16 %v1477, %v1476
      %v1491 = vpack.c.b16 %v1479, %v1478
      %v1492 = vpack.c.b16 %v1481, %v1480
      %v1493 = vpack.c.b16 %v1483, %v1482
      %v1494 = vpack.c.b16 %v1485, %v1484
      %v1495 = vpack.c.b16 %v1487, %v1486
      %1504 = vmatpush.bf16.msra.mxu0 %v1495
      %1505 = vmatpush.bf16.msra.mxu0 %v1494
      %1506 = vmatpush.bf16.msra.mxu0 %v1493
      %1507 = vmatpush.bf16.msra.mxu0 %v1492
      %1508 = vmatpush.bf16.msra.mxu0 %v1491
      %1509 = vmatpush.bf16.msra.mxu0 %v1490
      %1510 = vmatpush.bf16.msra.mxu0 %v1489
      %1511 = vmatpush.bf16.msra.mxu0 %v1488
      %1512 = vmatmul.bf16.gmra.mxu0 %v1453
      %v1513 = vpop.f32.mrf.mxu0
      %v1514 = vadd.f32 0.0, %v1513
      %v1515 = vpop.f32.mrf.mxu0
      %v1516 = vadd.f32 0.0, %v1515
      %1517 = vmatmul.bf16.gmra.mxu0 %v1452
      %v1518 = vpop.f32.mrf.mxu0
      %v1519 = vadd.f32 0.0, %v1518
      %v1520 = vpop.f32.mrf.mxu0
      %1521 = vdwg.mxu0
      %v1522 = vadd.f32 %v1413, %v1514
      %v1523 = vadd.f32 %v1414, %v1516
      %v1524 = vadd.f32 %v1415, %v1519
      %v1525 = vld [vmem:[#allocation2 + $0x4] sm:$0xc]
      %s1526 = scalar_lea.vmem %s1, 768
      %v1527 = vld [vmem:[%s1526] sm:$0xf]
      %v1528 = vld [vmem:[%s1526 + $0x4] sm:$0xf]
      %v1529 = vld [vmem:[%s1526 + $0x8] sm:$0xf]
      %v1530 = vld [vmem:[%s1526 + $0xc] sm:$0xf]
      %v1531 = vld [vmem:[%s1526 + $0x10] sm:$0xf]
      %v1532 = vld [vmem:[%s1526 + $0x14] sm:$0xf]
      %v1533 = vld [vmem:[%s1526 + $0x18] sm:$0xf]
      %v1534 = vld [vmem:[%s1526 + $0x1c] sm:$0xf]
      %v1535 = vld [vmem:[%s1526 + $0x20] sm:$0xf]
      %v1536 = vld [vmem:[%s1526 + $0x24] sm:$0xf]
      %v1537 = vld [vmem:[%s1526 + $0x28] sm:$0xf]
      %v1538 = vld [vmem:[%s1526 + $0x2c] sm:$0xf]
      %v1539 = vld [vmem:[%s1526 + $0x30] sm:$0xf]
      %v1540 = vld [vmem:[%s1526 + $0x34] sm:$0xf]
      %v1541 = vld [vmem:[%s1526 + $0x38] sm:$0xf]
      %v1542 = vld [vmem:[%s1526 + $0x3c] sm:$0xf]
      %v1544 = vunpack.c.l.b16 %v1525
      %v1545 = vpack.c.b16 %v1230, %v1544
      %v1546 = vrot.slane %v1545, 2
      %v1547 = vrot.slane %v1436, 2
      %v1548 = vsel %vm723, %v1546, %v1547
      %v1567 = vunpack.c.l.b16 %v1527
      %v1568 = vunpack.c.l.b16 %v1528
      %v1569 = vunpack.c.l.b16 %v1529
      %v1570 = vunpack.c.l.b16 %v1530
      %v1571 = vunpack.c.l.b16 %v1531
      %v1572 = vunpack.c.l.b16 %v1532
      %v1573 = vunpack.c.l.b16 %v1533
      %v1574 = vunpack.c.l.b16 %v1534
      %v1575 = vunpack.c.l.b16 %v1535
      %v1576 = vunpack.c.l.b16 %v1536
      %v1577 = vunpack.c.l.b16 %v1537
      %v1578 = vunpack.c.l.b16 %v1538
      %v1579 = vunpack.c.l.b16 %v1539
      %v1580 = vunpack.c.l.b16 %v1540
      %v1581 = vunpack.c.l.b16 %v1541
      %v1582 = vunpack.c.l.b16 %v1542
      %v1583 = vpack.c.b16 %v1568, %v1567
      %v1584 = vpack.c.b16 %v1570, %v1569
      %v1585 = vpack.c.b16 %v1572, %v1571
      %v1586 = vpack.c.b16 %v1574, %v1573
      %v1587 = vpack.c.b16 %v1576, %v1575
      %v1588 = vpack.c.b16 %v1578, %v1577
      %v1589 = vpack.c.b16 %v1580, %v1579
      %v1590 = vpack.c.b16 %v1582, %v1581
      %1599 = vmatpush.bf16.msra.mxu0 %v1590
      %1600 = vmatpush.bf16.msra.mxu0 %v1589
      %1601 = vmatpush.bf16.msra.mxu0 %v1588
      %1602 = vmatpush.bf16.msra.mxu0 %v1587
      %1603 = vmatpush.bf16.msra.mxu0 %v1586
      %1604 = vmatpush.bf16.msra.mxu0 %v1585
      %1605 = vmatpush.bf16.msra.mxu0 %v1584
      %1606 = vmatpush.bf16.msra.mxu0 %v1583
      %1607 = vmatmul.bf16.gmra.mxu0 %v1548
      %v1608 = vpop.f32.mrf.mxu0
      %v1609 = vadd.f32 0.0, %v1608
      %v1610 = vpop.f32.mrf.mxu0
      %v1611 = vadd.f32 0.0, %v1610
      %1612 = vmatmul.bf16.gmra.mxu0 %v1547
      %v1613 = vpop.f32.mrf.mxu0
      %v1614 = vadd.f32 0.0, %v1613
      %v1615 = vpop.f32.mrf.mxu0
      %1616 = vdwg.mxu0
      %v1617 = vadd.f32 %v1522, %v1609
      %v1618 = vadd.f32 %v1523, %v1611
      %v1619 = vadd.f32 %v1524, %v1614
      %v1620 = vld [vmem:[#allocation2 + $0x10] sm:$0x7]
      %s1621 = scalar_lea.vmem %s1, 832
      %v1622 = vld [vmem:[%s1621] sm:$0xf]
      %v1623 = vld [vmem:[%s1621 + $0x4] sm:$0xf]
      %v1624 = vld [vmem:[%s1621 + $0x8] sm:$0xf]
      %v1625 = vld [vmem:[%s1621 + $0xc] sm:$0xf]
      %v1626 = vld [vmem:[%s1621 + $0x10] sm:$0xf]
      %v1627 = vld [vmem:[%s1621 + $0x14] sm:$0xf]
      %v1628 = vld [vmem:[%s1621 + $0x18] sm:$0xf]
      %v1629 = vld [vmem:[%s1621 + $0x1c] sm:$0xf]
      %v1630 = vld [vmem:[%s1621 + $0x20] sm:$0xf]
      %v1631 = vld [vmem:[%s1621 + $0x24] sm:$0xf]
      %v1632 = vld [vmem:[%s1621 + $0x28] sm:$0xf]
      %v1633 = vld [vmem:[%s1621 + $0x2c] sm:$0xf]
      %v1634 = vld [vmem:[%s1621 + $0x30] sm:$0xf]
      %v1635 = vld [vmem:[%s1621 + $0x34] sm:$0xf]
      %v1636 = vld [vmem:[%s1621 + $0x38] sm:$0xf]
      %v1637 = vld [vmem:[%s1621 + $0x3c] sm:$0xf]
      %v1639 = vunpack.c.l.b16 %v1620
      %v1640 = vpack.c.b16 %v1639, %v1231
      %v1642 = vshrl.u32 %v1545, 16
      %v1644 = vrot.slane %v1642, 2
      %v1645 = vshll.u32 %v1545, 16
      %v1647 = vrot.slane %v1645, 3
      %v1648 = vor.u32 %v1644, %v1647
      %v1650 = vshrl.u32 %v1640, 16
      %v1652 = vrot.slane %v1650, 2
      %v1653 = vshll.u32 %v1640, 16
      %v1655 = vrot.slane %v1653, 3
      %v1656 = vor.u32 %v1652, %v1655
      %v1657 = vsel %vm819, %v1648, %v1656
      %v1676 = vunpack.c.l.b16 %v1622
      %v1677 = vunpack.c.l.b16 %v1623
      %v1678 = vunpack.c.l.b16 %v1624
      %v1679 = vunpack.c.l.b16 %v1625
      %v1680 = vunpack.c.l.b16 %v1626
      %v1681 = vunpack.c.l.b16 %v1627
      %v1682 = vunpack.c.l.b16 %v1628
      %v1683 = vunpack.c.l.b16 %v1629
      %v1684 = vunpack.c.l.b16 %v1630
      %v1685 = vunpack.c.l.b16 %v1631
      %v1686 = vunpack.c.l.b16 %v1632
      %v1687 = vunpack.c.l.b16 %v1633
      %v1688 = vunpack.c.l.b16 %v1634
      %v1689 = vunpack.c.l.b16 %v1635
      %v1690 = vunpack.c.l.b16 %v1636
      %v1691 = vunpack.c.l.b16 %v1637
      %v1692 = vpack.c.b16 %v1677, %v1676
      %v1693 = vpack.c.b16 %v1679, %v1678
      %v1694 = vpack.c.b16 %v1681, %v1680
      %v1695 = vpack.c.b16 %v1683, %v1682
      %v1696 = vpack.c.b16 %v1685, %v1684
      %v1697 = vpack.c.b16 %v1687, %v1686
      %v1698 = vpack.c.b16 %v1689, %v1688
      %v1699 = vpack.c.b16 %v1691, %v1690
      %1708 = vmatpush.bf16.msra.mxu0 %v1699
      %1709 = vmatpush.bf16.msra.mxu0 %v1698
      %1710 = vmatpush.bf16.msra.mxu0 %v1697
      %1711 = vmatpush.bf16.msra.mxu0 %v1696
      %1712 = vmatpush.bf16.msra.mxu0 %v1695
      %1713 = vmatpush.bf16.msra.mxu0 %v1694
      %1714 = vmatpush.bf16.msra.mxu0 %v1693
      %1715 = vmatpush.bf16.msra.mxu0 %v1692
      %1716 = vmatmul.bf16.gmra.mxu0 %v1657
      %v1717 = vpop.f32.mrf.mxu0
      %v1718 = vadd.f32 0.0, %v1717
      %v1719 = vpop.f32.mrf.mxu0
      %v1720 = vadd.f32 0.0, %v1719
      %1721 = vmatmul.bf16.gmra.mxu0 %v1656
      %v1722 = vpop.f32.mrf.mxu0
      %v1723 = vadd.f32 0.0, %v1722
      %v1724 = vpop.f32.mrf.mxu0
      %1725 = vdwg.mxu0
      %v1726 = vadd.f32 %v1617, %v1718
      %v1727 = vadd.f32 %v1618, %v1720
      %v1728 = vadd.f32 %v1619, %v1723
      %v1729 = vld [vmem:[#allocation2 + $0x4] sm:$0x8]
      %s1730 = scalar_lea.vmem %s1, 896
      %v1731 = vld [vmem:[%s1730] sm:$0xf]
      %v1732 = vld [vmem:[%s1730 + $0x4] sm:$0xf]
      %v1733 = vld [vmem:[%s1730 + $0x8] sm:$0xf]
      %v1734 = vld [vmem:[%s1730 + $0xc] sm:$0xf]
      %v1735 = vld [vmem:[%s1730 + $0x10] sm:$0xf]
      %v1736 = vld [vmem:[%s1730 + $0x14] sm:$0xf]
      %v1737 = vld [vmem:[%s1730 + $0x18] sm:$0xf]
      %v1738 = vld [vmem:[%s1730 + $0x1c] sm:$0xf]
      %v1739 = vld [vmem:[%s1730 + $0x20] sm:$0xf]
      %v1740 = vld [vmem:[%s1730 + $0x24] sm:$0xf]
      %v1741 = vld [vmem:[%s1730 + $0x28] sm:$0xf]
      %v1742 = vld [vmem:[%s1730 + $0x2c] sm:$0xf]
      %v1743 = vld [vmem:[%s1730 + $0x30] sm:$0xf]
      %v1744 = vld [vmem:[%s1730 + $0x34] sm:$0xf]
      %v1745 = vld [vmem:[%s1730 + $0x38] sm:$0xf]
      %v1746 = vld [vmem:[%s1730 + $0x3c] sm:$0xf]
      %v1748 = vunpack.c.l.b16 %v1729
      %v1749 = vpack.c.b16 %v1230, %v1748
      %v1750 = vrot.slane %v1749, 3
      %v1751 = vrot.slane %v1640, 3
      %v1752 = vsel %vm929, %v1750, %v1751
      %v1771 = vunpack.c.l.b16 %v1731
      %v1772 = vunpack.c.l.b16 %v1732
      %v1773 = vunpack.c.l.b16 %v1733
      %v1774 = vunpack.c.l.b16 %v1734
      %v1775 = vunpack.c.l.b16 %v1735
      %v1776 = vunpack.c.l.b16 %v1736
      %v1777 = vunpack.c.l.b16 %v1737
      %v1778 = vunpack.c.l.b16 %v1738
      %v1779 = vunpack.c.l.b16 %v1739
      %v1780 = vunpack.c.l.b16 %v1740
      %v1781 = vunpack.c.l.b16 %v1741
      %v1782 = vunpack.c.l.b16 %v1742
      %v1783 = vunpack.c.l.b16 %v1743
      %v1784 = vunpack.c.l.b16 %v1744
      %v1785 = vunpack.c.l.b16 %v1745
      %v1786 = vunpack.c.l.b16 %v1746
      %v1787 = vpack.c.b16 %v1772, %v1771
      %v1788 = vpack.c.b16 %v1774, %v1773
      %v1789 = vpack.c.b16 %v1776, %v1775
      %v1790 = vpack.c.b16 %v1778, %v1777
      %v1791 = vpack.c.b16 %v1780, %v1779
      %v1792 = vpack.c.b16 %v1782, %v1781
      %v1793 = vpack.c.b16 %v1784, %v1783
      %v1794 = vpack.c.b16 %v1786, %v1785
      %1803 = vmatpush.bf16.msra.mxu0 %v1794
      %1804 = vmatpush.bf16.msra.mxu0 %v1793
      %1805 = vmatpush.bf16.msra.mxu0 %v1792
      %1806 = vmatpush.bf16.msra.mxu0 %v1791
      %1807 = vmatpush.bf16.msra.mxu0 %v1790
      %1808 = vmatpush.bf16.msra.mxu0 %v1789
      %1809 = vmatpush.bf16.msra.mxu0 %v1788
      %1810 = vmatpush.bf16.msra.mxu0 %v1787
      %1811 = vmatmul.bf16.gmra.mxu0 %v1752
      %v1812 = vpop.f32.mrf.mxu0
      %v1813 = vadd.f32 0.0, %v1812
      %v1814 = vpop.f32.mrf.mxu0
      %v1815 = vadd.f32 0.0, %v1814
      %1816 = vmatmul.bf16.gmra.mxu0 %v1751
      %v1817 = vpop.f32.mrf.mxu0
      %v1818 = vadd.f32 0.0, %v1817
      %v1819 = vpop.f32.mrf.mxu0
      %1820 = vdwg.mxu0
      %v1821 = vadd.f32 %v1726, %v1813
      %v1822 = vadd.f32 %v1727, %v1815
      %v1823 = vadd.f32 %v1728, %v1818
      %v1824 = vld [vmem:[#allocation2 + $0x10] sm:$0xf]
      %s1825 = scalar_lea.vmem %s1, 960
      %v1826 = vld [vmem:[%s1825] sm:$0xf]
      %v1827 = vld [vmem:[%s1825 + $0x4] sm:$0xf]
      %v1828 = vld [vmem:[%s1825 + $0x8] sm:$0xf]
      %v1829 = vld [vmem:[%s1825 + $0xc] sm:$0xf]
      %v1830 = vld [vmem:[%s1825 + $0x10] sm:$0xf]
      %v1831 = vld [vmem:[%s1825 + $0x14] sm:$0xf]
      %v1832 = vld [vmem:[%s1825 + $0x18] sm:$0xf]
      %v1833 = vld [vmem:[%s1825 + $0x1c] sm:$0xf]
      %v1834 = vld [vmem:[%s1825 + $0x20] sm:$0xf]
      %v1835 = vld [vmem:[%s1825 + $0x24] sm:$0xf]
      %v1836 = vld [vmem:[%s1825 + $0x28] sm:$0xf]
      %v1837 = vld [vmem:[%s1825 + $0x2c] sm:$0xf]
      %v1838 = vld [vmem:[%s1825 + $0x30] sm:$0xf]
      %v1839 = vld [vmem:[%s1825 + $0x34] sm:$0xf]
      %v1840 = vld [vmem:[%s1825 + $0x38] sm:$0xf]
      %v1841 = vld [vmem:[%s1825 + $0x3c] sm:$0xf]
      %v1843 = vunpack.c.l.b16 %v1824
      %v1844 = vpack.c.b16 %v1843, %v1231
      %v1846 = vshrl.u32 %v1749, 16
      %v1848 = vrot.slane %v1846, 3
      %v1849 = vshll.u32 %v1749, 16
      %v1851 = vrot.slane %v1849, 4
      %v1852 = vor.u32 %v1848, %v1851
      %v1854 = vshrl.u32 %v1844, 16
      %v1856 = vrot.slane %v1854, 3
      %v1857 = vshll.u32 %v1844, 16
      %v1859 = vrot.slane %v1857, 4
      %v1860 = vor.u32 %v1856, %v1859
      %v1861 = vsel %vm1025, %v1852, %v1860
      %v1880 = vunpack.c.l.b16 %v1826
      %v1881 = vunpack.c.l.b16 %v1827
      %v1882 = vunpack.c.l.b16 %v1828
      %v1883 = vunpack.c.l.b16 %v1829
      %v1884 = vunpack.c.l.b16 %v1830
      %v1885 = vunpack.c.l.b16 %v1831
      %v1886 = vunpack.c.l.b16 %v1832
      %v1887 = vunpack.c.l.b16 %v1833
      %v1888 = vunpack.c.l.b16 %v1834
      %v1889 = vunpack.c.l.b16 %v1835
      %v1890 = vunpack.c.l.b16 %v1836
      %v1891 = vunpack.c.l.b16 %v1837
      %v1892 = vunpack.c.l.b16 %v1838
      %v1893 = vunpack.c.l.b16 %v1839
      %v1894 = vunpack.c.l.b16 %v1840
      %v1895 = vunpack.c.l.b16 %v1841
      %v1896 = vpack.c.b16 %v1881, %v1880
      %v1897 = vpack.c.b16 %v1883, %v1882
      %v1898 = vpack.c.b16 %v1885, %v1884
      %v1899 = vpack.c.b16 %v1887, %v1886
      %v1900 = vpack.c.b16 %v1889, %v1888
      %v1901 = vpack.c.b16 %v1891, %v1890
      %v1902 = vpack.c.b16 %v1893, %v1892
      %v1903 = vpack.c.b16 %v1895, %v1894
      %1912 = vmatpush.bf16.msra.mxu0 %v1903
      %1913 = vmatpush.bf16.msra.mxu0 %v1902
      %1914 = vmatpush.bf16.msra.mxu0 %v1901
      %1915 = vmatpush.bf16.msra.mxu0 %v1900
      %1916 = vmatpush.bf16.msra.mxu0 %v1899
      %1917 = vmatpush.bf16.msra.mxu0 %v1898
      %1918 = vmatpush.bf16.msra.mxu0 %v1897
      %1919 = vmatpush.bf16.msra.mxu0 %v1896
      %1920 = vmatmul.bf16.gmra.mxu0 %v1861
      %v1921 = vpop.f32.mrf.mxu0
      %v1922 = vadd.f32 0.0, %v1921
      %v1923 = vpop.f32.mrf.mxu0
      %v1924 = vadd.f32 0.0, %v1923
      %1925 = vmatmul.bf16.gmra.mxu0 %v1860
      %v1926 = vpop.f32.mrf.mxu0
      %v1927 = vadd.f32 0.0, %v1926
      %v1928 = vpop.f32.mrf.mxu0
      %1929 = vdwg.mxu0
      %v1930 = vadd.f32 %v1821, %v1922
      %v1931 = vadd.f32 %v1822, %v1924
      %v1932 = vadd.f32 %v1823, %v1927
      %s1933 = scalar_lea.vmem %s1, 1024
      %v1934 = vld [vmem:[%s1933] sm:$0xf]
      %v1935 = vld [vmem:[%s1933 + $0x4] sm:$0xf]
      %v1936 = vld [vmem:[%s1933 + $0x8] sm:$0xf]
      %v1937 = vld [vmem:[%s1933 + $0xc] sm:$0xf]
      %v1938 = vld [vmem:[%s1933 + $0x10] sm:$0xf]
      %v1939 = vld [vmem:[%s1933 + $0x14] sm:$0xf]
      %v1940 = vld [vmem:[%s1933 + $0x18] sm:$0xf]
      %v1941 = vld [vmem:[%s1933 + $0x1c] sm:$0xf]
      %v1942 = vld [vmem:[%s1933 + $0x20] sm:$0xf]
      %v1943 = vld [vmem:[%s1933 + $0x24] sm:$0xf]
      %v1944 = vld [vmem:[%s1933 + $0x28] sm:$0xf]
      %v1945 = vld [vmem:[%s1933 + $0x2c] sm:$0xf]
      %v1946 = vld [vmem:[%s1933 + $0x30] sm:$0xf]
      %v1947 = vld [vmem:[%s1933 + $0x34] sm:$0xf]
      %v1948 = vld [vmem:[%s1933 + $0x38] sm:$0xf]
      %v1949 = vld [vmem:[%s1933 + $0x3c] sm:$0xf]
      %v1950 = vpack.c.b16 %v1231, %v1230
      %v1951 = vpack.c.b16 %v1843, %v1843
      %v1970 = vunpack.c.l.b16 %v1934
      %v1971 = vunpack.c.l.b16 %v1935
      %v1972 = vunpack.c.l.b16 %v1936
      %v1973 = vunpack.c.l.b16 %v1937
      %v1974 = vunpack.c.l.b16 %v1938
      %v1975 = vunpack.c.l.b16 %v1939
      %v1976 = vunpack.c.l.b16 %v1940
      %v1977 = vunpack.c.l.b16 %v1941
      %v1978 = vunpack.c.l.b16 %v1942
      %v1979 = vunpack.c.l.b16 %v1943
      %v1980 = vunpack.c.l.b16 %v1944
      %v1981 = vunpack.c.l.b16 %v1945
      %v1982 = vunpack.c.l.b16 %v1946
      %v1983 = vunpack.c.l.b16 %v1947
      %v1984 = vunpack.c.l.b16 %v1948
      %v1985 = vunpack.c.l.b16 %v1949
      %v1986 = vpack.c.b16 %v1971, %v1970
      %v1987 = vpack.c.b16 %v1973, %v1972
      %v1988 = vpack.c.b16 %v1975, %v1974
      %v1989 = vpack.c.b16 %v1977, %v1976
      %v1990 = vpack.c.b16 %v1979, %v1978
      %v1991 = vpack.c.b16 %v1981, %v1980
      %v1992 = vpack.c.b16 %v1983, %v1982
      %v1993 = vpack.c.b16 %v1985, %v1984
      %2002 = vmatpush.bf16.msra.mxu0 %v1993
      %2003 = vmatpush.bf16.msra.mxu0 %v1992
      %2004 = vmatpush.bf16.msra.mxu0 %v1991
      %2005 = vmatpush.bf16.msra.mxu0 %v1990
      %2006 = vmatpush.bf16.msra.mxu0 %v1989
      %2007 = vmatpush.bf16.msra.mxu0 %v1988
      %2008 = vmatpush.bf16.msra.mxu0 %v1987
      %2009 = vmatpush.bf16.msra.mxu0 %v1986
      %2010 = vmatmul.bf16.gmra.mxu0 %v1950
      %v2011 = vpop.f32.mrf.mxu0
      %v2012 = vadd.f32 0.0, %v2011
      %v2013 = vpop.f32.mrf.mxu0
      %v2014 = vadd.f32 0.0, %v2013
      %2015 = vmatmul.bf16.gmra.mxu0 %v1951
      %v2016 = vpop.f32.mrf.mxu0
      %v2017 = vadd.f32 0.0, %v2016
      %v2018 = vpop.f32.mrf.mxu0
      %2019 = vdwg.mxu0
      %v2020 = vadd.f32 %v1930, %v2012
      %v2021 = vadd.f32 %v1931, %v2014
      %v2022 = vadd.f32 %v1932, %v2017
      %v2023 = vld [vmem:[%s2] sm:$0x1]
      %v2025 = vperm.slane %v2023, 0
      %v2027 = vadd.f32 %v2020, %v2025
      %v2028 = vadd.f32 %v2021, %v2025
      %v2029 = vadd.f32 %v2022, %v2025
      %v2030 = vmax.f32 %v2027, 0.0
      %v2031 = vmax.f32 %v2028, 0.0
      %v2032 = vmax.f32 %v2029, 0.0
      %s2033 = ssub.s32 %s253, 8
      %v2034 = vlaneseq
      %v2035 = vshrl.u32 %v2034, 7
      %v2036 = vadd.s32 %v2035, 8
      %v2037 = vadd.s32 %v2035, 16
      %v2038 = vstv %s2033
      %v2039 = vadd.s32 %v2038, %v2035
      %v2040 = vadd.s32 %v2038, %v2036
      %v2041 = vadd.s32 %v2038, %v2037
      %vm2042 = vcmp.ge.s32.totalorder %v2039, 0
      %vm2043 = vcmp.ge.s32.totalorder %v2040, 0
      %vm2044 = vcmp.ge.s32.totalorder %v2041, 0
      %vm2045 = vcmp.lt.s32.totalorder %v2039, 16
      %vm2046 = vcmp.lt.s32.totalorder %v2040, 16
      %vm2047 = vcmp.lt.s32.totalorder %v2041, 16
      %vm2048 = vmand %vm2042, %vm2045
      %vm2049 = vmand %vm2043, %vm2046
      %vm2050 = vmand %vm2044, %vm2047
      %v2051 = vsel %vm2048, 1, 0
      %v2052 = vsel %vm2049, 1, 0
      %v2053 = vsel %vm2050, 1, 0
      %vm2054 = vcmp.eq.s32.totalorder %v2051, 1
      %vm2055 = vcmp.eq.s32.totalorder %v2052, 1
      %vm2056 = vcmp.eq.s32.totalorder %v2053, 1
      %v2057 = vsel %vm2054, %v2030, 0.0
      %v2058 = vsel %vm2055, %v2031, 0.0
      %v2059 = vsel %vm2056, %v2032, 0.0
      %v2060 = vpack.c.bf16 %v2057, %v2057
      %v2061 = vpack.c.bf16 %v2058, %v2058
      %v2062 = vpack.c.bf16 %v2059, %v2059
      %2063 = vst [vmem:[#allocation3] sm:$0xf] %v2060
      %2064 = vst [vmem:[#allocation3 + $0x4] sm:$0xf] %v2061
      %2065 = vst [vmem:[#allocation3 + $0x8] sm:$0xf] %v2062
      %v2066 = vld [vmem:[#allocation3] sm:$0xf]
      %v2067 = vld [vmem:[%s3] sm:$0xf]
      %v2068 = vld [vmem:[%s3 + $0x4] sm:$0xf]
      %v2069 = vld [vmem:[%s3 + $0x8] sm:$0xf]
      %v2070 = vld [vmem:[%s3 + $0xc] sm:$0xf]
      %v2071 = vld [vmem:[%s3 + $0x10] sm:$0xf]
      %v2072 = vld [vmem:[%s3 + $0x14] sm:$0xf]
      %v2073 = vld [vmem:[%s3 + $0x18] sm:$0xf]
      %v2074 = vld [vmem:[%s3 + $0x1c] sm:$0xf]
      %v2075 = vld [vmem:[%s3 + $0x20] sm:$0xf]
      %v2076 = vld [vmem:[%s3 + $0x24] sm:$0xf]
      %v2077 = vld [vmem:[%s3 + $0x28] sm:$0xf]
      %v2078 = vld [vmem:[%s3 + $0x2c] sm:$0xf]
      %v2079 = vld [vmem:[%s3 + $0x30] sm:$0xf]
      %v2080 = vld [vmem:[%s3 + $0x34] sm:$0xf]
      %v2081 = vld [vmem:[%s3 + $0x38] sm:$0xf]
      %v2082 = vld [vmem:[%s3 + $0x3c] sm:$0xf]
      %v2083 = vld [vmem:[#allocation3 + $0x4] sm:$0x1]
      %s2084 = scalar_lea.vmem %s3, 64
      %v2085 = vld [vmem:[%s2084] sm:$0xf]
      %v2086 = vld [vmem:[%s2084 + $0x4] sm:$0xf]
      %v2087 = vld [vmem:[%s2084 + $0x8] sm:$0xf]
      %v2088 = vld [vmem:[%s2084 + $0xc] sm:$0xf]
      %v2089 = vld [vmem:[%s2084 + $0x10] sm:$0xf]
      %v2090 = vld [vmem:[%s2084 + $0x14] sm:$0xf]
      %v2091 = vld [vmem:[%s2084 + $0x18] sm:$0xf]
      %v2092 = vld [vmem:[%s2084 + $0x1c] sm:$0xf]
      %v2093 = vld [vmem:[%s2084 + $0x20] sm:$0xf]
      %v2094 = vld [vmem:[%s2084 + $0x24] sm:$0xf]
      %v2095 = vld [vmem:[%s2084 + $0x28] sm:$0xf]
      %v2096 = vld [vmem:[%s2084 + $0x2c] sm:$0xf]
      %v2097 = vld [vmem:[%s2084 + $0x30] sm:$0xf]
      %v2098 = vld [vmem:[%s2084 + $0x34] sm:$0xf]
      %v2099 = vld [vmem:[%s2084 + $0x38] sm:$0xf]
      %v2100 = vld [vmem:[%s2084 + $0x3c] sm:$0xf]
      %v2103 = vunpack.c.l.b16 %v2066
      %v2104 = vunpack.c.l.b16 %v2083
      %v2105 = vpack.c.b16 %v2104, %v2103
      %v2107 = vshrl.u32 %v2105, 16
      %v2109 = vshll.u32 %v2105, 16
      %v2111 = vrot.slane %v2109, 1
      %v2112 = vor.u32 %v2107, %v2111
      %v2130 = vunpack.c.l.b16 %v2085
      %v2131 = vunpack.c.l.b16 %v2086
      %v2132 = vunpack.c.l.b16 %v2087
      %v2133 = vunpack.c.l.b16 %v2088
      %v2134 = vunpack.c.l.b16 %v2089
      %v2135 = vunpack.c.l.b16 %v2090
      %v2136 = vunpack.c.l.b16 %v2091
      %v2137 = vunpack.c.l.b16 %v2092
      %v2138 = vunpack.c.l.b16 %v2093
      %v2139 = vunpack.c.l.b16 %v2094
      %v2140 = vunpack.c.l.b16 %v2095
      %v2141 = vunpack.c.l.b16 %v2096
      %v2142 = vunpack.c.l.b16 %v2097
      %v2143 = vunpack.c.l.b16 %v2098
      %v2144 = vunpack.c.l.b16 %v2099
      %v2145 = vunpack.c.l.b16 %v2100
      %v2146 = vpack.c.b16 %v2131, %v2130
      %v2147 = vpack.c.b16 %v2133, %v2132
      %v2148 = vpack.c.b16 %v2135, %v2134
      %v2149 = vpack.c.b16 %v2137, %v2136
      %v2150 = vpack.c.b16 %v2139, %v2138
      %v2151 = vpack.c.b16 %v2141, %v2140
      %v2152 = vpack.c.b16 %v2143, %v2142
      %v2153 = vpack.c.b16 %v2145, %v2144
      %2162 = vmatpush.bf16.msra.mxu0 %v2153
      %2163 = vmatpush.bf16.msra.mxu0 %v2152
      %2164 = vmatpush.bf16.msra.mxu0 %v2151
      %2165 = vmatpush.bf16.msra.mxu0 %v2150
      %2166 = vmatpush.bf16.msra.mxu0 %v2149
      %2167 = vmatpush.bf16.msra.mxu0 %v2148
      %2168 = vmatpush.bf16.msra.mxu0 %v2147
      %2169 = vmatpush.bf16.msra.mxu0 %v2146
      %2170 = vmatmul.bf16.gmra.mxu0 %v2112
      %v2171 = vpop.f32.mrf.mxu0
      %v2172 = vadd.f32 0.0, %v2171
      %v2173 = vpop.f32.mrf.mxu0
      %2174 = vdwg.mxu0
      %v2191 = vunpack.c.l.b16 %v2067
      %v2192 = vunpack.c.l.b16 %v2068
      %v2193 = vunpack.c.l.b16 %v2069
      %v2194 = vunpack.c.l.b16 %v2070
      %v2195 = vunpack.c.l.b16 %v2071
      %v2196 = vunpack.c.l.b16 %v2072
      %v2197 = vunpack.c.l.b16 %v2073
      %v2198 = vunpack.c.l.b16 %v2074
      %v2199 = vunpack.c.l.b16 %v2075
      %v2200 = vunpack.c.l.b16 %v2076
      %v2201 = vunpack.c.l.b16 %v2077
      %v2202 = vunpack.c.l.b16 %v2078
      %v2203 = vunpack.c.l.b16 %v2079
      %v2204 = vunpack.c.l.b16 %v2080
      %v2205 = vunpack.c.l.b16 %v2081
      %v2206 = vunpack.c.l.b16 %v2082
      %v2207 = vpack.c.b16 %v2192, %v2191
      %v2208 = vpack.c.b16 %v2194, %v2193
      %v2209 = vpack.c.b16 %v2196, %v2195
      %v2210 = vpack.c.b16 %v2198, %v2197
      %v2211 = vpack.c.b16 %v2200, %v2199
      %v2212 = vpack.c.b16 %v2202, %v2201
      %v2213 = vpack.c.b16 %v2204, %v2203
      %v2214 = vpack.c.b16 %v2206, %v2205
      %2223 = vmatpush.bf16.msra.mxu0 %v2214
      %2224 = vmatpush.bf16.msra.mxu0 %v2213
      %2225 = vmatpush.bf16.msra.mxu0 %v2212
      %2226 = vmatpush.bf16.msra.mxu0 %v2211
      %2227 = vmatpush.bf16.msra.mxu0 %v2210
      %2228 = vmatpush.bf16.msra.mxu0 %v2209
      %2229 = vmatpush.bf16.msra.mxu0 %v2208
      %2230 = vmatpush.bf16.msra.mxu0 %v2207
      %2231 = vmatmul.bf16.gmra.mxu0 %v2066
      %v2232 = vpop.f32.mrf.mxu0
      %v2233 = vadd.f32 %v2172, %v2232
      %v2234 = vpop.f32.mrf.mxu0
      %2235 = vdwg.mxu0
      %v2236 = vld [vmem:[#allocation3] sm:$0xe]
      %s2237 = scalar_lea.vmem %s3, 128
      %v2238 = vld [vmem:[%s2237] sm:$0xf]
      %v2239 = vld [vmem:[%s2237 + $0x4] sm:$0xf]
      %v2240 = vld [vmem:[%s2237 + $0x8] sm:$0xf]
      %v2241 = vld [vmem:[%s2237 + $0xc] sm:$0xf]
      %v2242 = vld [vmem:[%s2237 + $0x10] sm:$0xf]
      %v2243 = vld [vmem:[%s2237 + $0x14] sm:$0xf]
      %v2244 = vld [vmem:[%s2237 + $0x18] sm:$0xf]
      %v2245 = vld [vmem:[%s2237 + $0x1c] sm:$0xf]
      %v2246 = vld [vmem:[%s2237 + $0x20] sm:$0xf]
      %v2247 = vld [vmem:[%s2237 + $0x24] sm:$0xf]
      %v2248 = vld [vmem:[%s2237 + $0x28] sm:$0xf]
      %v2249 = vld [vmem:[%s2237 + $0x2c] sm:$0xf]
      %v2250 = vld [vmem:[%s2237 + $0x30] sm:$0xf]
      %v2251 = vld [vmem:[%s2237 + $0x34] sm:$0xf]
      %v2252 = vld [vmem:[%s2237 + $0x38] sm:$0xf]
      %v2253 = vld [vmem:[%s2237 + $0x3c] sm:$0xf]
      %v2255 = vunpack.c.l.b16 %v2236
      %v2256 = vpack.c.b16 %v2104, %v2255
      %v2257 = vrot.slane %v2256, 1
      %v2275 = vunpack.c.l.b16 %v2238
      %v2276 = vunpack.c.l.b16 %v2239
      %v2277 = vunpack.c.l.b16 %v2240
      %v2278 = vunpack.c.l.b16 %v2241
      %v2279 = vunpack.c.l.b16 %v2242
      %v2280 = vunpack.c.l.b16 %v2243
      %v2281 = vunpack.c.l.b16 %v2244
      %v2282 = vunpack.c.l.b16 %v2245
      %v2283 = vunpack.c.l.b16 %v2246
      %v2284 = vunpack.c.l.b16 %v2247
      %v2285 = vunpack.c.l.b16 %v2248
      %v2286 = vunpack.c.l.b16 %v2249
      %v2287 = vunpack.c.l.b16 %v2250
      %v2288 = vunpack.c.l.b16 %v2251
      %v2289 = vunpack.c.l.b16 %v2252
      %v2290 = vunpack.c.l.b16 %v2253
      %v2291 = vpack.c.b16 %v2276, %v2275
      %v2292 = vpack.c.b16 %v2278, %v2277
      %v2293 = vpack.c.b16 %v2280, %v2279
      %v2294 = vpack.c.b16 %v2282, %v2281
      %v2295 = vpack.c.b16 %v2284, %v2283
      %v2296 = vpack.c.b16 %v2286, %v2285
      %v2297 = vpack.c.b16 %v2288, %v2287
      %v2298 = vpack.c.b16 %v2290, %v2289
      %2307 = vmatpush.bf16.msra.mxu0 %v2298
      %2308 = vmatpush.bf16.msra.mxu0 %v2297
      %2309 = vmatpush.bf16.msra.mxu0 %v2296
      %2310 = vmatpush.bf16.msra.mxu0 %v2295
      %2311 = vmatpush.bf16.msra.mxu0 %v2294
      %2312 = vmatpush.bf16.msra.mxu0 %v2293
      %2313 = vmatpush.bf16.msra.mxu0 %v2292
      %2314 = vmatpush.bf16.msra.mxu0 %v2291
      %2315 = vmatmul.bf16.gmra.mxu0 %v2257
      %v2316 = vpop.f32.mrf.mxu0
      %v2317 = vadd.f32 0.0, %v2316
      %v2318 = vpop.f32.mrf.mxu0
      %2319 = vdwg.mxu0
      %v2320 = vadd.f32 %v2233, %v2317
      %v2321 = vld [vmem:[#allocation3 + $0x4] sm:$0x3]
      %s2322 = scalar_lea.vmem %s3, 192
      %v2323 = vld [vmem:[%s2322] sm:$0xf]
      %v2324 = vld [vmem:[%s2322 + $0x4] sm:$0xf]
      %v2325 = vld [vmem:[%s2322 + $0x8] sm:$0xf]
      %v2326 = vld [vmem:[%s2322 + $0xc] sm:$0xf]
      %v2327 = vld [vmem:[%s2322 + $0x10] sm:$0xf]
      %v2328 = vld [vmem:[%s2322 + $0x14] sm:$0xf]
      %v2329 = vld [vmem:[%s2322 + $0x18] sm:$0xf]
      %v2330 = vld [vmem:[%s2322 + $0x1c] sm:$0xf]
      %v2331 = vld [vmem:[%s2322 + $0x20] sm:$0xf]
      %v2332 = vld [vmem:[%s2322 + $0x24] sm:$0xf]
      %v2333 = vld [vmem:[%s2322 + $0x28] sm:$0xf]
      %v2334 = vld [vmem:[%s2322 + $0x2c] sm:$0xf]
      %v2335 = vld [vmem:[%s2322 + $0x30] sm:$0xf]
      %v2336 = vld [vmem:[%s2322 + $0x34] sm:$0xf]
      %v2337 = vld [vmem:[%s2322 + $0x38] sm:$0xf]
      %v2338 = vld [vmem:[%s2322 + $0x3c] sm:$0xf]
      %v2340 = vunpack.c.l.b16 %v2321
      %v2341 = vpack.c.b16 %v2340, %v2255
      %v2343 = vshrl.u32 %v2341, 16
      %v2345 = vrot.slane %v2343, 1
      %v2346 = vshll.u32 %v2341, 16
      %v2348 = vrot.slane %v2346, 2
      %v2349 = vor.u32 %v2345, %v2348
      %v2367 = vunpack.c.l.b16 %v2323
      %v2368 = vunpack.c.l.b16 %v2324
      %v2369 = vunpack.c.l.b16 %v2325
      %v2370 = vunpack.c.l.b16 %v2326
      %v2371 = vunpack.c.l.b16 %v2327
      %v2372 = vunpack.c.l.b16 %v2328
      %v2373 = vunpack.c.l.b16 %v2329
      %v2374 = vunpack.c.l.b16 %v2330
      %v2375 = vunpack.c.l.b16 %v2331
      %v2376 = vunpack.c.l.b16 %v2332
      %v2377 = vunpack.c.l.b16 %v2333
      %v2378 = vunpack.c.l.b16 %v2334
      %v2379 = vunpack.c.l.b16 %v2335
      %v2380 = vunpack.c.l.b16 %v2336
      %v2381 = vunpack.c.l.b16 %v2337
      %v2382 = vunpack.c.l.b16 %v2338
      %v2383 = vpack.c.b16 %v2368, %v2367
      %v2384 = vpack.c.b16 %v2370, %v2369
      %v2385 = vpack.c.b16 %v2372, %v2371
      %v2386 = vpack.c.b16 %v2374, %v2373
      %v2387 = vpack.c.b16 %v2376, %v2375
      %v2388 = vpack.c.b16 %v2378, %v2377
      %v2389 = vpack.c.b16 %v2380, %v2379
      %v2390 = vpack.c.b16 %v2382, %v2381
      %2399 = vmatpush.bf16.msra.mxu0 %v2390
      %2400 = vmatpush.bf16.msra.mxu0 %v2389
      %2401 = vmatpush.bf16.msra.mxu0 %v2388
      %2402 = vmatpush.bf16.msra.mxu0 %v2387
      %2403 = vmatpush.bf16.msra.mxu0 %v2386
      %2404 = vmatpush.bf16.msra.mxu0 %v2385
      %2405 = vmatpush.bf16.msra.mxu0 %v2384
      %2406 = vmatpush.bf16.msra.mxu0 %v2383
      %2407 = vmatmul.bf16.gmra.mxu0 %v2349
      %v2408 = vpop.f32.mrf.mxu0
      %v2409 = vadd.f32 0.0, %v2408
      %v2410 = vpop.f32.mrf.mxu0
      %2411 = vdwg.mxu0
      %v2412 = vadd.f32 %v2320, %v2409
      %v2413 = vld [vmem:[#allocation3] sm:$0xc]
      %s2414 = scalar_lea.vmem %s3, 256
      %v2415 = vld [vmem:[%s2414] sm:$0xf]
      %v2416 = vld [vmem:[%s2414 + $0x4] sm:$0xf]
      %v2417 = vld [vmem:[%s2414 + $0x8] sm:$0xf]
      %v2418 = vld [vmem:[%s2414 + $0xc] sm:$0xf]
      %v2419 = vld [vmem:[%s2414 + $0x10] sm:$0xf]
      %v2420 = vld [vmem:[%s2414 + $0x14] sm:$0xf]
      %v2421 = vld [vmem:[%s2414 + $0x18] sm:$0xf]
      %v2422 = vld [vmem:[%s2414 + $0x1c] sm:$0xf]
      %v2423 = vld [vmem:[%s2414 + $0x20] sm:$0xf]
      %v2424 = vld [vmem:[%s2414 + $0x24] sm:$0xf]
      %v2425 = vld [vmem:[%s2414 + $0x28] sm:$0xf]
      %v2426 = vld [vmem:[%s2414 + $0x2c] sm:$0xf]
      %v2427 = vld [vmem:[%s2414 + $0x30] sm:$0xf]
      %v2428 = vld [vmem:[%s2414 + $0x34] sm:$0xf]
      %v2429 = vld [vmem:[%s2414 + $0x38] sm:$0xf]
      %v2430 = vld [vmem:[%s2414 + $0x3c] sm:$0xf]
      %v2432 = vunpack.c.l.b16 %v2413
      %v2433 = vpack.c.b16 %v2340, %v2432
      %v2434 = vrot.slane %v2433, 2
      %v2452 = vunpack.c.l.b16 %v2415
      %v2453 = vunpack.c.l.b16 %v2416
      %v2454 = vunpack.c.l.b16 %v2417
      %v2455 = vunpack.c.l.b16 %v2418
      %v2456 = vunpack.c.l.b16 %v2419
      %v2457 = vunpack.c.l.b16 %v2420
      %v2458 = vunpack.c.l.b16 %v2421
      %v2459 = vunpack.c.l.b16 %v2422
      %v2460 = vunpack.c.l.b16 %v2423
      %v2461 = vunpack.c.l.b16 %v2424
      %v2462 = vunpack.c.l.b16 %v2425
      %v2463 = vunpack.c.l.b16 %v2426
      %v2464 = vunpack.c.l.b16 %v2427
      %v2465 = vunpack.c.l.b16 %v2428
      %v2466 = vunpack.c.l.b16 %v2429
      %v2467 = vunpack.c.l.b16 %v2430
      %v2468 = vpack.c.b16 %v2453, %v2452
      %v2469 = vpack.c.b16 %v2455, %v2454
      %v2470 = vpack.c.b16 %v2457, %v2456
      %v2471 = vpack.c.b16 %v2459, %v2458
      %v2472 = vpack.c.b16 %v2461, %v2460
      %v2473 = vpack.c.b16 %v2463, %v2462
      %v2474 = vpack.c.b16 %v2465, %v2464
      %v2475 = vpack.c.b16 %v2467, %v2466
      %2484 = vmatpush.bf16.msra.mxu0 %v2475
      %2485 = vmatpush.bf16.msra.mxu0 %v2474
      %2486 = vmatpush.bf16.msra.mxu0 %v2473
      %2487 = vmatpush.bf16.msra.mxu0 %v2472
      %2488 = vmatpush.bf16.msra.mxu0 %v2471
      %2489 = vmatpush.bf16.msra.mxu0 %v2470
      %2490 = vmatpush.bf16.msra.mxu0 %v2469
      %2491 = vmatpush.bf16.msra.mxu0 %v2468
      %2492 = vmatmul.bf16.gmra.mxu0 %v2434
      %v2493 = vpop.f32.mrf.mxu0
      %v2494 = vadd.f32 0.0, %v2493
      %v2495 = vpop.f32.mrf.mxu0
      %2496 = vdwg.mxu0
      %v2497 = vadd.f32 %v2412, %v2494
      %v2498 = vld [vmem:[#allocation3 + $0x4] sm:$0x7]
      %s2499 = scalar_lea.vmem %s3, 320
      %v2500 = vld [vmem:[%s2499] sm:$0xf]
      %v2501 = vld [vmem:[%s2499 + $0x4] sm:$0xf]
      %v2502 = vld [vmem:[%s2499 + $0x8] sm:$0xf]
      %v2503 = vld [vmem:[%s2499 + $0xc] sm:$0xf]
      %v2504 = vld [vmem:[%s2499 + $0x10] sm:$0xf]
      %v2505 = vld [vmem:[%s2499 + $0x14] sm:$0xf]
      %v2506 = vld [vmem:[%s2499 + $0x18] sm:$0xf]
      %v2507 = vld [vmem:[%s2499 + $0x1c] sm:$0xf]
      %v2508 = vld [vmem:[%s2499 + $0x20] sm:$0xf]
      %v2509 = vld [vmem:[%s2499 + $0x24] sm:$0xf]
      %v2510 = vld [vmem:[%s2499 + $0x28] sm:$0xf]
      %v2511 = vld [vmem:[%s2499 + $0x2c] sm:$0xf]
      %v2512 = vld [vmem:[%s2499 + $0x30] sm:$0xf]
      %v2513 = vld [vmem:[%s2499 + $0x34] sm:$0xf]
      %v2514 = vld [vmem:[%s2499 + $0x38] sm:$0xf]
      %v2515 = vld [vmem:[%s2499 + $0x3c] sm:$0xf]
      %v2517 = vunpack.c.l.b16 %v2498
      %v2518 = vpack.c.b16 %v2517, %v2432
      %v2520 = vshrl.u32 %v2518, 16
      %v2522 = vrot.slane %v2520, 2
      %v2523 = vshll.u32 %v2518, 16
      %v2525 = vrot.slane %v2523, 3
      %v2526 = vor.u32 %v2522, %v2525
      %v2544 = vunpack.c.l.b16 %v2500
      %v2545 = vunpack.c.l.b16 %v2501
      %v2546 = vunpack.c.l.b16 %v2502
      %v2547 = vunpack.c.l.b16 %v2503
      %v2548 = vunpack.c.l.b16 %v2504
      %v2549 = vunpack.c.l.b16 %v2505
      %v2550 = vunpack.c.l.b16 %v2506
      %v2551 = vunpack.c.l.b16 %v2507
      %v2552 = vunpack.c.l.b16 %v2508
      %v2553 = vunpack.c.l.b16 %v2509
      %v2554 = vunpack.c.l.b16 %v2510
      %v2555 = vunpack.c.l.b16 %v2511
      %v2556 = vunpack.c.l.b16 %v2512
      %v2557 = vunpack.c.l.b16 %v2513
      %v2558 = vunpack.c.l.b16 %v2514
      %v2559 = vunpack.c.l.b16 %v2515
      %v2560 = vpack.c.b16 %v2545, %v2544
      %v2561 = vpack.c.b16 %v2547, %v2546
      %v2562 = vpack.c.b16 %v2549, %v2548
      %v2563 = vpack.c.b16 %v2551, %v2550
      %v2564 = vpack.c.b16 %v2553, %v2552
      %v2565 = vpack.c.b16 %v2555, %v2554
      %v2566 = vpack.c.b16 %v2557, %v2556
      %v2567 = vpack.c.b16 %v2559, %v2558
      %2576 = vmatpush.bf16.msra.mxu0 %v2567
      %2577 = vmatpush.bf16.msra.mxu0 %v2566
      %2578 = vmatpush.bf16.msra.mxu0 %v2565
      %2579 = vmatpush.bf16.msra.mxu0 %v2564
      %2580 = vmatpush.bf16.msra.mxu0 %v2563
      %2581 = vmatpush.bf16.msra.mxu0 %v2562
      %2582 = vmatpush.bf16.msra.mxu0 %v2561
      %2583 = vmatpush.bf16.msra.mxu0 %v2560
      %2584 = vmatmul.bf16.gmra.mxu0 %v2526
      %v2585 = vpop.f32.mrf.mxu0
      %v2586 = vadd.f32 0.0, %v2585
      %v2587 = vpop.f32.mrf.mxu0
      %2588 = vdwg.mxu0
      %v2589 = vadd.f32 %v2497, %v2586
      %v2590 = vld [vmem:[#allocation3] sm:$0x8]
      %s2591 = scalar_lea.vmem %s3, 384
      %v2592 = vld [vmem:[%s2591] sm:$0xf]
      %v2593 = vld [vmem:[%s2591 + $0x4] sm:$0xf]
      %v2594 = vld [vmem:[%s2591 + $0x8] sm:$0xf]
      %v2595 = vld [vmem:[%s2591 + $0xc] sm:$0xf]
      %v2596 = vld [vmem:[%s2591 + $0x10] sm:$0xf]
      %v2597 = vld [vmem:[%s2591 + $0x14] sm:$0xf]
      %v2598 = vld [vmem:[%s2591 + $0x18] sm:$0xf]
      %v2599 = vld [vmem:[%s2591 + $0x1c] sm:$0xf]
      %v2600 = vld [vmem:[%s2591 + $0x20] sm:$0xf]
      %v2601 = vld [vmem:[%s2591 + $0x24] sm:$0xf]
      %v2602 = vld [vmem:[%s2591 + $0x28] sm:$0xf]
      %v2603 = vld [vmem:[%s2591 + $0x2c] sm:$0xf]
      %v2604 = vld [vmem:[%s2591 + $0x30] sm:$0xf]
      %v2605 = vld [vmem:[%s2591 + $0x34] sm:$0xf]
      %v2606 = vld [vmem:[%s2591 + $0x38] sm:$0xf]
      %v2607 = vld [vmem:[%s2591 + $0x3c] sm:$0xf]
      %v2609 = vunpack.c.l.b16 %v2590
      %v2610 = vpack.c.b16 %v2517, %v2609
      %v2611 = vrot.slane %v2610, 3
      %v2629 = vunpack.c.l.b16 %v2592
      %v2630 = vunpack.c.l.b16 %v2593
      %v2631 = vunpack.c.l.b16 %v2594
      %v2632 = vunpack.c.l.b16 %v2595
      %v2633 = vunpack.c.l.b16 %v2596
      %v2634 = vunpack.c.l.b16 %v2597
      %v2635 = vunpack.c.l.b16 %v2598
      %v2636 = vunpack.c.l.b16 %v2599
      %v2637 = vunpack.c.l.b16 %v2600
      %v2638 = vunpack.c.l.b16 %v2601
      %v2639 = vunpack.c.l.b16 %v2602
      %v2640 = vunpack.c.l.b16 %v2603
      %v2641 = vunpack.c.l.b16 %v2604
      %v2642 = vunpack.c.l.b16 %v2605
      %v2643 = vunpack.c.l.b16 %v2606
      %v2644 = vunpack.c.l.b16 %v2607
      %v2645 = vpack.c.b16 %v2630, %v2629
      %v2646 = vpack.c.b16 %v2632, %v2631
      %v2647 = vpack.c.b16 %v2634, %v2633
      %v2648 = vpack.c.b16 %v2636, %v2635
      %v2649 = vpack.c.b16 %v2638, %v2637
      %v2650 = vpack.c.b16 %v2640, %v2639
      %v2651 = vpack.c.b16 %v2642, %v2641
      %v2652 = vpack.c.b16 %v2644, %v2643
      %2661 = vmatpush.bf16.msra.mxu0 %v2652
      %2662 = vmatpush.bf16.msra.mxu0 %v2651
      %2663 = vmatpush.bf16.msra.mxu0 %v2650
      %2664 = vmatpush.bf16.msra.mxu0 %v2649
      %2665 = vmatpush.bf16.msra.mxu0 %v2648
      %2666 = vmatpush.bf16.msra.mxu0 %v2647
      %2667 = vmatpush.bf16.msra.mxu0 %v2646
      %2668 = vmatpush.bf16.msra.mxu0 %v2645
      %2669 = vmatmul.bf16.gmra.mxu0 %v2611
      %v2670 = vpop.f32.mrf.mxu0
      %v2671 = vadd.f32 0.0, %v2670
      %v2672 = vpop.f32.mrf.mxu0
      %2673 = vdwg.mxu0
      %v2674 = vadd.f32 %v2589, %v2671
      %v2675 = vld [vmem:[#allocation3 + $0x4] sm:$0xf]
      %s2676 = scalar_lea.vmem %s3, 448
      %v2677 = vld [vmem:[%s2676] sm:$0xf]
      %v2678 = vld [vmem:[%s2676 + $0x4] sm:$0xf]
      %v2679 = vld [vmem:[%s2676 + $0x8] sm:$0xf]
      %v2680 = vld [vmem:[%s2676 + $0xc] sm:$0xf]
      %v2681 = vld [vmem:[%s2676 + $0x10] sm:$0xf]
      %v2682 = vld [vmem:[%s2676 + $0x14] sm:$0xf]
      %v2683 = vld [vmem:[%s2676 + $0x18] sm:$0xf]
      %v2684 = vld [vmem:[%s2676 + $0x1c] sm:$0xf]
      %v2685 = vld [vmem:[%s2676 + $0x20] sm:$0xf]
      %v2686 = vld [vmem:[%s2676 + $0x24] sm:$0xf]
      %v2687 = vld [vmem:[%s2676 + $0x28] sm:$0xf]
      %v2688 = vld [vmem:[%s2676 + $0x2c] sm:$0xf]
      %v2689 = vld [vmem:[%s2676 + $0x30] sm:$0xf]
      %v2690 = vld [vmem:[%s2676 + $0x34] sm:$0xf]
      %v2691 = vld [vmem:[%s2676 + $0x38] sm:$0xf]
      %v2692 = vld [vmem:[%s2676 + $0x3c] sm:$0xf]
      %v2694 = vunpack.c.l.b16 %v2675
      %v2695 = vpack.c.b16 %v2694, %v2609
      %v2697 = vshrl.u32 %v2695, 16
      %v2699 = vrot.slane %v2697, 3
      %v2700 = vshll.u32 %v2695, 16
      %v2702 = vrot.slane %v2700, 4
      %v2703 = vor.u32 %v2699, %v2702
      %v2721 = vunpack.c.l.b16 %v2677
      %v2722 = vunpack.c.l.b16 %v2678
      %v2723 = vunpack.c.l.b16 %v2679
      %v2724 = vunpack.c.l.b16 %v2680
      %v2725 = vunpack.c.l.b16 %v2681
      %v2726 = vunpack.c.l.b16 %v2682
      %v2727 = vunpack.c.l.b16 %v2683
      %v2728 = vunpack.c.l.b16 %v2684
      %v2729 = vunpack.c.l.b16 %v2685
      %v2730 = vunpack.c.l.b16 %v2686
      %v2731 = vunpack.c.l.b16 %v2687
      %v2732 = vunpack.c.l.b16 %v2688
      %v2733 = vunpack.c.l.b16 %v2689
      %v2734 = vunpack.c.l.b16 %v2690
      %v2735 = vunpack.c.l.b16 %v2691
      %v2736 = vunpack.c.l.b16 %v2692
      %v2737 = vpack.c.b16 %v2722, %v2721
      %v2738 = vpack.c.b16 %v2724, %v2723
      %v2739 = vpack.c.b16 %v2726, %v2725
      %v2740 = vpack.c.b16 %v2728, %v2727
      %v2741 = vpack.c.b16 %v2730, %v2729
      %v2742 = vpack.c.b16 %v2732, %v2731
      %v2743 = vpack.c.b16 %v2734, %v2733
      %v2744 = vpack.c.b16 %v2736, %v2735
      %2753 = vmatpush.bf16.msra.mxu0 %v2744
      %2754 = vmatpush.bf16.msra.mxu0 %v2743
      %2755 = vmatpush.bf16.msra.mxu0 %v2742
      %2756 = vmatpush.bf16.msra.mxu0 %v2741
      %2757 = vmatpush.bf16.msra.mxu0 %v2740
      %2758 = vmatpush.bf16.msra.mxu0 %v2739
      %2759 = vmatpush.bf16.msra.mxu0 %v2738
      %2760 = vmatpush.bf16.msra.mxu0 %v2737
      %2761 = vmatmul.bf16.gmra.mxu0 %v2703
      %v2762 = vpop.f32.mrf.mxu0
      %v2763 = vadd.f32 0.0, %v2762
      %v2764 = vpop.f32.mrf.mxu0
      %2765 = vdwg.mxu0
      %v2766 = vadd.f32 %v2674, %v2763
      %s2767 = scalar_lea.vmem %s3, 512
      %v2768 = vld [vmem:[%s2767] sm:$0xf]
      %v2769 = vld [vmem:[%s2767 + $0x4] sm:$0xf]
      %v2770 = vld [vmem:[%s2767 + $0x8] sm:$0xf]
      %v2771 = vld [vmem:[%s2767 + $0xc] sm:$0xf]
      %v2772 = vld [vmem:[%s2767 + $0x10] sm:$0xf]
      %v2773 = vld [vmem:[%s2767 + $0x14] sm:$0xf]
      %v2774 = vld [vmem:[%s2767 + $0x18] sm:$0xf]
      %v2775 = vld [vmem:[%s2767 + $0x1c] sm:$0xf]
      %v2776 = vld [vmem:[%s2767 + $0x20] sm:$0xf]
      %v2777 = vld [vmem:[%s2767 + $0x24] sm:$0xf]
      %v2778 = vld [vmem:[%s2767 + $0x28] sm:$0xf]
      %v2779 = vld [vmem:[%s2767 + $0x2c] sm:$0xf]
      %v2780 = vld [vmem:[%s2767 + $0x30] sm:$0xf]
      %v2781 = vld [vmem:[%s2767 + $0x34] sm:$0xf]
      %v2782 = vld [vmem:[%s2767 + $0x38] sm:$0xf]
      %v2783 = vld [vmem:[%s2767 + $0x3c] sm:$0xf]
      %v2800 = vunpack.c.l.b16 %v2768
      %v2801 = vunpack.c.l.b16 %v2769
      %v2802 = vunpack.c.l.b16 %v2770
      %v2803 = vunpack.c.l.b16 %v2771
      %v2804 = vunpack.c.l.b16 %v2772
      %v2805 = vunpack.c.l.b16 %v2773
      %v2806 = vunpack.c.l.b16 %v2774
      %v2807 = vunpack.c.l.b16 %v2775
      %v2808 = vunpack.c.l.b16 %v2776
      %v2809 = vunpack.c.l.b16 %v2777
      %v2810 = vunpack.c.l.b16 %v2778
      %v2811 = vunpack.c.l.b16 %v2779
      %v2812 = vunpack.c.l.b16 %v2780
      %v2813 = vunpack.c.l.b16 %v2781
      %v2814 = vunpack.c.l.b16 %v2782
      %v2815 = vunpack.c.l.b16 %v2783
      %v2816 = vpack.c.b16 %v2801, %v2800
      %v2817 = vpack.c.b16 %v2803, %v2802
      %v2818 = vpack.c.b16 %v2805, %v2804
      %v2819 = vpack.c.b16 %v2807, %v2806
      %v2820 = vpack.c.b16 %v2809, %v2808
      %v2821 = vpack.c.b16 %v2811, %v2810
      %v2822 = vpack.c.b16 %v2813, %v2812
      %v2823 = vpack.c.b16 %v2815, %v2814
      %2832 = vmatpush.bf16.msra.mxu0 %v2823
      %2833 = vmatpush.bf16.msra.mxu0 %v2822
      %2834 = vmatpush.bf16.msra.mxu0 %v2821
      %2835 = vmatpush.bf16.msra.mxu0 %v2820
      %2836 = vmatpush.bf16.msra.mxu0 %v2819
      %2837 = vmatpush.bf16.msra.mxu0 %v2818
      %2838 = vmatpush.bf16.msra.mxu0 %v2817
      %2839 = vmatpush.bf16.msra.mxu0 %v2816
      %2840 = vmatmul.bf16.gmra.mxu0 %v2675
      %v2841 = vpop.f32.mrf.mxu0
      %v2842 = vadd.f32 0.0, %v2841
      %v2843 = vpop.f32.mrf.mxu0
      %2844 = vdwg.mxu0
      %v2845 = vadd.f32 %v2766, %v2842
      %v2846 = vld [vmem:[#allocation3 + $0x4] sm:$0xf]
      %v2847 = vld [vmem:[#allocation3 + $0x8] sm:$0x1]
      %s2848 = scalar_lea.vmem %s3, 576
      %v2849 = vld [vmem:[%s2848] sm:$0xf]
      %v2850 = vld [vmem:[%s2848 + $0x4] sm:$0xf]
      %v2851 = vld [vmem:[%s2848 + $0x8] sm:$0xf]
      %v2852 = vld [vmem:[%s2848 + $0xc] sm:$0xf]
      %v2853 = vld [vmem:[%s2848 + $0x10] sm:$0xf]
      %v2854 = vld [vmem:[%s2848 + $0x14] sm:$0xf]
      %v2855 = vld [vmem:[%s2848 + $0x18] sm:$0xf]
      %v2856 = vld [vmem:[%s2848 + $0x1c] sm:$0xf]
      %v2857 = vld [vmem:[%s2848 + $0x20] sm:$0xf]
      %v2858 = vld [vmem:[%s2848 + $0x24] sm:$0xf]
      %v2859 = vld [vmem:[%s2848 + $0x28] sm:$0xf]
      %v2860 = vld [vmem:[%s2848 + $0x2c] sm:$0xf]
      %v2861 = vld [vmem:[%s2848 + $0x30] sm:$0xf]
      %v2862 = vld [vmem:[%s2848 + $0x34] sm:$0xf]
      %v2863 = vld [vmem:[%s2848 + $0x38] sm:$0xf]
      %v2864 = vld [vmem:[%s2848 + $0x3c] sm:$0xf]
      %v2867 = vunpack.c.l.b16 %v2846
      %v2868 = vunpack.c.l.b16 %v2847
      %v2869 = vpack.c.b16 %v2868, %v2867
      %v2871 = vshrl.u32 %v2869, 16
      %v2873 = vshll.u32 %v2869, 16
      %v2875 = vrot.slane %v2873, 1
      %v2876 = vor.u32 %v2871, %v2875
      %v2894 = vunpack.c.l.b16 %v2849
      %v2895 = vunpack.c.l.b16 %v2850
      %v2896 = vunpack.c.l.b16 %v2851
      %v2897 = vunpack.c.l.b16 %v2852
      %v2898 = vunpack.c.l.b16 %v2853
      %v2899 = vunpack.c.l.b16 %v2854
      %v2900 = vunpack.c.l.b16 %v2855
      %v2901 = vunpack.c.l.b16 %v2856
      %v2902 = vunpack.c.l.b16 %v2857
      %v2903 = vunpack.c.l.b16 %v2858
      %v2904 = vunpack.c.l.b16 %v2859
      %v2905 = vunpack.c.l.b16 %v2860
      %v2906 = vunpack.c.l.b16 %v2861
      %v2907 = vunpack.c.l.b16 %v2862
      %v2908 = vunpack.c.l.b16 %v2863
      %v2909 = vunpack.c.l.b16 %v2864
      %v2910 = vpack.c.b16 %v2895, %v2894
      %v2911 = vpack.c.b16 %v2897, %v2896
      %v2912 = vpack.c.b16 %v2899, %v2898
      %v2913 = vpack.c.b16 %v2901, %v2900
      %v2914 = vpack.c.b16 %v2903, %v2902
      %v2915 = vpack.c.b16 %v2905, %v2904
      %v2916 = vpack.c.b16 %v2907, %v2906
      %v2917 = vpack.c.b16 %v2909, %v2908
      %2926 = vmatpush.bf16.msra.mxu0 %v2917
      %2927 = vmatpush.bf16.msra.mxu0 %v2916
      %2928 = vmatpush.bf16.msra.mxu0 %v2915
      %2929 = vmatpush.bf16.msra.mxu0 %v2914
      %2930 = vmatpush.bf16.msra.mxu0 %v2913
      %2931 = vmatpush.bf16.msra.mxu0 %v2912
      %2932 = vmatpush.bf16.msra.mxu0 %v2911
      %2933 = vmatpush.bf16.msra.mxu0 %v2910
      %2934 = vmatmul.bf16.gmra.mxu0 %v2876
      %v2935 = vpop.f32.mrf.mxu0
      %v2936 = vadd.f32 0.0, %v2935
      %v2937 = vpop.f32.mrf.mxu0
      %2938 = vdwg.mxu0
      %v2939 = vadd.f32 %v2845, %v2936
      %v2940 = vld [vmem:[#allocation3 + $0x4] sm:$0xe]
      %s2941 = scalar_lea.vmem %s3, 640
      %v2942 = vld [vmem:[%s2941] sm:$0xf]
      %v2943 = vld [vmem:[%s2941 + $0x4] sm:$0xf]
      %v2944 = vld [vmem:[%s2941 + $0x8] sm:$0xf]
      %v2945 = vld [vmem:[%s2941 + $0xc] sm:$0xf]
      %v2946 = vld [vmem:[%s2941 + $0x10] sm:$0xf]
      %v2947 = vld [vmem:[%s2941 + $0x14] sm:$0xf]
      %v2948 = vld [vmem:[%s2941 + $0x18] sm:$0xf]
      %v2949 = vld [vmem:[%s2941 + $0x1c] sm:$0xf]
      %v2950 = vld [vmem:[%s2941 + $0x20] sm:$0xf]
      %v2951 = vld [vmem:[%s2941 + $0x24] sm:$0xf]
      %v2952 = vld [vmem:[%s2941 + $0x28] sm:$0xf]
      %v2953 = vld [vmem:[%s2941 + $0x2c] sm:$0xf]
      %v2954 = vld [vmem:[%s2941 + $0x30] sm:$0xf]
      %v2955 = vld [vmem:[%s2941 + $0x34] sm:$0xf]
      %v2956 = vld [vmem:[%s2941 + $0x38] sm:$0xf]
      %v2957 = vld [vmem:[%s2941 + $0x3c] sm:$0xf]
      %v2959 = vunpack.c.l.b16 %v2940
      %v2960 = vpack.c.b16 %v2868, %v2959
      %v2961 = vrot.slane %v2960, 1
      %v2979 = vunpack.c.l.b16 %v2942
      %v2980 = vunpack.c.l.b16 %v2943
      %v2981 = vunpack.c.l.b16 %v2944
      %v2982 = vunpack.c.l.b16 %v2945
      %v2983 = vunpack.c.l.b16 %v2946
      %v2984 = vunpack.c.l.b16 %v2947
      %v2985 = vunpack.c.l.b16 %v2948
      %v2986 = vunpack.c.l.b16 %v2949
      %v2987 = vunpack.c.l.b16 %v2950
      %v2988 = vunpack.c.l.b16 %v2951
      %v2989 = vunpack.c.l.b16 %v2952
      %v2990 = vunpack.c.l.b16 %v2953
      %v2991 = vunpack.c.l.b16 %v2954
      %v2992 = vunpack.c.l.b16 %v2955
      %v2993 = vunpack.c.l.b16 %v2956
      %v2994 = vunpack.c.l.b16 %v2957
      %v2995 = vpack.c.b16 %v2980, %v2979
      %v2996 = vpack.c.b16 %v2982, %v2981
      %v2997 = vpack.c.b16 %v2984, %v2983
      %v2998 = vpack.c.b16 %v2986, %v2985
      %v2999 = vpack.c.b16 %v2988, %v2987
      %v3000 = vpack.c.b16 %v2990, %v2989
      %v3001 = vpack.c.b16 %v2992, %v2991
      %v3002 = vpack.c.b16 %v2994, %v2993
      %3011 = vmatpush.bf16.msra.mxu0 %v3002
      %3012 = vmatpush.bf16.msra.mxu0 %v3001
      %3013 = vmatpush.bf16.msra.mxu0 %v3000
      %3014 = vmatpush.bf16.msra.mxu0 %v2999
      %3015 = vmatpush.bf16.msra.mxu0 %v2998
      %3016 = vmatpush.bf16.msra.mxu0 %v2997
      %3017 = vmatpush.bf16.msra.mxu0 %v2996
      %3018 = vmatpush.bf16.msra.mxu0 %v2995
      %3019 = vmatmul.bf16.gmra.mxu0 %v2961
      %v3020 = vpop.f32.mrf.mxu0
      %v3021 = vadd.f32 0.0, %v3020
      %v3022 = vpop.f32.mrf.mxu0
      %3023 = vdwg.mxu0
      %v3024 = vadd.f32 %v2939, %v3021
      %v3025 = vld [vmem:[#allocation3 + $0x8] sm:$0x3]
      %s3026 = scalar_lea.vmem %s3, 704
      %v3027 = vld [vmem:[%s3026] sm:$0xf]
      %v3028 = vld [vmem:[%s3026 + $0x4] sm:$0xf]
      %v3029 = vld [vmem:[%s3026 + $0x8] sm:$0xf]
      %v3030 = vld [vmem:[%s3026 + $0xc] sm:$0xf]
      %v3031 = vld [vmem:[%s3026 + $0x10] sm:$0xf]
      %v3032 = vld [vmem:[%s3026 + $0x14] sm:$0xf]
      %v3033 = vld [vmem:[%s3026 + $0x18] sm:$0xf]
      %v3034 = vld [vmem:[%s3026 + $0x1c] sm:$0xf]
      %v3035 = vld [vmem:[%s3026 + $0x20] sm:$0xf]
      %v3036 = vld [vmem:[%s3026 + $0x24] sm:$0xf]
      %v3037 = vld [vmem:[%s3026 + $0x28] sm:$0xf]
      %v3038 = vld [vmem:[%s3026 + $0x2c] sm:$0xf]
      %v3039 = vld [vmem:[%s3026 + $0x30] sm:$0xf]
      %v3040 = vld [vmem:[%s3026 + $0x34] sm:$0xf]
      %v3041 = vld [vmem:[%s3026 + $0x38] sm:$0xf]
      %v3042 = vld [vmem:[%s3026 + $0x3c] sm:$0xf]
      %v3044 = vunpack.c.l.b16 %v3025
      %v3045 = vpack.c.b16 %v3044, %v2959
      %v3047 = vshrl.u32 %v3045, 16
      %v3049 = vrot.slane %v3047, 1
      %v3050 = vshll.u32 %v3045, 16
      %v3052 = vrot.slane %v3050, 2
      %v3053 = vor.u32 %v3049, %v3052
      %v3071 = vunpack.c.l.b16 %v3027
      %v3072 = vunpack.c.l.b16 %v3028
      %v3073 = vunpack.c.l.b16 %v3029
      %v3074 = vunpack.c.l.b16 %v3030
      %v3075 = vunpack.c.l.b16 %v3031
      %v3076 = vunpack.c.l.b16 %v3032
      %v3077 = vunpack.c.l.b16 %v3033
      %v3078 = vunpack.c.l.b16 %v3034
      %v3079 = vunpack.c.l.b16 %v3035
      %v3080 = vunpack.c.l.b16 %v3036
      %v3081 = vunpack.c.l.b16 %v3037
      %v3082 = vunpack.c.l.b16 %v3038
      %v3083 = vunpack.c.l.b16 %v3039
      %v3084 = vunpack.c.l.b16 %v3040
      %v3085 = vunpack.c.l.b16 %v3041
      %v3086 = vunpack.c.l.b16 %v3042
      %v3087 = vpack.c.b16 %v3072, %v3071
      %v3088 = vpack.c.b16 %v3074, %v3073
      %v3089 = vpack.c.b16 %v3076, %v3075
      %v3090 = vpack.c.b16 %v3078, %v3077
      %v3091 = vpack.c.b16 %v3080, %v3079
      %v3092 = vpack.c.b16 %v3082, %v3081
      %v3093 = vpack.c.b16 %v3084, %v3083
      %v3094 = vpack.c.b16 %v3086, %v3085
      %3103 = vmatpush.bf16.msra.mxu0 %v3094
      %3104 = vmatpush.bf16.msra.mxu0 %v3093
      %3105 = vmatpush.bf16.msra.mxu0 %v3092
      %3106 = vmatpush.bf16.msra.mxu0 %v3091
      %3107 = vmatpush.bf16.msra.mxu0 %v3090
      %3108 = vmatpush.bf16.msra.mxu0 %v3089
      %3109 = vmatpush.bf16.msra.mxu0 %v3088
      %3110 = vmatpush.bf16.msra.mxu0 %v3087
      %3111 = vmatmul.bf16.gmra.mxu0 %v3053
      %v3112 = vpop.f32.mrf.mxu0
      %v3113 = vadd.f32 0.0, %v3112
      %v3114 = vpop.f32.mrf.mxu0
      %3115 = vdwg.mxu0
      %v3116 = vadd.f32 %v3024, %v3113
      %v3117 = vld [vmem:[#allocation3 + $0x4] sm:$0xc]
      %s3118 = scalar_lea.vmem %s3, 768
      %v3119 = vld [vmem:[%s3118] sm:$0xf]
      %v3120 = vld [vmem:[%s3118 + $0x4] sm:$0xf]
      %v3121 = vld [vmem:[%s3118 + $0x8] sm:$0xf]
      %v3122 = vld [vmem:[%s3118 + $0xc] sm:$0xf]
      %v3123 = vld [vmem:[%s3118 + $0x10] sm:$0xf]
      %v3124 = vld [vmem:[%s3118 + $0x14] sm:$0xf]
      %v3125 = vld [vmem:[%s3118 + $0x18] sm:$0xf]
      %v3126 = vld [vmem:[%s3118 + $0x1c] sm:$0xf]
      %v3127 = vld [vmem:[%s3118 + $0x20] sm:$0xf]
      %v3128 = vld [vmem:[%s3118 + $0x24] sm:$0xf]
      %v3129 = vld [vmem:[%s3118 + $0x28] sm:$0xf]
      %v3130 = vld [vmem:[%s3118 + $0x2c] sm:$0xf]
      %v3131 = vld [vmem:[%s3118 + $0x30] sm:$0xf]
      %v3132 = vld [vmem:[%s3118 + $0x34] sm:$0xf]
      %v3133 = vld [vmem:[%s3118 + $0x38] sm:$0xf]
      %v3134 = vld [vmem:[%s3118 + $0x3c] sm:$0xf]
      %v3136 = vunpack.c.l.b16 %v3117
      %v3137 = vpack.c.b16 %v3044, %v3136
      %v3138 = vrot.slane %v3137, 2
      %v3156 = vunpack.c.l.b16 %v3119
      %v3157 = vunpack.c.l.b16 %v3120
      %v3158 = vunpack.c.l.b16 %v3121
      %v3159 = vunpack.c.l.b16 %v3122
      %v3160 = vunpack.c.l.b16 %v3123
      %v3161 = vunpack.c.l.b16 %v3124
      %v3162 = vunpack.c.l.b16 %v3125
      %v3163 = vunpack.c.l.b16 %v3126
      %v3164 = vunpack.c.l.b16 %v3127
      %v3165 = vunpack.c.l.b16 %v3128
      %v3166 = vunpack.c.l.b16 %v3129
      %v3167 = vunpack.c.l.b16 %v3130
      %v3168 = vunpack.c.l.b16 %v3131
      %v3169 = vunpack.c.l.b16 %v3132
      %v3170 = vunpack.c.l.b16 %v3133
      %v3171 = vunpack.c.l.b16 %v3134
      %v3172 = vpack.c.b16 %v3157, %v3156
      %v3173 = vpack.c.b16 %v3159, %v3158
      %v3174 = vpack.c.b16 %v3161, %v3160
      %v3175 = vpack.c.b16 %v3163, %v3162
      %v3176 = vpack.c.b16 %v3165, %v3164
      %v3177 = vpack.c.b16 %v3167, %v3166
      %v3178 = vpack.c.b16 %v3169, %v3168
      %v3179 = vpack.c.b16 %v3171, %v3170
      %3188 = vmatpush.bf16.msra.mxu0 %v3179
      %3189 = vmatpush.bf16.msra.mxu0 %v3178
      %3190 = vmatpush.bf16.msra.mxu0 %v3177
      %3191 = vmatpush.bf16.msra.mxu0 %v3176
      %3192 = vmatpush.bf16.msra.mxu0 %v3175
      %3193 = vmatpush.bf16.msra.mxu0 %v3174
      %3194 = vmatpush.bf16.msra.mxu0 %v3173
      %3195 = vmatpush.bf16.msra.mxu0 %v3172
      %3196 = vmatmul.bf16.gmra.mxu0 %v3138
      %v3197 = vpop.f32.mrf.mxu0
      %v3198 = vadd.f32 0.0, %v3197
      %v3199 = vpop.f32.mrf.mxu0
      %3200 = vdwg.mxu0
      %v3201 = vadd.f32 %v3116, %v3198
      %v3202 = vld [vmem:[#allocation3 + $0x8] sm:$0x7]
      %s3203 = scalar_lea.vmem %s3, 832
      %v3204 = vld [vmem:[%s3203] sm:$0xf]
      %v3205 = vld [vmem:[%s3203 + $0x4] sm:$0xf]
      %v3206 = vld [vmem:[%s3203 + $0x8] sm:$0xf]
      %v3207 = vld [vmem:[%s3203 + $0xc] sm:$0xf]
      %v3208 = vld [vmem:[%s3203 + $0x10] sm:$0xf]
      %v3209 = vld [vmem:[%s3203 + $0x14] sm:$0xf]
      %v3210 = vld [vmem:[%s3203 + $0x18] sm:$0xf]
      %v3211 = vld [vmem:[%s3203 + $0x1c] sm:$0xf]
      %v3212 = vld [vmem:[%s3203 + $0x20] sm:$0xf]
      %v3213 = vld [vmem:[%s3203 + $0x24] sm:$0xf]
      %v3214 = vld [vmem:[%s3203 + $0x28] sm:$0xf]
      %v3215 = vld [vmem:[%s3203 + $0x2c] sm:$0xf]
      %v3216 = vld [vmem:[%s3203 + $0x30] sm:$0xf]
      %v3217 = vld [vmem:[%s3203 + $0x34] sm:$0xf]
      %v3218 = vld [vmem:[%s3203 + $0x38] sm:$0xf]
      %v3219 = vld [vmem:[%s3203 + $0x3c] sm:$0xf]
      %v3221 = vunpack.c.l.b16 %v3202
      %v3222 = vpack.c.b16 %v3221, %v3136
      %v3224 = vshrl.u32 %v3222, 16
      %v3226 = vrot.slane %v3224, 2
      %v3227 = vshll.u32 %v3222, 16
      %v3229 = vrot.slane %v3227, 3
      %v3230 = vor.u32 %v3226, %v3229
      %v3248 = vunpack.c.l.b16 %v3204
      %v3249 = vunpack.c.l.b16 %v3205
      %v3250 = vunpack.c.l.b16 %v3206
      %v3251 = vunpack.c.l.b16 %v3207
      %v3252 = vunpack.c.l.b16 %v3208
      %v3253 = vunpack.c.l.b16 %v3209
      %v3254 = vunpack.c.l.b16 %v3210
      %v3255 = vunpack.c.l.b16 %v3211
      %v3256 = vunpack.c.l.b16 %v3212
      %v3257 = vunpack.c.l.b16 %v3213
      %v3258 = vunpack.c.l.b16 %v3214
      %v3259 = vunpack.c.l.b16 %v3215
      %v3260 = vunpack.c.l.b16 %v3216
      %v3261 = vunpack.c.l.b16 %v3217
      %v3262 = vunpack.c.l.b16 %v3218
      %v3263 = vunpack.c.l.b16 %v3219
      %v3264 = vpack.c.b16 %v3249, %v3248
      %v3265 = vpack.c.b16 %v3251, %v3250
      %v3266 = vpack.c.b16 %v3253, %v3252
      %v3267 = vpack.c.b16 %v3255, %v3254
      %v3268 = vpack.c.b16 %v3257, %v3256
      %v3269 = vpack.c.b16 %v3259, %v3258
      %v3270 = vpack.c.b16 %v3261, %v3260
      %v3271 = vpack.c.b16 %v3263, %v3262
      %3280 = vmatpush.bf16.msra.mxu0 %v3271
      %3281 = vmatpush.bf16.msra.mxu0 %v3270
      %3282 = vmatpush.bf16.msra.mxu0 %v3269
      %3283 = vmatpush.bf16.msra.mxu0 %v3268
      %3284 = vmatpush.bf16.msra.mxu0 %v3267
      %3285 = vmatpush.bf16.msra.mxu0 %v3266
      %3286 = vmatpush.bf16.msra.mxu0 %v3265
      %3287 = vmatpush.bf16.msra.mxu0 %v3264
      %3288 = vmatmul.bf16.gmra.mxu0 %v3230
      %v3289 = vpop.f32.mrf.mxu0
      %v3290 = vadd.f32 0.0, %v3289
      %v3291 = vpop.f32.mrf.mxu0
      %3292 = vdwg.mxu0
      %v3293 = vadd.f32 %v3201, %v3290
      %v3294 = vld [vmem:[#allocation3 + $0x4] sm:$0x8]
      %s3295 = scalar_lea.vmem %s3, 896
      %v3296 = vld [vmem:[%s3295] sm:$0xf]
      %v3297 = vld [vmem:[%s3295 + $0x4] sm:$0xf]
      %v3298 = vld [vmem:[%s3295 + $0x8] sm:$0xf]
      %v3299 = vld [vmem:[%s3295 + $0xc] sm:$0xf]
      %v3300 = vld [vmem:[%s3295 + $0x10] sm:$0xf]
      %v3301 = vld [vmem:[%s3295 + $0x14] sm:$0xf]
      %v3302 = vld [vmem:[%s3295 + $0x18] sm:$0xf]
      %v3303 = vld [vmem:[%s3295 + $0x1c] sm:$0xf]
      %v3304 = vld [vmem:[%s3295 + $0x20] sm:$0xf]
      %v3305 = vld [vmem:[%s3295 + $0x24] sm:$0xf]
      %v3306 = vld [vmem:[%s3295 + $0x28] sm:$0xf]
      %v3307 = vld [vmem:[%s3295 + $0x2c] sm:$0xf]
      %v3308 = vld [vmem:[%s3295 + $0x30] sm:$0xf]
      %v3309 = vld [vmem:[%s3295 + $0x34] sm:$0xf]
      %v3310 = vld [vmem:[%s3295 + $0x38] sm:$0xf]
      %v3311 = vld [vmem:[%s3295 + $0x3c] sm:$0xf]
      %v3313 = vunpack.c.l.b16 %v3294
      %v3314 = vpack.c.b16 %v3221, %v3313
      %v3315 = vrot.slane %v3314, 3
      %v3333 = vunpack.c.l.b16 %v3296
      %v3334 = vunpack.c.l.b16 %v3297
      %v3335 = vunpack.c.l.b16 %v3298
      %v3336 = vunpack.c.l.b16 %v3299
      %v3337 = vunpack.c.l.b16 %v3300
      %v3338 = vunpack.c.l.b16 %v3301
      %v3339 = vunpack.c.l.b16 %v3302
      %v3340 = vunpack.c.l.b16 %v3303
      %v3341 = vunpack.c.l.b16 %v3304
      %v3342 = vunpack.c.l.b16 %v3305
      %v3343 = vunpack.c.l.b16 %v3306
      %v3344 = vunpack.c.l.b16 %v3307
      %v3345 = vunpack.c.l.b16 %v3308
      %v3346 = vunpack.c.l.b16 %v3309
      %v3347 = vunpack.c.l.b16 %v3310
      %v3348 = vunpack.c.l.b16 %v3311
      %v3349 = vpack.c.b16 %v3334, %v3333
      %v3350 = vpack.c.b16 %v3336, %v3335
      %v3351 = vpack.c.b16 %v3338, %v3337
      %v3352 = vpack.c.b16 %v3340, %v3339
      %v3353 = vpack.c.b16 %v3342, %v3341
      %v3354 = vpack.c.b16 %v3344, %v3343
      %v3355 = vpack.c.b16 %v3346, %v3345
      %v3356 = vpack.c.b16 %v3348, %v3347
      %3365 = vmatpush.bf16.msra.mxu0 %v3356
      %3366 = vmatpush.bf16.msra.mxu0 %v3355
      %3367 = vmatpush.bf16.msra.mxu0 %v3354
      %3368 = vmatpush.bf16.msra.mxu0 %v3353
      %3369 = vmatpush.bf16.msra.mxu0 %v3352
      %3370 = vmatpush.bf16.msra.mxu0 %v3351
      %3371 = vmatpush.bf16.msra.mxu0 %v3350
      %3372 = vmatpush.bf16.msra.mxu0 %v3349
      %3373 = vmatmul.bf16.gmra.mxu0 %v3315
      %v3374 = vpop.f32.mrf.mxu0
      %v3375 = vadd.f32 0.0, %v3374
      %v3376 = vpop.f32.mrf.mxu0
      %3377 = vdwg.mxu0
      %v3378 = vadd.f32 %v3293, %v3375
      %v3379 = vld [vmem:[#allocation3 + $0x8] sm:$0xf]
      %s3380 = scalar_lea.vmem %s3, 960
      %v3381 = vld [vmem:[%s3380] sm:$0xf]
      %v3382 = vld [vmem:[%s3380 + $0x4] sm:$0xf]
      %v3383 = vld [vmem:[%s3380 + $0x8] sm:$0xf]
      %v3384 = vld [vmem:[%s3380 + $0xc] sm:$0xf]
      %v3385 = vld [vmem:[%s3380 + $0x10] sm:$0xf]
      %v3386 = vld [vmem:[%s3380 + $0x14] sm:$0xf]
      %v3387 = vld [vmem:[%s3380 + $0x18] sm:$0xf]
      %v3388 = vld [vmem:[%s3380 + $0x1c] sm:$0xf]
      %v3389 = vld [vmem:[%s3380 + $0x20] sm:$0xf]
      %v3390 = vld [vmem:[%s3380 + $0x24] sm:$0xf]
      %v3391 = vld [vmem:[%s3380 + $0x28] sm:$0xf]
      %v3392 = vld [vmem:[%s3380 + $0x2c] sm:$0xf]
      %v3393 = vld [vmem:[%s3380 + $0x30] sm:$0xf]
      %v3394 = vld [vmem:[%s3380 + $0x34] sm:$0xf]
      %v3395 = vld [vmem:[%s3380 + $0x38] sm:$0xf]
      %v3396 = vld [vmem:[%s3380 + $0x3c] sm:$0xf]
      %v3398 = vunpack.c.l.b16 %v3379
      %v3399 = vpack.c.b16 %v3398, %v3313
      %v3401 = vshrl.u32 %v3399, 16
      %v3403 = vrot.slane %v3401, 3
      %v3404 = vshll.u32 %v3399, 16
      %v3406 = vrot.slane %v3404, 4
      %v3407 = vor.u32 %v3403, %v3406
      %v3425 = vunpack.c.l.b16 %v3381
      %v3426 = vunpack.c.l.b16 %v3382
      %v3427 = vunpack.c.l.b16 %v3383
      %v3428 = vunpack.c.l.b16 %v3384
      %v3429 = vunpack.c.l.b16 %v3385
      %v3430 = vunpack.c.l.b16 %v3386
      %v3431 = vunpack.c.l.b16 %v3387
      %v3432 = vunpack.c.l.b16 %v3388
      %v3433 = vunpack.c.l.b16 %v3389
      %v3434 = vunpack.c.l.b16 %v3390
      %v3435 = vunpack.c.l.b16 %v3391
      %v3436 = vunpack.c.l.b16 %v3392
      %v3437 = vunpack.c.l.b16 %v3393
      %v3438 = vunpack.c.l.b16 %v3394
      %v3439 = vunpack.c.l.b16 %v3395
      %v3440 = vunpack.c.l.b16 %v3396
      %v3441 = vpack.c.b16 %v3426, %v3425
      %v3442 = vpack.c.b16 %v3428, %v3427
      %v3443 = vpack.c.b16 %v3430, %v3429
      %v3444 = vpack.c.b16 %v3432, %v3431
      %v3445 = vpack.c.b16 %v3434, %v3433
      %v3446 = vpack.c.b16 %v3436, %v3435
      %v3447 = vpack.c.b16 %v3438, %v3437
      %v3448 = vpack.c.b16 %v3440, %v3439
      %3457 = vmatpush.bf16.msra.mxu0 %v3448
      %3458 = vmatpush.bf16.msra.mxu0 %v3447
      %3459 = vmatpush.bf16.msra.mxu0 %v3446
      %3460 = vmatpush.bf16.msra.mxu0 %v3445
      %3461 = vmatpush.bf16.msra.mxu0 %v3444
      %3462 = vmatpush.bf16.msra.mxu0 %v3443
      %3463 = vmatpush.bf16.msra.mxu0 %v3442
      %3464 = vmatpush.bf16.msra.mxu0 %v3441
      %3465 = vmatmul.bf16.gmra.mxu0 %v3407
      %v3466 = vpop.f32.mrf.mxu0
      %v3467 = vadd.f32 0.0, %v3466
      %v3468 = vpop.f32.mrf.mxu0
      %3469 = vdwg.mxu0
      %v3470 = vadd.f32 %v3378, %v3467
      %s3471 = scalar_lea.vmem %s3, 1024
      %v3472 = vld [vmem:[%s3471] sm:$0xf]
      %v3473 = vld [vmem:[%s3471 + $0x4] sm:$0xf]
      %v3474 = vld [vmem:[%s3471 + $0x8] sm:$0xf]
      %v3475 = vld [vmem:[%s3471 + $0xc] sm:$0xf]
      %v3476 = vld [vmem:[%s3471 + $0x10] sm:$0xf]
      %v3477 = vld [vmem:[%s3471 + $0x14] sm:$0xf]
      %v3478 = vld [vmem:[%s3471 + $0x18] sm:$0xf]
      %v3479 = vld [vmem:[%s3471 + $0x1c] sm:$0xf]
      %v3480 = vld [vmem:[%s3471 + $0x20] sm:$0xf]
      %v3481 = vld [vmem:[%s3471 + $0x24] sm:$0xf]
      %v3482 = vld [vmem:[%s3471 + $0x28] sm:$0xf]
      %v3483 = vld [vmem:[%s3471 + $0x2c] sm:$0xf]
      %v3484 = vld [vmem:[%s3471 + $0x30] sm:$0xf]
      %v3485 = vld [vmem:[%s3471 + $0x34] sm:$0xf]
      %v3486 = vld [vmem:[%s3471 + $0x38] sm:$0xf]
      %v3487 = vld [vmem:[%s3471 + $0x3c] sm:$0xf]
      %v3504 = vunpack.c.l.b16 %v3472
      %v3505 = vunpack.c.l.b16 %v3473
      %v3506 = vunpack.c.l.b16 %v3474
      %v3507 = vunpack.c.l.b16 %v3475
      %v3508 = vunpack.c.l.b16 %v3476
      %v3509 = vunpack.c.l.b16 %v3477
      %v3510 = vunpack.c.l.b16 %v3478
      %v3511 = vunpack.c.l.b16 %v3479
      %v3512 = vunpack.c.l.b16 %v3480
      %v3513 = vunpack.c.l.b16 %v3481
      %v3514 = vunpack.c.l.b16 %v3482
      %v3515 = vunpack.c.l.b16 %v3483
      %v3516 = vunpack.c.l.b16 %v3484
      %v3517 = vunpack.c.l.b16 %v3485
      %v3518 = vunpack.c.l.b16 %v3486
      %v3519 = vunpack.c.l.b16 %v3487
      %v3520 = vpack.c.b16 %v3505, %v3504
      %v3521 = vpack.c.b16 %v3507, %v3506
      %v3522 = vpack.c.b16 %v3509, %v3508
      %v3523 = vpack.c.b16 %v3511, %v3510
      %v3524 = vpack.c.b16 %v3513, %v3512
      %v3525 = vpack.c.b16 %v3515, %v3514
      %v3526 = vpack.c.b16 %v3517, %v3516
      %v3527 = vpack.c.b16 %v3519, %v3518
      %3536 = vmatpush.bf16.msra.mxu0 %v3527
      %3537 = vmatpush.bf16.msra.mxu0 %v3526
      %3538 = vmatpush.bf16.msra.mxu0 %v3525
      %3539 = vmatpush.bf16.msra.mxu0 %v3524
      %3540 = vmatpush.bf16.msra.mxu0 %v3523
      %3541 = vmatpush.bf16.msra.mxu0 %v3522
      %3542 = vmatpush.bf16.msra.mxu0 %v3521
      %3543 = vmatpush.bf16.msra.mxu0 %v3520
      %3544 = vmatmul.bf16.gmra.mxu0 %v3379
      %v3545 = vpop.f32.mrf.mxu0
      %v3546 = vadd.f32 0.0, %v3545
      %v3547 = vpop.f32.mrf.mxu0
      %3548 = vdwg.mxu0
      %v3549 = vadd.f32 %v3470, %v3546
      %v3550 = vld [vmem:[%s4] sm:$0x1]
      %v3552 = vperm.slane %v3550, 0
      %v3554 = vadd.f32 %v3549, %v3552
      %v3555 = vld [vmem:[#allocation2 + $0x8] sm:$0xf]
      %v3556 = vld [vmem:[%s5] sm:$0xf]
      %v3557 = vld [vmem:[%s5 + $0x4] sm:$0xf]
      %v3558 = vld [vmem:[%s5 + $0x8] sm:$0xf]
      %v3559 = vld [vmem:[%s5 + $0xc] sm:$0xf]
      %v3560 = vld [vmem:[%s5 + $0x10] sm:$0xf]
      %v3561 = vld [vmem:[%s5 + $0x14] sm:$0xf]
      %v3562 = vld [vmem:[%s5 + $0x18] sm:$0xf]
      %v3563 = vld [vmem:[%s5 + $0x1c] sm:$0xf]
      %v3564 = vld [vmem:[%s5 + $0x20] sm:$0xf]
      %v3565 = vld [vmem:[%s5 + $0x24] sm:$0xf]
      %v3566 = vld [vmem:[%s5 + $0x28] sm:$0xf]
      %v3567 = vld [vmem:[%s5 + $0x2c] sm:$0xf]
      %v3568 = vld [vmem:[%s5 + $0x30] sm:$0xf]
      %v3569 = vld [vmem:[%s5 + $0x34] sm:$0xf]
      %v3570 = vld [vmem:[%s5 + $0x38] sm:$0xf]
      %v3571 = vld [vmem:[%s5 + $0x3c] sm:$0xf]
      %v3572 = vld [vmem:[%s6] sm:$0x1]
      %v3574 = vperm.slane %v3572, 0
      %v3592 = vunpack.c.l.b16 %v3556
      %v3593 = vunpack.c.l.b16 %v3557
      %v3594 = vunpack.c.l.b16 %v3558
      %v3595 = vunpack.c.l.b16 %v3559
      %v3596 = vunpack.c.l.b16 %v3560
      %v3597 = vunpack.c.l.b16 %v3561
      %v3598 = vunpack.c.l.b16 %v3562
      %v3599 = vunpack.c.l.b16 %v3563
      %v3600 = vunpack.c.l.b16 %v3564
      %v3601 = vunpack.c.l.b16 %v3565
      %v3602 = vunpack.c.l.b16 %v3566
      %v3603 = vunpack.c.l.b16 %v3567
      %v3604 = vunpack.c.l.b16 %v3568
      %v3605 = vunpack.c.l.b16 %v3569
      %v3606 = vunpack.c.l.b16 %v3570
      %v3607 = vunpack.c.l.b16 %v3571
      %v3608 = vpack.c.b16 %v3593, %v3592
      %v3609 = vpack.c.b16 %v3595, %v3594
      %v3610 = vpack.c.b16 %v3597, %v3596
      %v3611 = vpack.c.b16 %v3599, %v3598
      %v3612 = vpack.c.b16 %v3601, %v3600
      %v3613 = vpack.c.b16 %v3603, %v3602
      %v3614 = vpack.c.b16 %v3605, %v3604
      %v3615 = vpack.c.b16 %v3607, %v3606
      %3624 = vmatpush.bf16.msra.mxu0 %v3615
      %3625 = vmatpush.bf16.msra.mxu0 %v3614
      %3626 = vmatpush.bf16.msra.mxu0 %v3613
      %3627 = vmatpush.bf16.msra.mxu0 %v3612
      %3628 = vmatpush.bf16.msra.mxu0 %v3611
      %3629 = vmatpush.bf16.msra.mxu0 %v3610
      %3630 = vmatpush.bf16.msra.mxu0 %v3609
      %3631 = vmatpush.bf16.msra.mxu0 %v3608
      %3632 = vmatmul.bf16.gmra.mxu0 %v3555
      %v3633 = vpop.f32.mrf.mxu0
      %v3634 = vadd.f32 %v3574, %v3633
      %v3635 = vpop.f32.mrf.mxu0
      %3636 = vdwg.mxu0
      %v3637 = vadd.f32 %v3554, %v3634
      %v3638 = vmax.f32 %v3637, 0.0
      %3639 = vst [vmem:[%s252] sm:$0xff] %v3638
      %p3640 = scmp.lt.s32.totalorder %s22, 1
      %s3641 = scalar_select %p3640, %s22, 1
      %p3642 = scmp.lt.s32.totalorder %s23, 1
      %s3643 = scalar_select %p3642, %s23, 1
      %s3644 = smul.addr %s3641, 2
      %s3645 = sadd.s32 %s3643, %s3644
      %s3646 = smul.addr %s3645, 8
      %s3647 = scalar_lea.vmem %s7, %s3646
      // Predicated region
      $region67: #{residual_unit_forward.1} parent=43 // pred_check
        %p3648 = pneg %p176
      $region68: #{residual_unit_forward.1} parent=43 // pred_check_branch
        %3650 = sbr.rel (%p3648) target = $region70
      $region69: #{residual_unit_forward.1} parent=43 // pred_region
        _
      $region70: #{residual_unit_forward.1} parent=43 // pred_fallthru
        _
    $region44: #{residual_unit_forward.1} parent=5 // pred_fallthru
      _
    %p3651 = scmp.le.s32.totalorder 2, %s13
    // Predicated region
    $region71: #{residual_unit_forward.1} parent=5 // pred_check
      %p3652 = pneg %p3651
    $region72: #{residual_unit_forward.1} parent=5 // pred_check_branch
      %3654 = sbr.rel (%p3652) target = $region74
    $region73: #{residual_unit_forward.1} parent=5 // pred_region
      %s3655 = ssub.s32 %s13, 2
      // Predicated region
      $region75: #{residual_unit_forward.1} parent=73 // pred_check
        %p3656 = pneg %p182
      $region76: #{residual_unit_forward.1} parent=73 // pred_check_branch
        %3658 = sbr.rel (%p3656) target = $region78
      $region77: #{residual_unit_forward.1} parent=73 // pred_region
        %p3659 = scmp.lt.s32.totalorder %s24, 1
        %s3660 = scalar_select %p3659, %s24, 1
        %p3661 = scmp.lt.s32.totalorder %s25, 1
        %s3662 = scalar_select %p3661, %s25, 1
        %s3663 = smul.addr %s3660, 2
        %s3664 = sadd.s32 %s3662, %s3663
        %s3665 = smul.addr %s3664, 8
        %s3666 = scalar_lea.vmem %s7, %s3665
      $region78: #{residual_unit_forward.1} parent=73 // pred_fallthru
        _
    $region74: #{residual_unit_forward.1} parent=5 // pred_fallthru
      _
  $region6: #{residual_unit_forward.1} parent=0 // loop_footer
    %s17 = sadd.s32 1, %s13
  $region7: #{residual_unit_forward.1} parent=0 // loop_footer_branch
    %12 = sbr.rel target = $region3
  $region8: #{residual_unit_forward.1} parent=0 // loop_exit
    _
  %3667 = vsyncmov [#allocation4]
  %s3668 = vpop.sfrf %3667
  %p3669 = scmp.eq.s32.totalorder %s3668, 0
  %p3670 = pneg %p3669
  %3672 = shalt.err (%p3670)

</llo_original>
